<compile_context>
chip_gen: v6e
topology: v6e:2x2x1
jax: 0.10.0
libtpu: 0.0.40
codegen_flags: <defaults>
</compile_context>

<pallas_src>
import functools

import jax
import jax.numpy as jnp
from jax.experimental import pallas as pl
from jax.experimental.pallas import tpu as pltpu

EPS_CBN = 1e-5

# ---- static phase / tap bookkeeping for the stride-2 (space-to-depth) view -------------
# _PH_OFF[(out_phase, k)] = (input_phase, spatial_offset) for a 3-tap (pad=1) kernel axis.
_PH_OFF = {(0, 0): (1, -1), (0, 1): (0, 0), (0, 2): (1, 0),
           (1, 0): (0, 0), (1, 1): (1, 0), (1, 2): (0, 1)}
# conv1's input is phase-independent (the replicated original map) so taps with equal
# offsets fold together:  _FOLD_KS[(phase, i)] = which 3x3 taps merge, _FOLD_OFF = offset.
_FOLD_KS = {(0, 0): (0,), (0, 1): (1, 2), (1, 0): (0, 1), (1, 1): (2,)}
_FOLD_OFF = {(0, 0): -1, (0, 1): 0, (1, 0): 0, (1, 1): 1}
# the 4 unique (input_phase, offset) pairs per spatial axis used by conv2's taps
_AXIS_KEYS = ((1, -1), (0, 0), (1, 0), (0, 1))


def _lane_pad(w):
    # leading/trailing zero pad of the flat row-padded buffer; >= W+1 and 128-aligned so
    # the main activation store is lane-aligned.
    return ((w + 1 + 127) // 128) * 128


def _pick_bb(batch):
    # Samples per grid step: stack small batches along the GEMM N axis to amortize the
    # per-step pipeline overhead and fill the MXU.  On v7x, a multi-step grid marked
    # "parallel" lets both TensorCores work; divisor choice keeps >=2 steps for B>8.
    for bb in (8, 4, 2, 1):
        if bb <= batch and batch % bb == 0:
            return bb
    return 1


# ----------------------------- Pallas kernels -------------------------------------------

def _prep_kernel(emb_ref, w1_ref, b1_ref, w2_ref, b2_ref, prev_ref, delta_ref, part_ref):
    # Fused fc_gamma/fc_beta for BOTH CBNs: (1,K)@(K,4E) -> ReLU -> block-diag (4E,4).
    h = jnp.dot(emb_ref[0], w1_ref[...], preferred_element_type=jnp.float32) + b1_ref[...]
    h = jnp.maximum(h, 0.0)
    delta_ref[0] = jnp.dot(h, w2_ref[...], preferred_element_type=jnp.float32) + b2_ref[...]
    # Single-pass per-sample sum / sum-of-squares partials of prev (CBN1 global stats).
    x = prev_ref[0]                                                      # (Cin, HW) f32
    s = jnp.sum(jnp.sum(x, axis=1, keepdims=True), axis=0, keepdims=True)
    q = jnp.sum(jnp.sum(x * x, axis=1, keepdims=True), axis=0, keepdims=True)
    part_ref[0] = jnp.concatenate([s, q], axis=1)                        # (1, 2)


def _conv1_kernel(scale_ref, shift_ref, x_ref, w_ref, y_ref, part_ref, buf_ref,
                  *, bb, h, w, lpad):
    hw = h * w
    cin = x_ref.shape[1]
    cout = y_ref.shape[1]
    step = pl.program_id(0)

    # CBN1 + ReLU (per-sample scale/shift from SMEM), stored bf16 into row-padded scratch.
    # Only the pad strips are zeroed (scratch is not zero-initialized); doing it every step
    # keeps the grid safely markable "parallel" for v7x's two TensorCores.
    zrow = jnp.zeros((cin, lpad), jnp.bfloat16)
    for s in range(bb):
        b = step * bb + s
        act = jnp.maximum(x_ref[s] * scale_ref[b] + shift_ref[b], 0.0)   # (Cin, HW) f32
        buf_ref[s, :, :lpad] = zrow
        buf_ref[s, :, lpad:lpad + hw] = act.astype(jnp.bfloat16)
        buf_ref[s, :, lpad + hw:] = zrow

    # Column-wrap masks, materialized once at full select shape (no per-tap re-broadcast).
    lane = jax.lax.broadcasted_iota(jnp.int32, (cin, bb * hw), 1) % w
    m_neg = lane != 0
    m_pos = lane != (w - 1)
    zero = jnp.zeros((cin, bb * hw), jnp.bfloat16)

    # 9 unique shifted tap slabs of the (implicitly upsampled) activation; samples stacked
    # along the lane (N) axis: each slab is (Cin, bb*HW).
    taps = []
    for dr in (-1, 0, 1):
        for dc in (-1, 0, 1):
            st = lpad + dr * w + dc
            parts = [buf_ref[s, :, st:st + hw] for s in range(bb)]
            v = parts[0] if bb == 1 else jnp.concatenate(parts, axis=1)
            if dc == -1:
                v = jnp.where(m_neg, v, zero)
            elif dc == 1:
                v = jnp.where(m_pos, v, zero)
            taps.append(v)
    cols = jnp.concatenate(taps, axis=0)                                 # (9*Cin, bb*HW)

    # ONE fused MXU pass for all 4 output phases (block weight (4*Cout, 9*Cin)); conv1 has
    # no bias (spectral_norm(Conv2d(..., bias=False))).
    o = jnp.dot(w_ref[...], cols, preferred_element_type=jnp.float32)   # (4*Cout, bb*HW)

    # Single-pass sum / sum-of-squares epilogue for CBN2 (global over conv1's output).
    s_sum = jnp.sum(jnp.sum(o, axis=1, keepdims=True), axis=0, keepdims=True)
    q_sum = jnp.sum(jnp.sum(o * o, axis=1, keepdims=True), axis=0, keepdims=True)
    part_ref[0] = jnp.concatenate([s_sum, q_sum], axis=1)                # (1, 2)

    # Per-phase / per-sample lane-aligned stores (no materialized (Cout, 4*HW) concat).
    ob = o.astype(jnp.bfloat16)
    for p in range(4):
        for s in range(bb):
            y_ref[s, :, p * hw:(p + 1) * hw] = \
                ob[p * cout:(p + 1) * cout, s * hw:(s + 1) * hw]


def _conv2_kernel(scale_ref, shift_ref, y1_ref, x_ref, w2_ref, w3_ref, bias_ref,
                  o_ref, buf_ref, *, bb, h, w, lpad):
    hw = h * w
    cout = w2_ref.shape[0]
    step = pl.program_id(0)

    # CBN2 + ReLU on conv1's phase-separated output, stored bf16 into row-padded scratch.
    zrow = jnp.zeros((cout, lpad), jnp.bfloat16)
    for s in range(bb):
        b = step * bb + s
        sc = scale_ref[b]
        sh = shift_ref[b]
        for p in range(4):
            yp = y1_ref[s, :, p * hw:(p + 1) * hw].astype(jnp.float32)
            q = 4 * s + p
            buf_ref[q, :, :lpad] = zrow
            buf_ref[q, :, lpad:lpad + hw] = jnp.maximum(yp * sc + sh, 0.0).astype(jnp.bfloat16)
            buf_ref[q, :, lpad + hw:] = zrow

    lane = jax.lax.broadcasted_iota(jnp.int32, (cout, bb * hw), 1) % w
    m_neg = lane != 0
    m_pos = lane != (w - 1)
    zero = jnp.zeros((cout, bb * hw), jnp.bfloat16)

    # 16 unique (input_phase, row/col offset) tap slabs, built/masked ONCE and reused by
    # all 4 output phases (dedup of the old 36 re-slices + selects).
    slabs = {}
    for pr, dr in _AXIS_KEYS:
        for pc, dc in _AXIS_KEYS:
            st = lpad + dr * w + dc
            parts = [buf_ref[4 * s + 2 * pr + pc, :, st:st + hw] for s in range(bb)]
            v = parts[0] if bb == 1 else jnp.concatenate(parts, axis=1)
            if dc == -1:
                v = jnp.where(m_neg, v, zero)
            elif dc == 1:
                v = jnp.where(m_pos, v, zero)
            slabs[(pr, dr, pc, dc)] = v                                  # (Cout, bb*HW)

    # Residual: conv3 is 1x1 so it commutes with nearest upsample -> compute once on the
    # RAW bf16 prev and broadcast to every output phase.  bias = conv2_b + conv3_b.
    xparts = [x_ref[s] for s in range(bb)]
    x_cat = xparts[0] if bb == 1 else jnp.concatenate(xparts, axis=1)    # (Cin, bb*HW)
    res = jnp.dot(w3_ref[...], x_cat, preferred_element_type=jnp.float32) + bias_ref[...]

    # One MXU pass for all 4 output phases: shared (Cout, 9*Cout) weight, phases stacked
    # along N.  (On v7x at production sizes, tile N / keep per-phase if VMEM-tight.)
    phase_cols = []
    for a in (0, 1):
        for c in (0, 1):
            t = [slabs[_PH_OFF[(a, kh)] + _PH_OFF[(c, kw)]]
                 for kh in range(3) for kw in range(3)]
            phase_cols.append(jnp.concatenate(t, axis=0))                # (9*Cout, bb*HW)
    cols = jnp.concatenate(phase_cols, axis=1)                           # (9*Cout, 4*bb*HW)
    out = jnp.dot(w2_ref[...], cols, preferred_element_type=jnp.float32)  # (Cout, 4*bb*HW)

    # Per-phase / per-sample lane-aligned bf16 stores.
    for p in range(4):
        for s in range(bb):
            o_ref[s, :, p * hw:(p + 1) * hw] = (
                out[:, (p * bb + s) * hw:(p * bb + s + 1) * hw]
                + res[:, s * hw:(s + 1) * hw]).astype(o_ref.dtype)


# ----------------------------- pallas_call wrappers -------------------------------------

def prep_call(emb_cat3, w1s, b1s, w2s, b2s, prev_flat):
    B, Cin, HW = prev_flat.shape
    K = emb_cat3.shape[-1]
    E4 = w1s.shape[1]
    return pl.pallas_call(
        _prep_kernel,
        grid=(B,),
        in_specs=[
            pl.BlockSpec((1, 1, K), lambda b: (b, 0, 0)),
            pl.BlockSpec((K, E4), lambda b: (0, 0)),
            pl.BlockSpec((1, E4), lambda b: (0, 0)),
            pl.BlockSpec((E4, 4), lambda b: (0, 0)),
            pl.BlockSpec((1, 4), lambda b: (0, 0)),
            pl.BlockSpec((1, Cin, HW), lambda b: (b, 0, 0)),
        ],
        out_specs=[
            pl.BlockSpec((1, 1, 4), lambda b: (b, 0, 0)),
            pl.BlockSpec((1, 1, 2), lambda b: (b, 0, 0)),
        ],
        out_shape=(jax.ShapeDtypeStruct((B, 1, 4), jnp.float32),
                   jax.ShapeDtypeStruct((B, 1, 2), jnp.float32)),
        compiler_params=pltpu.CompilerParams(dimension_semantics=("parallel",)),
    )(emb_cat3, w1s, b1s, w2s, b2s, prev_flat)


def conv1_call(scale, shift, prev_flat, w1f, H, W, bb):
    B, Cin, HW = prev_flat.shape
    Cout = w1f.shape[0] // 4
    lpad = _lane_pad(W)
    buf_len = 2 * lpad + HW
    nsteps = B // bb
    kern = functools.partial(_conv1_kernel, bb=bb, h=H, w=W, lpad=lpad)
    # TODO(synk): for production sizes on v7x (64 MiB VMEM) add an HW grid axis with halo
    # handling (or a manual row-window DMA) and set vmem_limit_bytes explicitly; at these
    # sizes whole-HW-per-step blocks are tiny.
    return pl.pallas_call(
        kern,
        grid=(nsteps,),
        in_specs=[
            pl.BlockSpec(memory_space=pltpu.MemorySpace.SMEM),           # scale (B,)
            pl.BlockSpec(memory_space=pltpu.MemorySpace.SMEM),           # shift (B,)
            pl.BlockSpec((bb, Cin, HW), lambda g: (g, 0, 0)),
            pl.BlockSpec((4 * Cout, 9 * Cin), lambda g: (0, 0)),
        ],
        out_specs=[
            pl.BlockSpec((bb, Cout, 4 * HW), lambda g: (g, 0, 0)),
            pl.BlockSpec((1, 1, 2), lambda g: (g, 0, 0)),
        ],
        out_shape=(jax.ShapeDtypeStruct((B, Cout, 4 * HW), jnp.bfloat16),
                   jax.ShapeDtypeStruct((nsteps, 1, 2), jnp.float32)),
        scratch_shapes=[pltpu.VMEM((bb, Cin, buf_len), jnp.bfloat16)],
        compiler_params=pltpu.CompilerParams(dimension_semantics=("parallel",)),
    )(scale, shift, prev_flat, w1f)


def conv2_call(scale, shift, y1, prev_bf16, w2p, w3, bias23, H, W, bb):
    B, Cin, HW = prev_bf16.shape
    Cout = w2p.shape[0]
    lpad = _lane_pad(W)
    buf_len = 2 * lpad + HW
    nsteps = B // bb
    kern = functools.partial(_conv2_kernel, bb=bb, h=H, w=W, lpad=lpad)
    # (If profiling shows exposed DMA on y1 on v5e/v6e, add pipeline_mode=pl.Buffered(3)
    #  to its BlockSpec; keep the default depth on v7x where VMEM headroom is tighter.)
    return pl.pallas_call(
        kern,
        grid=(nsteps,),
        in_specs=[
            pl.BlockSpec(memory_space=pltpu.MemorySpace.SMEM),           # scale (B,)
            pl.BlockSpec(memory_space=pltpu.MemorySpace.SMEM),           # shift (B,)
            pl.BlockSpec((bb, Cout, 4 * HW), lambda g: (g, 0, 0)),
            pl.BlockSpec((bb, Cin, HW), lambda g: (g, 0, 0)),            # bf16 prev
            pl.BlockSpec((Cout, 9 * Cout), lambda g: (0, 0)),
            pl.BlockSpec((Cout, Cin), lambda g: (0, 0)),
            pl.BlockSpec((Cout, 1), lambda g: (0, 0)),
        ],
        out_specs=pl.BlockSpec((bb, Cout, 4 * HW), lambda g: (g, 0, 0)),
        out_shape=jax.ShapeDtypeStruct((B, Cout, 4 * HW), jnp.bfloat16),
        scratch_shapes=[pltpu.VMEM((4 * bb, Cout, buf_len), jnp.bfloat16)],
        compiler_params=pltpu.CompilerParams(dimension_semantics=("parallel",)),
    )(scale, shift, y1, prev_bf16, w2p, w3, bias23)


# ----------------------------- host-side init / packing ---------------------------------

def xavier_uniform(key, shape):
    fan_in, fan_out = shape
    a = (6.0 / (fan_in + fan_out)) ** 0.5
    return jax.random.uniform(key, shape, jnp.float32, -a, a)


def spectral_normalize(w, key, n_iter=1, eps=1e-12):
    # Mirrors torch.nn.utils.spectral_norm at the first forward: one power iteration.
    out_c = w.shape[0]
    w_mat = w.reshape(out_c, -1)
    u = jax.random.normal(key, (out_c,), jnp.float32)
    u = u / (jnp.linalg.norm(u) + eps)
    v = None
    for _ in range(n_iter):
        v = w_mat.T @ u
        v = v / (jnp.linalg.norm(v) + eps)
        u = w_mat @ v
        u = u / (jnp.linalg.norm(u) + eps)
    sigma = u @ (w_mat @ v)
    return w / sigma


def fold_conv1(w):
    # (Cout, Cin, 3, 3) -> (4*Cout, 9*Cin): per output phase the 3x3-on-upsampled conv
    # folds to a 2x2 conv on the ORIGINAL map; embed the 4 folded taps into the 9 unique
    # (dr, dc) offsets shared by all phases (zeros elsewhere) so ONE GEMM covers all phases.
    cout, cin = w.shape[0], w.shape[1]
    wk = jnp.zeros((4, cout, 3, 3, cin), jnp.float32)
    for a in (0, 1):
        for c in (0, 1):
            p = 2 * a + c
            for i in (0, 1):
                dr = _FOLD_OFF[(a, i)]
                for j in (0, 1):
                    dc = _FOLD_OFF[(c, j)]
                    k = sum(w[:, :, kh, kw]
                            for kh in _FOLD_KS[(a, i)] for kw in _FOLD_KS[(c, j)])
                    wk = wk.at[p, :, dr + 1, dc + 1, :].set(k)
    return wk.reshape(4 * cout, 9 * cin)


def pack_conv2(w):
    # (Cout, Cout, 3, 3) -> (Cout, 9*Cout) in (kh, kw)-major tap order (shared by phases).
    return jnp.concatenate([w[:, :, kh, kw] for kh in range(3) for kw in range(3)], axis=1)


def init_params(key, inp, cbn_in, emb_size, cbn_hidden, batch_size, out):
    assert cbn_hidden == 1, (
        "CBN's in-place `betas_cloned += delta_betas` only broadcasts when the fc output "
        "size (cbn_hidden) equals the CBN channel count (=1 here)."
    )
    ks = jax.random.split(key, 12)
    # Fused MLP params, order [cbn1_gamma, cbn1_beta, cbn2_gamma, cbn2_beta].
    w1_list, w2_list = [], []
    for i in range(4):
        k1, k2 = jax.random.split(ks[i])
        w1_list.append(xavier_uniform(k1, (cbn_in, emb_size)))
        w2_list.append(xavier_uniform(k2, (emb_size, cbn_hidden)))
    p = {
        'mlp_w1': jnp.concatenate(w1_list, axis=1),                       # (cbn_in, 4E)
        'mlp_b1': jnp.full((1, 4 * emb_size), 0.1, jnp.float32),          # constant_(bias, 0.1)
        'mlp_w2': jax.scipy.linalg.block_diag(*w2_list),                  # (4E, 4) block-diag
        'mlp_b2': jnp.full((1, 4), 0.1, jnp.float32),
        'gammas1': jnp.ones((batch_size,), jnp.float32),
        'betas1': jnp.zeros((batch_size,), jnp.float32),
        'gammas2': jnp.ones((batch_size,), jnp.float32),
        'betas2': jnp.zeros((batch_size,), jnp.float32),
    }
    # conv weights in torch (O, I, KH, KW) layout, spectral-normed, then packed for the
    # phase-space GEMMs (bf16 operands, f32 accumulation in-kernel).
    w1 = spectral_normalize(0.05 * jax.random.normal(ks[4], (out, inp, 3, 3), jnp.float32), ks[5])
    p['conv1_wf'] = fold_conv1(w1).astype(jnp.bfloat16)                   # (4*out, 9*inp)
    w2 = spectral_normalize(0.05 * jax.random.normal(ks[6], (out, out, 3, 3), jnp.float32), ks[7])
    p['conv2_wp'] = pack_conv2(w2).astype(jnp.bfloat16)                   # (out, 9*out)
    b2 = 0.05 * jax.random.normal(ks[8], (out,), jnp.float32)
    w3 = spectral_normalize(0.05 * jax.random.normal(ks[9], (out, inp, 1, 1), jnp.float32), ks[10])
    p['conv3_w'] = w3[:, :, 0, 0].astype(jnp.bfloat16)                    # (out, inp)
    b3 = 0.05 * jax.random.normal(ks[11], (out,), jnp.float32)
    p['bias23'] = (b2 + b3).reshape(out, 1)                               # conv2_b + conv3_b
    return p


# ----------------------------- forward ---------------------------------------------------

def resblock_up_forward(params, noise_chunk, emb, prev_nchw):
    # prev_nchw: (B, Cin, H, W) -> (B, Cout, 2H, 2W) bf16 (append .astype(f32) if needed).
    prev = prev_nchw.astype(jnp.float32)
    B, Cin, H, W = prev.shape
    HW = H * W
    prev_flat = prev.reshape(B, Cin, HW)                 # free view; lane-dense (C, HW)
    prev_bf16 = prev_flat.astype(jnp.bfloat16)           # residual-path operand (conv3)
    emb_cat = jnp.concatenate([emb, noise_chunk], axis=1).reshape(B, 1, -1)

    # one launch: all four CBN MLPs + CBN1 sum/sumsq partials
    deltas, part1 = prep_call(emb_cat, params['mlp_w1'], params['mlp_b1'],
                              params['mlp_w2'], params['mlp_b2'], prev_flat)
    deltas = deltas.reshape(B, 4)
    g1 = params['gammas1'] + deltas[:, 0]
    b1 = params['betas1'] + deltas[:, 1]
    g2 = params['gammas2'] + deltas[:, 2]
    b2 = params['betas2'] + deltas[:, 3]

    def stats_to_scale_shift(part, n, gamma, beta):
        # torch.mean / torch.var (default unbiased, n-1 divisor) over the whole tensor;
        # folded with gamma/beta into per-sample scale/shift scalars read from SMEM.
        s = jnp.sum(part[:, 0, 0])
        q = jnp.sum(part[:, 0, 1])
        mean = s / n
        var = (q - s * mean) / (n - 1.0)
        inv = jax.lax.rsqrt(var + EPS_CBN)
        return gamma * inv, beta - mean * inv * gamma

    bb = _pick_bb(B)
    scale1, shift1 = stats_to_scale_shift(part1, float(B * Cin * HW), g1, b1)
    y1, part2 = conv1_call(scale1, shift1, prev_flat, params['conv1_wf'], H, W, bb)
    Cout = y1.shape[1]
    scale2, shift2 = stats_to_scale_shift(part2, float(B * Cout * 4 * HW), g2, b2)
    out = conv2_call(scale2, shift2, y1, prev_bf16, params['conv2_wp'],
                     params['conv3_w'], params['bias23'], H, W, bb)

    # phase-separated (B, Cout, [2a+c]*HW) -> interleaved NCHW (B, Cout, 2H, 2W), in bf16
    # (half the HBM traffic of an f32 de-interleave).
    out = out.reshape(B, Cout, 2, 2, H, W)
    out = jnp.transpose(out, (0, 1, 4, 2, 5, 3)).reshape(B, Cout, 2 * H, 2 * W)
    return out


if __name__ == "__main__":
    key = jax.random.PRNGKey(0)
    B = 2
    inp, out_c = 4, 8
    H = W = 16
    emb_dim, noise_dim = 6, 2
    cbn_in = emb_dim + noise_dim
    emb_size = 16
    cbn_hidden = 1  # must be 1 for the reference CBN to be runnable (in-place broadcast add)

    k_params, k_noise, k_emb, k_prev = jax.random.split(key, 4)
    params = init_params(k_params, inp, cbn_in, emb_size, cbn_hidden, B, out_c)
    noise_chunk = jax.random.normal(k_noise, (B, noise_dim), jnp.float32)
    emb = jax.random.normal(k_emb, (B, emb_dim), jnp.float32)
    prev = jax.random.normal(k_prev, (B, inp, H, W), jnp.float32)

    fwd = jax.jit(resblock_up_forward)
    y = jax.block_until_ready(fwd(params, noise_chunk, emb, prev))
    assert y.shape == (B, out_c, 2 * H, 2 * W)
    assert bool(jnp.all(jnp.isfinite(y.astype(jnp.float32))))
    print("KERNEL_OK")
</pallas_src>

<mosaic_0001>
module attributes {stable_mosaic.version = 11 : i64} {
  func.func @_conv1_kernel(%arg0: i32, %arg1: memref<2xf32, #tpu.memory_space<smem>>, %arg2: memref<2xf32, #tpu.memory_space<smem>>, %arg3: memref<2x4x256xf32, #tpu.memory_space<vmem>>, %arg4: memref<32x36xbf16, #tpu.memory_space<vmem>>, %arg5: memref<2x8x1024xbf16, #tpu.memory_space<vmem>>, %arg6: memref<1x1x2xf32, #tpu.memory_space<vmem>>, %arg7: memref<2x4x512xbf16, #tpu.memory_space<vmem>>) attributes {dimension_semantics = [#tpu.dimension_semantics<parallel>], iteration_bounds = array<i64: 1>, scalar_prefetch = 0 : i64, scratch_operands = 1 : i64, tpu.core_type = #tpu.core_type<tc>, window_params = [{transform_indices = @transform_0, window_bounds = array<i64: 2>}, {transform_indices = @transform_1, window_bounds = array<i64: 2>}, {transform_indices = @transform_2, window_bounds = array<i64: 2, 4, 256>}, {pipeline_mode = #tpu.pipeline_mode<synchronous>, transform_indices = @transform_3, window_bounds = array<i64: 32, 36>}, {transform_indices = @transform_4, window_bounds = array<i64: 2, 8, 1024>}, {transform_indices = @transform_5, window_bounds = array<i64: 1, 1, 2>}]} {
    %cst = arith.constant 0.000000e+00 : bf16
    %0 = vector.broadcast %cst : bf16 to vector<4x128xbf16>
    %c2_i32 = arith.constant 2 : i32
    %1 = arith.muli %arg0, %c2_i32 : i32
    %c0_i32 = arith.constant 0 : i32
    %2 = arith.addi %1, %c0_i32 : i32
    %c0 = arith.constant 0 : index
    %c0_0 = arith.constant 0 : index
    %c0_1 = arith.constant 0 : index
    %3 = vector.load %arg3[%c0, %c0_0, %c0_1] : memref<2x4x256xf32, #tpu.memory_space<vmem>>, vector<1x4x256xf32>
    %4 = vector.shape_cast %3 : vector<1x4x256xf32> to vector<4x256xf32>
    %5 = arith.index_cast %2 : i32 to index
    %6 = memref.load %arg1[%5] : memref<2xf32, #tpu.memory_space<smem>>
    %7 = vector.broadcast %6 : f32 to vector<4x256xf32>
    %8 = arith.mulf %4, %7 : vector<4x256xf32>
    %9 = arith.index_cast %2 : i32 to index
    %10 = memref.load %arg2[%9] : memref<2xf32, #tpu.memory_space<smem>>
    %11 = vector.broadcast %10 : f32 to vector<4x256xf32>
    %12 = arith.addf %8, %11 : vector<4x256xf32>
    %cst_2 = arith.constant 0.000000e+00 : f32
    %13 = vector.broadcast %cst_2 : f32 to vector<4x256xf32>
    %14 = arith.maximumf %12, %13 : vector<4x256xf32>
    %c0_3 = arith.constant 0 : index
    %c0_4 = arith.constant 0 : index
    %c0_5 = arith.constant 0 : index
    %15 = vector.load %arg7[%c0_3, %c0_4, %c0_5] : memref<2x4x512xbf16, #tpu.memory_space<vmem>>, vector<1x4x128xbf16>
    %16 = vector.shape_cast %15 : vector<1x4x128xbf16> to vector<4x128xbf16>
    %17 = vector.shape_cast %0 : vector<4x128xbf16> to vector<1x4x128xbf16>
    tpu.vector_store %arg7[%c0_3, %c0_4, %c0_5], %17 {strides = array<i32>} : memref<2x4x512xbf16, #tpu.memory_space<vmem>>, vector<1x4x128xbf16>,
    %18 = arith.truncf %14 : vector<4x256xf32> to vector<4x256xbf16>
    %c0_6 = arith.constant 0 : index
    %c0_7 = arith.constant 0 : index
    %c128 = arith.constant 128 : index
    %19 = vector.load %arg7[%c0_6, %c0_7, %c128] : memref<2x4x512xbf16, #tpu.memory_space<vmem>>, vector<1x4x256xbf16>
    %20 = vector.shape_cast %19 : vector<1x4x256xbf16> to vector<4x256xbf16>
    %21 = vector.shape_cast %18 : vector<4x256xbf16> to vector<1x4x256xbf16>
    tpu.vector_store %arg7[%c0_6, %c0_7, %c128], %21 {strides = array<i32>} : memref<2x4x512xbf16, #tpu.memory_space<vmem>>, vector<1x4x256xbf16>,
    %c0_8 = arith.constant 0 : index
    %c0_9 = arith.constant 0 : index
    %c384 = arith.constant 384 : index
    %22 = vector.load %arg7[%c0_8, %c0_9, %c384] : memref<2x4x512xbf16, #tpu.memory_space<vmem>>, vector<1x4x128xbf16>
    %23 = vector.shape_cast %22 : vector<1x4x128xbf16> to vector<4x128xbf16>
    %24 = vector.shape_cast %0 : vector<4x128xbf16> to vector<1x4x128xbf16>
    tpu.vector_store %arg7[%c0_8, %c0_9, %c384], %24 {strides = array<i32>} : memref<2x4x512xbf16, #tpu.memory_space<vmem>>, vector<1x4x128xbf16>,
    %c2_i32_10 = arith.constant 2 : i32
    %25 = arith.muli %arg0, %c2_i32_10 : i32
    %c1_i32 = arith.constant 1 : i32
    %26 = arith.addi %25, %c1_i32 : i32
    %c1 = arith.constant 1 : index
    %c0_11 = arith.constant 0 : index
    %c0_12 = arith.constant 0 : index
    %27 = vector.load %arg3[%c1, %c0_11, %c0_12] : memref<2x4x256xf32, #tpu.memory_space<vmem>>, vector<1x4x256xf32>
    %28 = vector.shape_cast %27 : vector<1x4x256xf32> to vector<4x256xf32>
    %29 = arith.index_cast %26 : i32 to index
    %30 = memref.load %arg1[%29] : memref<2xf32, #tpu.memory_space<smem>>
    %31 = vector.broadcast %30 : f32 to vector<4x256xf32>
    %32 = arith.mulf %28, %31 : vector<4x256xf32>
    %33 = arith.index_cast %26 : i32 to index
    %34 = memref.load %arg2[%33] : memref<2xf32, #tpu.memory_space<smem>>
    %35 = vector.broadcast %34 : f32 to vector<4x256xf32>
    %36 = arith.addf %32, %35 : vector<4x256xf32>
    %cst_13 = arith.constant 0.000000e+00 : f32
    %37 = vector.broadcast %cst_13 : f32 to vector<4x256xf32>
    %38 = arith.maximumf %36, %37 : vector<4x256xf32>
    %c1_14 = arith.constant 1 : index
    %c0_15 = arith.constant 0 : index
    %c0_16 = arith.constant 0 : index
    %39 = vector.load %arg7[%c1_14, %c0_15, %c0_16] : memref<2x4x512xbf16, #tpu.memory_space<vmem>>, vector<1x4x128xbf16>
    %40 = vector.shape_cast %39 : vector<1x4x128xbf16> to vector<4x128xbf16>
    %41 = vector.shape_cast %0 : vector<4x128xbf16> to vector<1x4x128xbf16>
    tpu.vector_store %arg7[%c1_14, %c0_15, %c0_16], %41 {strides = array<i32>} : memref<2x4x512xbf16, #tpu.memory_space<vmem>>, vector<1x4x128xbf16>,
    %42 = arith.truncf %38 : vector<4x256xf32> to vector<4x256xbf16>
    %c1_17 = arith.constant 1 : index
    %c0_18 = arith.constant 0 : index
    %c128_19 = arith.constant 128 : index
    %43 = vector.load %arg7[%c1_17, %c0_18, %c128_19] : memref<2x4x512xbf16, #tpu.memory_space<vmem>>, vector<1x4x256xbf16>
    %44 = vector.shape_cast %43 : vector<1x4x256xbf16> to vector<4x256xbf16>
    %45 = vector.shape_cast %42 : vector<4x256xbf16> to vector<1x4x256xbf16>
    tpu.vector_store %arg7[%c1_17, %c0_18, %c128_19], %45 {strides = array<i32>} : memref<2x4x512xbf16, #tpu.memory_space<vmem>>, vector<1x4x256xbf16>,
    %c1_20 = arith.constant 1 : index
    %c0_21 = arith.constant 0 : index
    %c384_22 = arith.constant 384 : index
    %46 = vector.load %arg7[%c1_20, %c0_21, %c384_22] : memref<2x4x512xbf16, #tpu.memory_space<vmem>>, vector<1x4x128xbf16>
    %47 = vector.shape_cast %46 : vector<1x4x128xbf16> to vector<4x128xbf16>
    %48 = vector.shape_cast %0 : vector<4x128xbf16> to vector<1x4x128xbf16>
    tpu.vector_store %arg7[%c1_20, %c0_21, %c384_22], %48 {strides = array<i32>} : memref<2x4x512xbf16, #tpu.memory_space<vmem>>, vector<1x4x128xbf16>,
    %49 = tpu.iota {dimensions = array<i32: 1>} : vector<4x512xi32>
    %c16_i32 = arith.constant 16 : i32
    %c0_i32_23 = arith.constant 0 : i32
    %50 = arith.cmpi eq, %c16_i32, %c0_i32_23 : i32
    %c1_i32_24 = arith.constant 1 : i32
    %51 = arith.select %50, %c1_i32_24, %c16_i32 : i32
    %52 = vector.broadcast %51 : i32 to vector<4x512xi32>
    %53 = arith.remsi %49, %52 : vector<4x512xi32>
    %c0_i32_25 = arith.constant 0 : i32
    %54 = vector.broadcast %c0_i32_25 : i32 to vector<4x512xi32>
    %55 = arith.cmpi ne, %53, %54 : vector<4x512xi32>
    %c0_i32_26 = arith.constant 0 : i32
    %56 = vector.broadcast %c0_i32_26 : i32 to vector<4x512xi32>
    %57 = arith.cmpi slt, %53, %56 : vector<4x512xi32>
    %c0_i32_27 = arith.constant 0 : i32
    %58 = arith.cmpi slt, %51, %c0_i32_27 : i32
    %59 = vector.broadcast %58 : i1 to vector<4x512xi1>
    %60 = vector.broadcast %59 : vector<4x512xi1> to vector<4x512xi1>
    %61 = arith.xori %57, %60 : vector<4x512xi1>
    %62 = arith.andi %61, %55 : vector<4x512xi1>
    %63 = vector.broadcast %51 : i32 to vector<4x512xi32>
    %64 = arith.addi %53, %63 : vector<4x512xi32>
    %65 = arith.select %62, %64, %53 : vector<4x512xi1>, vector<4x512xi32>
    %c0_i32_28 = arith.constant 0 : i32
    %66 = vector.broadcast %c0_i32_28 : i32 to vector<4x512xi32>
    %67 = arith.cmpi ne, %65, %66 : vector<4x512xi32>
    %c15_i32 = arith.constant 15 : i32
    %68 = vector.broadcast %c15_i32 : i32 to vector<4x512xi32>
    %69 = arith.cmpi ne, %65, %68 : vector<4x512xi32>
    %cst_29 = arith.constant 0.000000e+00 : bf16
    %70 = vector.broadcast %cst_29 : bf16 to vector<4x512xbf16>
    %c0_30 = arith.constant 0 : index
    %c0_31 = arith.constant 0 : index
    %c111 = arith.constant 111 : index
    %71 = vector.load %arg7[%c0_30, %c0_31, %c111] : memref<2x4x512xbf16, #tpu.memory_space<vmem>>, vector<1x4x256xbf16>
    %72 = vector.shape_cast %71 : vector<1x4x256xbf16> to vector<4x256xbf16>
    %c1_32 = arith.constant 1 : index
    %c0_33 = arith.constant 0 : index
    %c111_34 = arith.constant 111 : index
    %73 = vector.load %arg7[%c1_32, %c0_33, %c111_34] : memref<2x4x512xbf16, #tpu.memory_space<vmem>>, vector<1x4x256xbf16>
    %74 = vector.shape_cast %73 : vector<1x4x256xbf16> to vector<4x256xbf16>
    %75 = tpu.concatenate %72, %74 in 1 : vector<4x256xbf16>, vector<4x256xbf16> -> vector<4x512xbf16>
    %76 = arith.select %67, %75, %70 : vector<4x512xi1>, vector<4x512xbf16>
    %c0_35 = arith.constant 0 : index
    %c0_36 = arith.constant 0 : index
    %c112 = arith.constant 112 : index
    %77 = vector.load %arg7[%c0_35, %c0_36, %c112] : memref<2x4x512xbf16, #tpu.memory_space<vmem>>, vector<1x4x256xbf16>
    %78 = vector.shape_cast %77 : vector<1x4x256xbf16> to vector<4x256xbf16>
    %c1_37 = arith.constant 1 : index
    %c0_38 = arith.constant 0 : index
    %c112_39 = arith.constant 112 : index
    %79 = vector.load %arg7[%c1_37, %c0_38, %c112_39] : memref<2x4x512xbf16, #tpu.memory_space<vmem>>, vector<1x4x256xbf16>
    %80 = vector.shape_cast %79 : vector<1x4x256xbf16> to vector<4x256xbf16>
    %81 = tpu.concatenate %78, %80 in 1 : vector<4x256xbf16>, vector<4x256xbf16> -> vector<4x512xbf16>
    %c0_40 = arith.constant 0 : index
    %c0_41 = arith.constant 0 : index
    %c113 = arith.constant 113 : index
    %82 = vector.load %arg7[%c0_40, %c0_41, %c113] : memref<2x4x512xbf16, #tpu.memory_space<vmem>>, vector<1x4x256xbf16>
    %83 = vector.shape_cast %82 : vector<1x4x256xbf16> to vector<4x256xbf16>
    %c1_42 = arith.constant 1 : index
    %c0_43 = arith.constant 0 : index
    %c113_44 = arith.constant 113 : index
    %84 = vector.load %arg7[%c1_42, %c0_43, %c113_44] : memref<2x4x512xbf16, #tpu.memory_space<vmem>>, vector<1x4x256xbf16>
    %85 = vector.shape_cast %84 : vector<1x4x256xbf16> to vector<4x256xbf16>
    %86 = tpu.concatenate %83, %85 in 1 : vector<4x256xbf16>, vector<4x256xbf16> -> vector<4x512xbf16>
    %87 = arith.select %69, %86, %70 : vector<4x512xi1>, vector<4x512xbf16>
    %c0_45 = arith.constant 0 : index
    %c0_46 = arith.constant 0 : index
    %c127 = arith.constant 127 : index
    %88 = vector.load %arg7[%c0_45, %c0_46, %c127] : memref<2x4x512xbf16, #tpu.memory_space<vmem>>, vector<1x4x256xbf16>
    %89 = vector.shape_cast %88 : vector<1x4x256xbf16> to vector<4x256xbf16>
    %c1_47 = arith.constant 1 : index
    %c0_48 = arith.constant 0 : index
    %c127_49 = arith.constant 127 : index
    %90 = vector.load %arg7[%c1_47, %c0_48, %c127_49] : memref<2x4x512xbf16, #tpu.memory_space<vmem>>, vector<1x4x256xbf16>
    %91 = vector.shape_cast %90 : vector<1x4x256xbf16> to vector<4x256xbf16>
    %92 = tpu.concatenate %89, %91 in 1 : vector<4x256xbf16>, vector<4x256xbf16> -> vector<4x512xbf16>
    %93 = arith.select %67, %92, %70 : vector<4x512xi1>, vector<4x512xbf16>
    %c0_50 = arith.constant 0 : index
    %c0_51 = arith.constant 0 : index
    %c128_52 = arith.constant 128 : index
    %94 = vector.load %arg7[%c0_50, %c0_51, %c128_52] : memref<2x4x512xbf16, #tpu.memory_space<vmem>>, vector<1x4x256xbf16>
    %95 = vector.shape_cast %94 : vector<1x4x256xbf16> to vector<4x256xbf16>
    %c1_53 = arith.constant 1 : index
    %c0_54 = arith.constant 0 : index
    %c128_55 = arith.constant 128 : index
    %96 = vector.load %arg7[%c1_53, %c0_54, %c128_55] : memref<2x4x512xbf16, #tpu.memory_space<vmem>>, vector<1x4x256xbf16>
    %97 = vector.shape_cast %96 : vector<1x4x256xbf16> to vector<4x256xbf16>
    %98 = tpu.concatenate %95, %97 in 1 : vector<4x256xbf16>, vector<4x256xbf16> -> vector<4x512xbf16>
    %c0_56 = arith.constant 0 : index
    %c0_57 = arith.constant 0 : index
    %c129 = arith.constant 129 : index
    %99 = vector.load %arg7[%c0_56, %c0_57, %c129] : memref<2x4x512xbf16, #tpu.memory_space<vmem>>, vector<1x4x256xbf16>
    %100 = vector.shape_cast %99 : vector<1x4x256xbf16> to vector<4x256xbf16>
    %c1_58 = arith.constant 1 : index
    %c0_59 = arith.constant 0 : index
    %c129_60 = arith.constant 129 : index
    %101 = vector.load %arg7[%c1_58, %c0_59, %c129_60] : memref<2x4x512xbf16, #tpu.memory_space<vmem>>, vector<1x4x256xbf16>
    %102 = vector.shape_cast %101 : vector<1x4x256xbf16> to vector<4x256xbf16>
    %103 = tpu.concatenate %100, %102 in 1 : vector<4x256xbf16>, vector<4x256xbf16> -> vector<4x512xbf16>
    %104 = arith.select %69, %103, %70 : vector<4x512xi1>, vector<4x512xbf16>
    %c0_61 = arith.constant 0 : index
    %c0_62 = arith.constant 0 : index
    %c143 = arith.constant 143 : index
    %105 = vector.load %arg7[%c0_61, %c0_62, %c143] : memref<2x4x512xbf16, #tpu.memory_space<vmem>>, vector<1x4x256xbf16>
    %106 = vector.shape_cast %105 : vector<1x4x256xbf16> to vector<4x256xbf16>
    %c1_63 = arith.constant 1 : index
    %c0_64 = arith.constant 0 : index
    %c143_65 = arith.constant 143 : index
    %107 = vector.load %arg7[%c1_63, %c0_64, %c143_65] : memref<2x4x512xbf16, #tpu.memory_space<vmem>>, vector<1x4x256xbf16>
    %108 = vector.shape_cast %107 : vector<1x4x256xbf16> to vector<4x256xbf16>
    %109 = tpu.concatenate %106, %108 in 1 : vector<4x256xbf16>, vector<4x256xbf16> -> vector<4x512xbf16>
    %110 = arith.select %67, %109, %70 : vector<4x512xi1>, vector<4x512xbf16>
    %c0_66 = arith.constant 0 : index
    %c0_67 = arith.constant 0 : index
    %c144 = arith.constant 144 : index
    %111 = vector.load %arg7[%c0_66, %c0_67, %c144] : memref<2x4x512xbf16, #tpu.memory_space<vmem>>, vector<1x4x256xbf16>
    %112 = vector.shape_cast %111 : vector<1x4x256xbf16> to vector<4x256xbf16>
    %c1_68 = arith.constant 1 : index
    %c0_69 = arith.constant 0 : index
    %c144_70 = arith.constant 144 : index
    %113 = vector.load %arg7[%c1_68, %c0_69, %c144_70] : memref<2x4x512xbf16, #tpu.memory_space<vmem>>, vector<1x4x256xbf16>
    %114 = vector.shape_cast %113 : vector<1x4x256xbf16> to vector<4x256xbf16>
    %115 = tpu.concatenate %112, %114 in 1 : vector<4x256xbf16>, vector<4x256xbf16> -> vector<4x512xbf16>
    %c0_71 = arith.constant 0 : index
    %c0_72 = arith.constant 0 : index
    %c145 = arith.constant 145 : index
    %116 = vector.load %arg7[%c0_71, %c0_72, %c145] : memref<2x4x512xbf16, #tpu.memory_space<vmem>>, vector<1x4x256xbf16>
    %117 = vector.shape_cast %116 : vector<1x4x256xbf16> to vector<4x256xbf16>
    %c1_73 = arith.constant 1 : index
    %c0_74 = arith.constant 0 : index
    %c145_75 = arith.constant 145 : index
    %118 = vector.load %arg7[%c1_73, %c0_74, %c145_75] : memref<2x4x512xbf16, #tpu.memory_space<vmem>>, vector<1x4x256xbf16>
    %119 = vector.shape_cast %118 : vector<1x4x256xbf16> to vector<4x256xbf16>
    %120 = tpu.concatenate %117, %119 in 1 : vector<4x256xbf16>, vector<4x256xbf16> -> vector<4x512xbf16>
    %121 = arith.select %69, %120, %70 : vector<4x512xi1>, vector<4x512xbf16>
    %122 = tpu.concatenate %76, %81, %87, %93, %98, %104, %110, %115, %121 in 0 : vector<4x512xbf16>, vector<4x512xbf16>, vector<4x512xbf16>, vector<4x512xbf16>, vector<4x512xbf16>, vector<4x512xbf16>, vector<4x512xbf16>, vector<4x512xbf16>, vector<4x512xbf16> -> vector<36x512xbf16>
    %c0_76 = arith.constant 0 : index
    %c0_77 = arith.constant 0 : index
    %123 = vector.load %arg4[%c0_76, %c0_77] : memref<32x36xbf16, #tpu.memory_space<vmem>>, vector<32x36xbf16>
    %cst_78 = arith.constant dense<0.000000e+00> : vector<32x512xf32>
    %124 = tpu.matmul %123, %122, %cst_78 {dimension_numbers = #tpu.dot_dimension_numbers<[1], [0], [0], [1], [0, 0, 1, 1], [], []>} : vector<32x36xbf16>, vector<36x512xbf16>, vector<32x512xf32> -> vector<32x512xf32>
    %cst_79 = arith.constant dense<0.000000e+00> : vector<32xf32>
    %125 = vector.multi_reduction <add>, %124, %cst_79 [1] : vector<32x512xf32> to vector<32xf32>
    %126 = vector.shape_cast %125 : vector<32xf32> to vector<32x1xf32>
    %cst_80 = arith.constant dense<0.000000e+00> : vector<1xf32>
    %127 = vector.multi_reduction <add>, %126, %cst_80 [0] : vector<32x1xf32> to vector<1xf32>
    %128 = vector.shape_cast %127 : vector<1xf32> to vector<1x1xf32>
    %129 = arith.mulf %124, %124 : vector<32x512xf32>
    %cst_81 = arith.constant dense<0.000000e+00> : vector<32xf32>
    %130 = vector.multi_reduction <add>, %129, %cst_81 [1] : vector<32x512xf32> to vector<32xf32>
    %131 = vector.shape_cast %130 : vector<32xf32> to vector<32x1xf32>
    %cst_82 = arith.constant dense<0.000000e+00> : vector<1xf32>
    %132 = vector.multi_reduction <add>, %131, %cst_82 [0] : vector<32x1xf32> to vector<1xf32>
    %133 = vector.shape_cast %132 : vector<1xf32> to vector<1x1xf32>
    %134 = tpu.concatenate %128, %133 in 1 : vector<1x1xf32>, vector<1x1xf32> -> vector<1x2xf32>
    %c0_83 = arith.constant 0 : index
    %c0_84 = arith.constant 0 : index
    %c0_85 = arith.constant 0 : index
    %135 = vector.load %arg6[%c0_83, %c0_84, %c0_85] : memref<1x1x2xf32, #tpu.memory_space<vmem>>, vector<1x1x2xf32>
    %136 = vector.shape_cast %135 : vector<1x1x2xf32> to vector<1x2xf32>
    %137 = vector.shape_cast %134 : vector<1x2xf32> to vector<1x1x2xf32>
    tpu.vector_store %arg6[%c0_83, %c0_84, %c0_85], %137 {strides = array<i32>} : memref<1x1x2xf32, #tpu.memory_space<vmem>>, vector<1x1x2xf32>,
    %138 = arith.truncf %124 : vector<32x512xf32> to vector<32x512xbf16>
    %139 = vector.extract_strided_slice %138 {offsets = [0, 0], sizes = [8, 256], strides = [1, 1]} : vector<32x512xbf16> to vector<8x256xbf16>
    %c0_86 = arith.constant 0 : index
    %c0_87 = arith.constant 0 : index
    %c0_88 = arith.constant 0 : index
    %140 = vector.load %arg5[%c0_86, %c0_87, %c0_88] : memref<2x8x1024xbf16, #tpu.memory_space<vmem>>, vector<1x8x256xbf16>
    %141 = vector.shape_cast %140 : vector<1x8x256xbf16> to vector<8x256xbf16>
    %142 = vector.shape_cast %139 : vector<8x256xbf16> to vector<1x8x256xbf16>
    tpu.vector_store %arg5[%c0_86, %c0_87, %c0_88], %142 {strides = array<i32>} : memref<2x8x1024xbf16, #tpu.memory_space<vmem>>, vector<1x8x256xbf16>,
    %143 = vector.extract_strided_slice %138 {offsets = [0, 256], sizes = [8, 256], strides = [1, 1]} : vector<32x512xbf16> to vector<8x256xbf16>
    %c1_89 = arith.constant 1 : index
    %c0_90 = arith.constant 0 : index
    %c0_91 = arith.constant 0 : index
    %144 = vector.load %arg5[%c1_89, %c0_90, %c0_91] : memref<2x8x1024xbf16, #tpu.memory_space<vmem>>, vector<1x8x256xbf16>
    %145 = vector.shape_cast %144 : vector<1x8x256xbf16> to vector<8x256xbf16>
    %146 = vector.shape_cast %143 : vector<8x256xbf16> to vector<1x8x256xbf16>
    tpu.vector_store %arg5[%c1_89, %c0_90, %c0_91], %146 {strides = array<i32>} : memref<2x8x1024xbf16, #tpu.memory_space<vmem>>, vector<1x8x256xbf16>,
    %147 = vector.extract_strided_slice %138 {offsets = [8, 0], sizes = [8, 256], strides = [1, 1]} : vector<32x512xbf16> to vector<8x256xbf16>
    %c0_92 = arith.constant 0 : index
    %c0_93 = arith.constant 0 : index
    %c256 = arith.constant 256 : index
    %148 = vector.load %arg5[%c0_92, %c0_93, %c256] : memref<2x8x1024xbf16, #tpu.memory_space<vmem>>, vector<1x8x256xbf16>
    %149 = vector.shape_cast %148 : vector<1x8x256xbf16> to vector<8x256xbf16>
    %150 = vector.shape_cast %147 : vector<8x256xbf16> to vector<1x8x256xbf16>
    tpu.vector_store %arg5[%c0_92, %c0_93, %c256], %150 {strides = array<i32>} : memref<2x8x1024xbf16, #tpu.memory_space<vmem>>, vector<1x8x256xbf16>,
    %151 = vector.extract_strided_slice %138 {offsets = [8, 256], sizes = [8, 256], strides = [1, 1]} : vector<32x512xbf16> to vector<8x256xbf16>
    %c1_94 = arith.constant 1 : index
    %c0_95 = arith.constant 0 : index
    %c256_96 = arith.constant 256 : index
    %152 = vector.load %arg5[%c1_94, %c0_95, %c256_96] : memref<2x8x1024xbf16, #tpu.memory_space<vmem>>, vector<1x8x256xbf16>
    %153 = vector.shape_cast %152 : vector<1x8x256xbf16> to vector<8x256xbf16>
    %154 = vector.shape_cast %151 : vector<8x256xbf16> to vector<1x8x256xbf16>
    tpu.vector_store %arg5[%c1_94, %c0_95, %c256_96], %154 {strides = array<i32>} : memref<2x8x1024xbf16, #tpu.memory_space<vmem>>, vector<1x8x256xbf16>,
    %155 = vector.extract_strided_slice %138 {offsets = [16, 0], sizes = [8, 256], strides = [1, 1]} : vector<32x512xbf16> to vector<8x256xbf16>
    %c0_97 = arith.constant 0 : index
    %c0_98 = arith.constant 0 : index
    %c512 = arith.constant 512 : index
    %156 = vector.load %arg5[%c0_97, %c0_98, %c512] : memref<2x8x1024xbf16, #tpu.memory_space<vmem>>, vector<1x8x256xbf16>
    %157 = vector.shape_cast %156 : vector<1x8x256xbf16> to vector<8x256xbf16>
    %158 = vector.shape_cast %155 : vector<8x256xbf16> to vector<1x8x256xbf16>
    tpu.vector_store %arg5[%c0_97, %c0_98, %c512], %158 {strides = array<i32>} : memref<2x8x1024xbf16, #tpu.memory_space<vmem>>, vector<1x8x256xbf16>,
    %159 = vector.extract_strided_slice %138 {offsets = [16, 256], sizes = [8, 256], strides = [1, 1]} : vector<32x512xbf16> to vector<8x256xbf16>
    %c1_99 = arith.constant 1 : index
    %c0_100 = arith.constant 0 : index
    %c512_101 = arith.constant 512 : index
    %160 = vector.load %arg5[%c1_99, %c0_100, %c512_101] : memref<2x8x1024xbf16, #tpu.memory_space<vmem>>, vector<1x8x256xbf16>
    %161 = vector.shape_cast %160 : vector<1x8x256xbf16> to vector<8x256xbf16>
    %162 = vector.shape_cast %159 : vector<8x256xbf16> to vector<1x8x256xbf16>
    tpu.vector_store %arg5[%c1_99, %c0_100, %c512_101], %162 {strides = array<i32>} : memref<2x8x1024xbf16, #tpu.memory_space<vmem>>, vector<1x8x256xbf16>,
    %163 = vector.extract_strided_slice %138 {offsets = [24, 0], sizes = [8, 256], strides = [1, 1]} : vector<32x512xbf16> to vector<8x256xbf16>
    %c0_102 = arith.constant 0 : index
    %c0_103 = arith.constant 0 : index
    %c768 = arith.constant 768 : index
    %164 = vector.load %arg5[%c0_102, %c0_103, %c768] : memref<2x8x1024xbf16, #tpu.memory_space<vmem>>, vector<1x8x256xbf16>
    %165 = vector.shape_cast %164 : vector<1x8x256xbf16> to vector<8x256xbf16>
    %166 = vector.shape_cast %163 : vector<8x256xbf16> to vector<1x8x256xbf16>
    tpu.vector_store %arg5[%c0_102, %c0_103, %c768], %166 {strides = array<i32>} : memref<2x8x1024xbf16, #tpu.memory_space<vmem>>, vector<1x8x256xbf16>,
    %167 = vector.extract_strided_slice %138 {offsets = [24, 256], sizes = [8, 256], strides = [1, 1]} : vector<32x512xbf16> to vector<8x256xbf16>
    %c1_104 = arith.constant 1 : index
    %c0_105 = arith.constant 0 : index
    %c768_106 = arith.constant 768 : index
    %168 = vector.load %arg5[%c1_104, %c0_105, %c768_106] : memref<2x8x1024xbf16, #tpu.memory_space<vmem>>, vector<1x8x256xbf16>
    %169 = vector.shape_cast %168 : vector<1x8x256xbf16> to vector<8x256xbf16>
    %170 = vector.shape_cast %167 : vector<8x256xbf16> to vector<1x8x256xbf16>
    tpu.vector_store %arg5[%c1_104, %c0_105, %c768_106], %170 {strides = array<i32>} : memref<2x8x1024xbf16, #tpu.memory_space<vmem>>, vector<1x8x256xbf16>,
    return
  }
  func.func @transform_0(%arg0: i32) -> i32 {
    %c0_i32 = arith.constant 0 : i32
    %c0_i32_0 = arith.constant 0 : i32
    return %c0_i32 : i32
  }
  func.func @transform_1(%arg0: i32) -> i32 {
    %c0_i32 = arith.constant 0 : i32
    %c0_i32_0 = arith.constant 0 : i32
    return %c0_i32 : i32
  }
  func.func @transform_2(%arg0: i32) -> (i32, i32, i32) {
    %c0_i32 = arith.constant 0 : i32
    %c0_i32_0 = arith.constant 0 : i32
    %c0_i32_1 = arith.constant 0 : i32
    return %arg0, %c0_i32, %c0_i32_0 : i32, i32, i32
  }
  func.func @transform_3(%arg0: i32) -> (i32, i32) {
    %c0_i32 = arith.constant 0 : i32
    %c0_i32_0 = arith.constant 0 : i32
    %c0_i32_1 = arith.constant 0 : i32
    return %c0_i32, %c0_i32_0 : i32, i32
  }
  func.func @transform_4(%arg0: i32) -> (i32, i32, i32) {
    %c0_i32 = arith.constant 0 : i32
    %c0_i32_0 = arith.constant 0 : i32
    %c0_i32_1 = arith.constant 0 : i32
    return %arg0, %c0_i32, %c0_i32_0 : i32, i32, i32
  }
  func.func @transform_5(%arg0: i32) -> (i32, i32, i32) {
    %c0_i32 = arith.constant 0 : i32
    %c0_i32_0 = arith.constant 0 : i32
    %c0_i32_1 = arith.constant 0 : i32
    return %arg0, %c0_i32, %c0_i32_0 : i32, i32, i32
  }
}

module attributes {stable_mosaic.version = 11 : i64} {
  func.func @_prep_kernel(%arg0: i32, %arg1: memref<1x1x8xf32, #tpu.memory_space<vmem>>, %arg2: memref<8x64xf32, #tpu.memory_space<vmem>>, %arg3: memref<1x64xf32, #tpu.memory_space<vmem>>, %arg4: memref<64x4xf32, #tpu.memory_space<vmem>>, %arg5: memref<1x4xf32, #tpu.memory_space<vmem>>, %arg6: memref<1x4x256xf32, #tpu.memory_space<vmem>>, %arg7: memref<1x1x4xf32, #tpu.memory_space<vmem>>, %arg8: memref<1x1x2xf32, #tpu.memory_space<vmem>>) attributes {dimension_semantics = [#tpu.dimension_semantics<parallel>], iteration_bounds = array<i64: 2>, scalar_prefetch = 0 : i64, scratch_operands = 0 : i64, tpu.core_type = #tpu.core_type<tc>, window_params = [{transform_indices = @transform_0, window_bounds = array<i64: 1, 1, 8>}, {pipeline_mode = #tpu.pipeline_mode<synchronous>, transform_indices = @transform_1, window_bounds = array<i64: 8, 64>}, {pipeline_mode = #tpu.pipeline_mode<synchronous>, transform_indices = @transform_2, window_bounds = array<i64: 1, 64>}, {pipeline_mode = #tpu.pipeline_mode<synchronous>, transform_indices = @transform_3, window_bounds = array<i64: 64, 4>}, {pipeline_mode = #tpu.pipeline_mode<synchronous>, transform_indices = @transform_4, window_bounds = array<i64: 1, 4>}, {transform_indices = @transform_5, window_bounds = array<i64: 1, 4, 256>}, {transform_indices = @transform_6, window_bounds = array<i64: 1, 1, 4>}, {transform_indices = @transform_7, window_bounds = array<i64: 1, 1, 2>}]} {
    %c0 = arith.constant 0 : index
    %c0_0 = arith.constant 0 : index
    %c0_1 = arith.constant 0 : index
    %0 = vector.load %arg1[%c0, %c0_0, %c0_1] : memref<1x1x8xf32, #tpu.memory_space<vmem>>, vector<1x1x8xf32>
    %1 = vector.shape_cast %0 : vector<1x1x8xf32> to vector<1x8xf32>
    %c0_2 = arith.constant 0 : index
    %c0_3 = arith.constant 0 : index
    %2 = vector.load %arg2[%c0_2, %c0_3] : memref<8x64xf32, #tpu.memory_space<vmem>>, vector<8x64xf32>
    %cst = arith.constant dense<0.000000e+00> : vector<1x64xf32>
    %3 = tpu.matmul %1, %2, %cst {dimension_numbers = #tpu.dot_dimension_numbers<[1], [0], [0], [1], [0, 0, 1, 1], [], []>} : vector<1x8xf32>, vector<8x64xf32>, vector<1x64xf32> -> vector<1x64xf32>
    %c0_4 = arith.constant 0 : index
    %c0_5 = arith.constant 0 : index
    %4 = vector.load %arg3[%c0_4, %c0_5] : memref<1x64xf32, #tpu.memory_space<vmem>>, vector<1x64xf32>
    %5 = arith.addf %3, %4 : vector<1x64xf32>
    %cst_6 = arith.constant 0.000000e+00 : f32
    %6 = vector.broadcast %cst_6 : f32 to vector<1x64xf32>
    %7 = arith.maximumf %5, %6 : vector<1x64xf32>
    %c0_7 = arith.constant 0 : index
    %c0_8 = arith.constant 0 : index
    %8 = vector.load %arg4[%c0_7, %c0_8] : memref<64x4xf32, #tpu.memory_space<vmem>>, vector<64x4xf32>
    %cst_9 = arith.constant dense<0.000000e+00> : vector<1x4xf32>
    %9 = tpu.matmul %7, %8, %cst_9 {dimension_numbers = #tpu.dot_dimension_numbers<[1], [0], [0], [1], [0, 0, 1, 1], [], []>} : vector<1x64xf32>, vector<64x4xf32>, vector<1x4xf32> -> vector<1x4xf32>
    %c0_10 = arith.constant 0 : index
    %c0_11 = arith.constant 0 : index
    %10 = vector.load %arg5[%c0_10, %c0_11] : memref<1x4xf32, #tpu.memory_space<vmem>>, vector<1x4xf32>
    %11 = arith.addf %9, %10 : vector<1x4xf32>
    %c0_12 = arith.constant 0 : index
    %c0_13 = arith.constant 0 : index
    %c0_14 = arith.constant 0 : index
    %12 = vector.load %arg7[%c0_12, %c0_13, %c0_14] : memref<1x1x4xf32, #tpu.memory_space<vmem>>, vector<1x1x4xf32>
    %13 = vector.shape_cast %12 : vector<1x1x4xf32> to vector<1x4xf32>
    %14 = vector.shape_cast %11 : vector<1x4xf32> to vector<1x1x4xf32>
    tpu.vector_store %arg7[%c0_12, %c0_13, %c0_14], %14 {strides = array<i32>} : memref<1x1x4xf32, #tpu.memory_space<vmem>>, vector<1x1x4xf32>,
    %c0_15 = arith.constant 0 : index
    %c0_16 = arith.constant 0 : index
    %c0_17 = arith.constant 0 : index
    %15 = vector.load %arg6[%c0_15, %c0_16, %c0_17] : memref<1x4x256xf32, #tpu.memory_space<vmem>>, vector<1x4x256xf32>
    %16 = vector.shape_cast %15 : vector<1x4x256xf32> to vector<4x256xf32>
    %cst_18 = arith.constant dense<0.000000e+00> : vector<4xf32>
    %17 = vector.multi_reduction <add>, %16, %cst_18 [1] : vector<4x256xf32> to vector<4xf32>
    %18 = vector.shape_cast %17 : vector<4xf32> to vector<4x1xf32>
    %cst_19 = arith.constant dense<0.000000e+00> : vector<1xf32>
    %19 = vector.multi_reduction <add>, %18, %cst_19 [0] : vector<4x1xf32> to vector<1xf32>
    %20 = vector.shape_cast %19 : vector<1xf32> to vector<1x1xf32>
    %21 = arith.mulf %16, %16 : vector<4x256xf32>
    %cst_20 = arith.constant dense<0.000000e+00> : vector<4xf32>
    %22 = vector.multi_reduction <add>, %21, %cst_20 [1] : vector<4x256xf32> to vector<4xf32>
    %23 = vector.shape_cast %22 : vector<4xf32> to vector<4x1xf32>
    %cst_21 = arith.constant dense<0.000000e+00> : vector<1xf32>
    %24 = vector.multi_reduction <add>, %23, %cst_21 [0] : vector<4x1xf32> to vector<1xf32>
    %25 = vector.shape_cast %24 : vector<1xf32> to vector<1x1xf32>
    %26 = tpu.concatenate %20, %25 in 1 : vector<1x1xf32>, vector<1x1xf32> -> vector<1x2xf32>
    %c0_22 = arith.constant 0 : index
    %c0_23 = arith.constant 0 : index
    %c0_24 = arith.constant 0 : index
    %27 = vector.load %arg8[%c0_22, %c0_23, %c0_24] : memref<1x1x2xf32, #tpu.memory_space<vmem>>, vector<1x1x2xf32>
    %28 = vector.shape_cast %27 : vector<1x1x2xf32> to vector<1x2xf32>
    %29 = vector.shape_cast %26 : vector<1x2xf32> to vector<1x1x2xf32>
    tpu.vector_store %arg8[%c0_22, %c0_23, %c0_24], %29 {strides = array<i32>} : memref<1x1x2xf32, #tpu.memory_space<vmem>>, vector<1x1x2xf32>,
    return
  }
  func.func @transform_0(%arg0: i32) -> (i32, i32, i32) {
    %c0_i32 = arith.constant 0 : i32
    %c0_i32_0 = arith.constant 0 : i32
    %c0_i32_1 = arith.constant 0 : i32
    return %arg0, %c0_i32, %c0_i32_0 : i32, i32, i32
  }
  func.func @transform_1(%arg0: i32) -> (i32, i32) {
    %c0_i32 = arith.constant 0 : i32
    %c0_i32_0 = arith.constant 0 : i32
    %c0_i32_1 = arith.constant 0 : i32
    return %c0_i32, %c0_i32_0 : i32, i32
  }
  func.func @transform_2(%arg0: i32) -> (i32, i32) {
    %c0_i32 = arith.constant 0 : i32
    %c0_i32_0 = arith.constant 0 : i32
    %c0_i32_1 = arith.constant 0 : i32
    return %c0_i32, %c0_i32_0 : i32, i32
  }
  func.func @transform_3(%arg0: i32) -> (i32, i32) {
    %c0_i32 = arith.constant 0 : i32
    %c0_i32_0 = arith.constant 0 : i32
    %c0_i32_1 = arith.constant 0 : i32
    return %c0_i32, %c0_i32_0 : i32, i32
  }
  func.func @transform_4(%arg0: i32) -> (i32, i32) {
    %c0_i32 = arith.constant 0 : i32
    %c0_i32_0 = arith.constant 0 : i32
    %c0_i32_1 = arith.constant 0 : i32
    return %c0_i32, %c0_i32_0 : i32, i32
  }
  func.func @transform_5(%arg0: i32) -> (i32, i32, i32) {
    %c0_i32 = arith.constant 0 : i32
    %c0_i32_0 = arith.constant 0 : i32
    %c0_i32_1 = arith.constant 0 : i32
    return %arg0, %c0_i32, %c0_i32_0 : i32, i32, i32
  }
  func.func @transform_6(%arg0: i32) -> (i32, i32, i32) {
    %c0_i32 = arith.constant 0 : i32
    %c0_i32_0 = arith.constant 0 : i32
    %c0_i32_1 = arith.constant 0 : i32
    return %arg0, %c0_i32, %c0_i32_0 : i32, i32, i32
  }
  func.func @transform_7(%arg0: i32) -> (i32, i32, i32) {
    %c0_i32 = arith.constant 0 : i32
    %c0_i32_0 = arith.constant 0 : i32
    %c0_i32_1 = arith.constant 0 : i32
    return %arg0, %c0_i32, %c0_i32_0 : i32, i32, i32
  }
}

module attributes {stable_mosaic.version = 11 : i64} {
  func.func @_conv2_kernel(%arg0: i32, %arg1: memref<2xf32, #tpu.memory_space<smem>>, %arg2: memref<2xf32, #tpu.memory_space<smem>>, %arg3: memref<2x8x1024xbf16, #tpu.memory_space<vmem>>, %arg4: memref<2x4x256xbf16, #tpu.memory_space<vmem>>, %arg5: memref<8x72xbf16, #tpu.memory_space<vmem>>, %arg6: memref<8x4xbf16, #tpu.memory_space<vmem>>, %arg7: memref<8x1xf32, #tpu.memory_space<vmem>>, %arg8: memref<2x8x1024xbf16, #tpu.memory_space<vmem>>, %arg9: memref<8x8x512xbf16, #tpu.memory_space<vmem>>) attributes {dimension_semantics = [#tpu.dimension_semantics<parallel>], iteration_bounds = array<i64: 1>, scalar_prefetch = 0 : i64, scratch_operands = 1 : i64, tpu.core_type = #tpu.core_type<tc>, window_params = [{transform_indices = @transform_0, window_bounds = array<i64: 2>}, {transform_indices = @transform_1, window_bounds = array<i64: 2>}, {transform_indices = @transform_2, window_bounds = array<i64: 2, 8, 1024>}, {transform_indices = @transform_3, window_bounds = array<i64: 2, 4, 256>}, {pipeline_mode = #tpu.pipeline_mode<synchronous>, transform_indices = @transform_4, window_bounds = array<i64: 8, 72>}, {pipeline_mode = #tpu.pipeline_mode<synchronous>, transform_indices = @transform_5, window_bounds = array<i64: 8, 4>}, {pipeline_mode = #tpu.pipeline_mode<synchronous>, transform_indices = @transform_6, window_bounds = array<i64: 8, 1>}, {transform_indices = @transform_7, window_bounds = array<i64: 2, 8, 1024>}]} {
    %cst = arith.constant 0.000000e+00 : bf16
    %0 = vector.broadcast %cst : bf16 to vector<8x128xbf16>
    %c2_i32 = arith.constant 2 : i32
    %1 = arith.muli %arg0, %c2_i32 : i32
    %c0_i32 = arith.constant 0 : i32
    %2 = arith.addi %1, %c0_i32 : i32
    %3 = arith.index_cast %2 : i32 to index
    %4 = memref.load %arg1[%3] : memref<2xf32, #tpu.memory_space<smem>>
    %5 = arith.index_cast %2 : i32 to index
    %6 = memref.load %arg2[%5] : memref<2xf32, #tpu.memory_space<smem>>
    %c0 = arith.constant 0 : index
    %c0_0 = arith.constant 0 : index
    %c0_1 = arith.constant 0 : index
    %7 = vector.load %arg3[%c0, %c0_0, %c0_1] : memref<2x8x1024xbf16, #tpu.memory_space<vmem>>, vector<1x8x256xbf16>
    %8 = vector.shape_cast %7 : vector<1x8x256xbf16> to vector<8x256xbf16>
    %9 = arith.extf %8 : vector<8x256xbf16> to vector<8x256xf32>
    %c0_2 = arith.constant 0 : index
    %c0_3 = arith.constant 0 : index
    %c0_4 = arith.constant 0 : index
    %10 = vector.load %arg9[%c0_2, %c0_3, %c0_4] : memref<8x8x512xbf16, #tpu.memory_space<vmem>>, vector<1x8x128xbf16>
    %11 = vector.shape_cast %10 : vector<1x8x128xbf16> to vector<8x128xbf16>
    %12 = vector.shape_cast %0 : vector<8x128xbf16> to vector<1x8x128xbf16>
    tpu.vector_store %arg9[%c0_2, %c0_3, %c0_4], %12 {strides = array<i32>} : memref<8x8x512xbf16, #tpu.memory_space<vmem>>, vector<1x8x128xbf16>,
    %13 = vector.broadcast %4 : f32 to vector<8x256xf32>
    %14 = arith.mulf %9, %13 : vector<8x256xf32>
    %15 = vector.broadcast %6 : f32 to vector<8x256xf32>
    %16 = arith.addf %14, %15 : vector<8x256xf32>
    %cst_5 = arith.constant 0.000000e+00 : f32
    %17 = vector.broadcast %cst_5 : f32 to vector<8x256xf32>
    %18 = arith.maximumf %16, %17 : vector<8x256xf32>
    %19 = arith.truncf %18 : vector<8x256xf32> to vector<8x256xbf16>
    %c0_6 = arith.constant 0 : index
    %c0_7 = arith.constant 0 : index
    %c128 = arith.constant 128 : index
    %20 = vector.load %arg9[%c0_6, %c0_7, %c128] : memref<8x8x512xbf16, #tpu.memory_space<vmem>>, vector<1x8x256xbf16>
    %21 = vector.shape_cast %20 : vector<1x8x256xbf16> to vector<8x256xbf16>
    %22 = vector.shape_cast %19 : vector<8x256xbf16> to vector<1x8x256xbf16>
    tpu.vector_store %arg9[%c0_6, %c0_7, %c128], %22 {strides = array<i32>} : memref<8x8x512xbf16, #tpu.memory_space<vmem>>, vector<1x8x256xbf16>,
    %c0_8 = arith.constant 0 : index
    %c0_9 = arith.constant 0 : index
    %c384 = arith.constant 384 : index
    %23 = vector.load %arg9[%c0_8, %c0_9, %c384] : memref<8x8x512xbf16, #tpu.memory_space<vmem>>, vector<1x8x128xbf16>
    %24 = vector.shape_cast %23 : vector<1x8x128xbf16> to vector<8x128xbf16>
    %25 = vector.shape_cast %0 : vector<8x128xbf16> to vector<1x8x128xbf16>
    tpu.vector_store %arg9[%c0_8, %c0_9, %c384], %25 {strides = array<i32>} : memref<8x8x512xbf16, #tpu.memory_space<vmem>>, vector<1x8x128xbf16>,
    %c0_10 = arith.constant 0 : index
    %c0_11 = arith.constant 0 : index
    %c256 = arith.constant 256 : index
    %26 = vector.load %arg3[%c0_10, %c0_11, %c256] : memref<2x8x1024xbf16, #tpu.memory_space<vmem>>, vector<1x8x256xbf16>
    %27 = vector.shape_cast %26 : vector<1x8x256xbf16> to vector<8x256xbf16>
    %28 = arith.extf %27 : vector<8x256xbf16> to vector<8x256xf32>
    %c1 = arith.constant 1 : index
    %c0_12 = arith.constant 0 : index
    %c0_13 = arith.constant 0 : index
    %29 = vector.load %arg9[%c1, %c0_12, %c0_13] : memref<8x8x512xbf16, #tpu.memory_space<vmem>>, vector<1x8x128xbf16>
    %30 = vector.shape_cast %29 : vector<1x8x128xbf16> to vector<8x128xbf16>
    %31 = vector.shape_cast %0 : vector<8x128xbf16> to vector<1x8x128xbf16>
    tpu.vector_store %arg9[%c1, %c0_12, %c0_13], %31 {strides = array<i32>} : memref<8x8x512xbf16, #tpu.memory_space<vmem>>, vector<1x8x128xbf16>,
    %32 = vector.broadcast %4 : f32 to vector<8x256xf32>
    %33 = arith.mulf %28, %32 : vector<8x256xf32>
    %34 = vector.broadcast %6 : f32 to vector<8x256xf32>
    %35 = arith.addf %33, %34 : vector<8x256xf32>
    %cst_14 = arith.constant 0.000000e+00 : f32
    %36 = vector.broadcast %cst_14 : f32 to vector<8x256xf32>
    %37 = arith.maximumf %35, %36 : vector<8x256xf32>
    %38 = arith.truncf %37 : vector<8x256xf32> to vector<8x256xbf16>
    %c1_15 = arith.constant 1 : index
    %c0_16 = arith.constant 0 : index
    %c128_17 = arith.constant 128 : index
    %39 = vector.load %arg9[%c1_15, %c0_16, %c128_17] : memref<8x8x512xbf16, #tpu.memory_space<vmem>>, vector<1x8x256xbf16>
    %40 = vector.shape_cast %39 : vector<1x8x256xbf16> to vector<8x256xbf16>
    %41 = vector.shape_cast %38 : vector<8x256xbf16> to vector<1x8x256xbf16>
    tpu.vector_store %arg9[%c1_15, %c0_16, %c128_17], %41 {strides = array<i32>} : memref<8x8x512xbf16, #tpu.memory_space<vmem>>, vector<1x8x256xbf16>,
    %c1_18 = arith.constant 1 : index
    %c0_19 = arith.constant 0 : index
    %c384_20 = arith.constant 384 : index
    %42 = vector.load %arg9[%c1_18, %c0_19, %c384_20] : memref<8x8x512xbf16, #tpu.memory_space<vmem>>, vector<1x8x128xbf16>
    %43 = vector.shape_cast %42 : vector<1x8x128xbf16> to vector<8x128xbf16>
    %44 = vector.shape_cast %0 : vector<8x128xbf16> to vector<1x8x128xbf16>
    tpu.vector_store %arg9[%c1_18, %c0_19, %c384_20], %44 {strides = array<i32>} : memref<8x8x512xbf16, #tpu.memory_space<vmem>>, vector<1x8x128xbf16>,
    %c0_21 = arith.constant 0 : index
    %c0_22 = arith.constant 0 : index
    %c512 = arith.constant 512 : index
    %45 = vector.load %arg3[%c0_21, %c0_22, %c512] : memref<2x8x1024xbf16, #tpu.memory_space<vmem>>, vector<1x8x256xbf16>
    %46 = vector.shape_cast %45 : vector<1x8x256xbf16> to vector<8x256xbf16>
    %47 = arith.extf %46 : vector<8x256xbf16> to vector<8x256xf32>
    %c2 = arith.constant 2 : index
    %c0_23 = arith.constant 0 : index
    %c0_24 = arith.constant 0 : index
    %48 = vector.load %arg9[%c2, %c0_23, %c0_24] : memref<8x8x512xbf16, #tpu.memory_space<vmem>>, vector<1x8x128xbf16>
    %49 = vector.shape_cast %48 : vector<1x8x128xbf16> to vector<8x128xbf16>
    %50 = vector.shape_cast %0 : vector<8x128xbf16> to vector<1x8x128xbf16>
    tpu.vector_store %arg9[%c2, %c0_23, %c0_24], %50 {strides = array<i32>} : memref<8x8x512xbf16, #tpu.memory_space<vmem>>, vector<1x8x128xbf16>,
    %51 = vector.broadcast %4 : f32 to vector<8x256xf32>
    %52 = arith.mulf %47, %51 : vector<8x256xf32>
    %53 = vector.broadcast %6 : f32 to vector<8x256xf32>
    %54 = arith.addf %52, %53 : vector<8x256xf32>
    %cst_25 = arith.constant 0.000000e+00 : f32
    %55 = vector.broadcast %cst_25 : f32 to vector<8x256xf32>
    %56 = arith.maximumf %54, %55 : vector<8x256xf32>
    %57 = arith.truncf %56 : vector<8x256xf32> to vector<8x256xbf16>
    %c2_26 = arith.constant 2 : index
    %c0_27 = arith.constant 0 : index
    %c128_28 = arith.constant 128 : index
    %58 = vector.load %arg9[%c2_26, %c0_27, %c128_28] : memref<8x8x512xbf16, #tpu.memory_space<vmem>>, vector<1x8x256xbf16>
    %59 = vector.shape_cast %58 : vector<1x8x256xbf16> to vector<8x256xbf16>
    %60 = vector.shape_cast %57 : vector<8x256xbf16> to vector<1x8x256xbf16>
    tpu.vector_store %arg9[%c2_26, %c0_27, %c128_28], %60 {strides = array<i32>} : memref<8x8x512xbf16, #tpu.memory_space<vmem>>, vector<1x8x256xbf16>,
    %c2_29 = arith.constant 2 : index
    %c0_30 = arith.constant 0 : index
    %c384_31 = arith.constant 384 : index
    %61 = vector.load %arg9[%c2_29, %c0_30, %c384_31] : memref<8x8x512xbf16, #tpu.memory_space<vmem>>, vector<1x8x128xbf16>
    %62 = vector.shape_cast %61 : vector<1x8x128xbf16> to vector<8x128xbf16>
    %63 = vector.shape_cast %0 : vector<8x128xbf16> to vector<1x8x128xbf16>
    tpu.vector_store %arg9[%c2_29, %c0_30, %c384_31], %63 {strides = array<i32>} : memref<8x8x512xbf16, #tpu.memory_space<vmem>>, vector<1x8x128xbf16>,
    %c0_32 = arith.constant 0 : index
    %c0_33 = arith.constant 0 : index
    %c768 = arith.constant 768 : index
    %64 = vector.load %arg3[%c0_32, %c0_33, %c768] : memref<2x8x1024xbf16, #tpu.memory_space<vmem>>, vector<1x8x256xbf16>
    %65 = vector.shape_cast %64 : vector<1x8x256xbf16> to vector<8x256xbf16>
    %66 = arith.extf %65 : vector<8x256xbf16> to vector<8x256xf32>
    %c3 = arith.constant 3 : index
    %c0_34 = arith.constant 0 : index
    %c0_35 = arith.constant 0 : index
    %67 = vector.load %arg9[%c3, %c0_34, %c0_35] : memref<8x8x512xbf16, #tpu.memory_space<vmem>>, vector<1x8x128xbf16>
    %68 = vector.shape_cast %67 : vector<1x8x128xbf16> to vector<8x128xbf16>
    %69 = vector.shape_cast %0 : vector<8x128xbf16> to vector<1x8x128xbf16>
    tpu.vector_store %arg9[%c3, %c0_34, %c0_35], %69 {strides = array<i32>} : memref<8x8x512xbf16, #tpu.memory_space<vmem>>, vector<1x8x128xbf16>,
    %70 = vector.broadcast %4 : f32 to vector<8x256xf32>
    %71 = arith.mulf %66, %70 : vector<8x256xf32>
    %72 = vector.broadcast %6 : f32 to vector<8x256xf32>
    %73 = arith.addf %71, %72 : vector<8x256xf32>
    %cst_36 = arith.constant 0.000000e+00 : f32
    %74 = vector.broadcast %cst_36 : f32 to vector<8x256xf32>
    %75 = arith.maximumf %73, %74 : vector<8x256xf32>
    %76 = arith.truncf %75 : vector<8x256xf32> to vector<8x256xbf16>
    %c3_37 = arith.constant 3 : index
    %c0_38 = arith.constant 0 : index
    %c128_39 = arith.constant 128 : index
    %77 = vector.load %arg9[%c3_37, %c0_38, %c128_39] : memref<8x8x512xbf16, #tpu.memory_space<vmem>>, vector<1x8x256xbf16>
    %78 = vector.shape_cast %77 : vector<1x8x256xbf16> to vector<8x256xbf16>
    %79 = vector.shape_cast %76 : vector<8x256xbf16> to vector<1x8x256xbf16>
    tpu.vector_store %arg9[%c3_37, %c0_38, %c128_39], %79 {strides = array<i32>} : memref<8x8x512xbf16, #tpu.memory_space<vmem>>, vector<1x8x256xbf16>,
    %c3_40 = arith.constant 3 : index
    %c0_41 = arith.constant 0 : index
    %c384_42 = arith.constant 384 : index
    %80 = vector.load %arg9[%c3_40, %c0_41, %c384_42] : memref<8x8x512xbf16, #tpu.memory_space<vmem>>, vector<1x8x128xbf16>
    %81 = vector.shape_cast %80 : vector<1x8x128xbf16> to vector<8x128xbf16>
    %82 = vector.shape_cast %0 : vector<8x128xbf16> to vector<1x8x128xbf16>
    tpu.vector_store %arg9[%c3_40, %c0_41, %c384_42], %82 {strides = array<i32>} : memref<8x8x512xbf16, #tpu.memory_space<vmem>>, vector<1x8x128xbf16>,
    %c2_i32_43 = arith.constant 2 : i32
    %83 = arith.muli %arg0, %c2_i32_43 : i32
    %c1_i32 = arith.constant 1 : i32
    %84 = arith.addi %83, %c1_i32 : i32
    %85 = arith.index_cast %84 : i32 to index
    %86 = memref.load %arg1[%85] : memref<2xf32, #tpu.memory_space<smem>>
    %87 = arith.index_cast %84 : i32 to index
    %88 = memref.load %arg2[%87] : memref<2xf32, #tpu.memory_space<smem>>
    %c1_44 = arith.constant 1 : index
    %c0_45 = arith.constant 0 : index
    %c0_46 = arith.constant 0 : index
    %89 = vector.load %arg3[%c1_44, %c0_45, %c0_46] : memref<2x8x1024xbf16, #tpu.memory_space<vmem>>, vector<1x8x256xbf16>
    %90 = vector.shape_cast %89 : vector<1x8x256xbf16> to vector<8x256xbf16>
    %91 = arith.extf %90 : vector<8x256xbf16> to vector<8x256xf32>
    %c4 = arith.constant 4 : index
    %c0_47 = arith.constant 0 : index
    %c0_48 = arith.constant 0 : index
    %92 = vector.load %arg9[%c4, %c0_47, %c0_48] : memref<8x8x512xbf16, #tpu.memory_space<vmem>>, vector<1x8x128xbf16>
    %93 = vector.shape_cast %92 : vector<1x8x128xbf16> to vector<8x128xbf16>
    %94 = vector.shape_cast %0 : vector<8x128xbf16> to vector<1x8x128xbf16>
    tpu.vector_store %arg9[%c4, %c0_47, %c0_48], %94 {strides = array<i32>} : memref<8x8x512xbf16, #tpu.memory_space<vmem>>, vector<1x8x128xbf16>,
    %95 = vector.broadcast %86 : f32 to vector<8x256xf32>
    %96 = arith.mulf %91, %95 : vector<8x256xf32>
    %97 = vector.broadcast %88 : f32 to vector<8x256xf32>
    %98 = arith.addf %96, %97 : vector<8x256xf32>
    %cst_49 = arith.constant 0.000000e+00 : f32
    %99 = vector.broadcast %cst_49 : f32 to vector<8x256xf32>
    %100 = arith.maximumf %98, %99 : vector<8x256xf32>
    %101 = arith.truncf %100 : vector<8x256xf32> to vector<8x256xbf16>
    %c4_50 = arith.constant 4 : index
    %c0_51 = arith.constant 0 : index
    %c128_52 = arith.constant 128 : index
    %102 = vector.load %arg9[%c4_50, %c0_51, %c128_52] : memref<8x8x512xbf16, #tpu.memory_space<vmem>>, vector<1x8x256xbf16>
    %103 = vector.shape_cast %102 : vector<1x8x256xbf16> to vector<8x256xbf16>
    %104 = vector.shape_cast %101 : vector<8x256xbf16> to vector<1x8x256xbf16>
    tpu.vector_store %arg9[%c4_50, %c0_51, %c128_52], %104 {strides = array<i32>} : memref<8x8x512xbf16, #tpu.memory_space<vmem>>, vector<1x8x256xbf16>,
    %c4_53 = arith.constant 4 : index
    %c0_54 = arith.constant 0 : index
    %c384_55 = arith.constant 384 : index
    %105 = vector.load %arg9[%c4_53, %c0_54, %c384_55] : memref<8x8x512xbf16, #tpu.memory_space<vmem>>, vector<1x8x128xbf16>
    %106 = vector.shape_cast %105 : vector<1x8x128xbf16> to vector<8x128xbf16>
    %107 = vector.shape_cast %0 : vector<8x128xbf16> to vector<1x8x128xbf16>
    tpu.vector_store %arg9[%c4_53, %c0_54, %c384_55], %107 {strides = array<i32>} : memref<8x8x512xbf16, #tpu.memory_space<vmem>>, vector<1x8x128xbf16>,
    %c1_56 = arith.constant 1 : index
    %c0_57 = arith.constant 0 : index
    %c256_58 = arith.constant 256 : index
    %108 = vector.load %arg3[%c1_56, %c0_57, %c256_58] : memref<2x8x1024xbf16, #tpu.memory_space<vmem>>, vector<1x8x256xbf16>
    %109 = vector.shape_cast %108 : vector<1x8x256xbf16> to vector<8x256xbf16>
    %110 = arith.extf %109 : vector<8x256xbf16> to vector<8x256xf32>
    %c5 = arith.constant 5 : index
    %c0_59 = arith.constant 0 : index
    %c0_60 = arith.constant 0 : index
    %111 = vector.load %arg9[%c5, %c0_59, %c0_60] : memref<8x8x512xbf16, #tpu.memory_space<vmem>>, vector<1x8x128xbf16>
    %112 = vector.shape_cast %111 : vector<1x8x128xbf16> to vector<8x128xbf16>
    %113 = vector.shape_cast %0 : vector<8x128xbf16> to vector<1x8x128xbf16>
    tpu.vector_store %arg9[%c5, %c0_59, %c0_60], %113 {strides = array<i32>} : memref<8x8x512xbf16, #tpu.memory_space<vmem>>, vector<1x8x128xbf16>,
    %114 = vector.broadcast %86 : f32 to vector<8x256xf32>
    %115 = arith.mulf %110, %114 : vector<8x256xf32>
    %116 = vector.broadcast %88 : f32 to vector<8x256xf32>
    %117 = arith.addf %115, %116 : vector<8x256xf32>
    %cst_61 = arith.constant 0.000000e+00 : f32
    %118 = vector.broadcast %cst_61 : f32 to vector<8x256xf32>
    %119 = arith.maximumf %117, %118 : vector<8x256xf32>
    %120 = arith.truncf %119 : vector<8x256xf32> to vector<8x256xbf16>
    %c5_62 = arith.constant 5 : index
    %c0_63 = arith.constant 0 : index
    %c128_64 = arith.constant 128 : index
    %121 = vector.load %arg9[%c5_62, %c0_63, %c128_64] : memref<8x8x512xbf16, #tpu.memory_space<vmem>>, vector<1x8x256xbf16>
    %122 = vector.shape_cast %121 : vector<1x8x256xbf16> to vector<8x256xbf16>
    %123 = vector.shape_cast %120 : vector<8x256xbf16> to vector<1x8x256xbf16>
    tpu.vector_store %arg9[%c5_62, %c0_63, %c128_64], %123 {strides = array<i32>} : memref<8x8x512xbf16, #tpu.memory_space<vmem>>, vector<1x8x256xbf16>,
    %c5_65 = arith.constant 5 : index
    %c0_66 = arith.constant 0 : index
    %c384_67 = arith.constant 384 : index
    %124 = vector.load %arg9[%c5_65, %c0_66, %c384_67] : memref<8x8x512xbf16, #tpu.memory_space<vmem>>, vector<1x8x128xbf16>
    %125 = vector.shape_cast %124 : vector<1x8x128xbf16> to vector<8x128xbf16>
    %126 = vector.shape_cast %0 : vector<8x128xbf16> to vector<1x8x128xbf16>
    tpu.vector_store %arg9[%c5_65, %c0_66, %c384_67], %126 {strides = array<i32>} : memref<8x8x512xbf16, #tpu.memory_space<vmem>>, vector<1x8x128xbf16>,
    %c1_68 = arith.constant 1 : index
    %c0_69 = arith.constant 0 : index
    %c512_70 = arith.constant 512 : index
    %127 = vector.load %arg3[%c1_68, %c0_69, %c512_70] : memref<2x8x1024xbf16, #tpu.memory_space<vmem>>, vector<1x8x256xbf16>
    %128 = vector.shape_cast %127 : vector<1x8x256xbf16> to vector<8x256xbf16>
    %129 = arith.extf %128 : vector<8x256xbf16> to vector<8x256xf32>
    %c6 = arith.constant 6 : index
    %c0_71 = arith.constant 0 : index
    %c0_72 = arith.constant 0 : index
    %130 = vector.load %arg9[%c6, %c0_71, %c0_72] : memref<8x8x512xbf16, #tpu.memory_space<vmem>>, vector<1x8x128xbf16>
    %131 = vector.shape_cast %130 : vector<1x8x128xbf16> to vector<8x128xbf16>
    %132 = vector.shape_cast %0 : vector<8x128xbf16> to vector<1x8x128xbf16>
    tpu.vector_store %arg9[%c6, %c0_71, %c0_72], %132 {strides = array<i32>} : memref<8x8x512xbf16, #tpu.memory_space<vmem>>, vector<1x8x128xbf16>,
    %133 = vector.broadcast %86 : f32 to vector<8x256xf32>
    %134 = arith.mulf %129, %133 : vector<8x256xf32>
    %135 = vector.broadcast %88 : f32 to vector<8x256xf32>
    %136 = arith.addf %134, %135 : vector<8x256xf32>
    %cst_73 = arith.constant 0.000000e+00 : f32
    %137 = vector.broadcast %cst_73 : f32 to vector<8x256xf32>
    %138 = arith.maximumf %136, %137 : vector<8x256xf32>
    %139 = arith.truncf %138 : vector<8x256xf32> to vector<8x256xbf16>
    %c6_74 = arith.constant 6 : index
    %c0_75 = arith.constant 0 : index
    %c128_76 = arith.constant 128 : index
    %140 = vector.load %arg9[%c6_74, %c0_75, %c128_76] : memref<8x8x512xbf16, #tpu.memory_space<vmem>>, vector<1x8x256xbf16>
    %141 = vector.shape_cast %140 : vector<1x8x256xbf16> to vector<8x256xbf16>
    %142 = vector.shape_cast %139 : vector<8x256xbf16> to vector<1x8x256xbf16>
    tpu.vector_store %arg9[%c6_74, %c0_75, %c128_76], %142 {strides = array<i32>} : memref<8x8x512xbf16, #tpu.memory_space<vmem>>, vector<1x8x256xbf16>,
    %c6_77 = arith.constant 6 : index
    %c0_78 = arith.constant 0 : index
    %c384_79 = arith.constant 384 : index
    %143 = vector.load %arg9[%c6_77, %c0_78, %c384_79] : memref<8x8x512xbf16, #tpu.memory_space<vmem>>, vector<1x8x128xbf16>
    %144 = vector.shape_cast %143 : vector<1x8x128xbf16> to vector<8x128xbf16>
    %145 = vector.shape_cast %0 : vector<8x128xbf16> to vector<1x8x128xbf16>
    tpu.vector_store %arg9[%c6_77, %c0_78, %c384_79], %145 {strides = array<i32>} : memref<8x8x512xbf16, #tpu.memory_space<vmem>>, vector<1x8x128xbf16>,
    %c1_80 = arith.constant 1 : index
    %c0_81 = arith.constant 0 : index
    %c768_82 = arith.constant 768 : index
    %146 = vector.load %arg3[%c1_80, %c0_81, %c768_82] : memref<2x8x1024xbf16, #tpu.memory_space<vmem>>, vector<1x8x256xbf16>
    %147 = vector.shape_cast %146 : vector<1x8x256xbf16> to vector<8x256xbf16>
    %148 = arith.extf %147 : vector<8x256xbf16> to vector<8x256xf32>
    %c7 = arith.constant 7 : index
    %c0_83 = arith.constant 0 : index
    %c0_84 = arith.constant 0 : index
    %149 = vector.load %arg9[%c7, %c0_83, %c0_84] : memref<8x8x512xbf16, #tpu.memory_space<vmem>>, vector<1x8x128xbf16>
    %150 = vector.shape_cast %149 : vector<1x8x128xbf16> to vector<8x128xbf16>
    %151 = vector.shape_cast %0 : vector<8x128xbf16> to vector<1x8x128xbf16>
    tpu.vector_store %arg9[%c7, %c0_83, %c0_84], %151 {strides = array<i32>} : memref<8x8x512xbf16, #tpu.memory_space<vmem>>, vector<1x8x128xbf16>,
    %152 = vector.broadcast %86 : f32 to vector<8x256xf32>
    %153 = arith.mulf %148, %152 : vector<8x256xf32>
    %154 = vector.broadcast %88 : f32 to vector<8x256xf32>
    %155 = arith.addf %153, %154 : vector<8x256xf32>
    %cst_85 = arith.constant 0.000000e+00 : f32
    %156 = vector.broadcast %cst_85 : f32 to vector<8x256xf32>
    %157 = arith.maximumf %155, %156 : vector<8x256xf32>
    %158 = arith.truncf %157 : vector<8x256xf32> to vector<8x256xbf16>
    %c7_86 = arith.constant 7 : index
    %c0_87 = arith.constant 0 : index
    %c128_88 = arith.constant 128 : index
    %159 = vector.load %arg9[%c7_86, %c0_87, %c128_88] : memref<8x8x512xbf16, #tpu.memory_space<vmem>>, vector<1x8x256xbf16>
    %160 = vector.shape_cast %159 : vector<1x8x256xbf16> to vector<8x256xbf16>
    %161 = vector.shape_cast %158 : vector<8x256xbf16> to vector<1x8x256xbf16>
    tpu.vector_store %arg9[%c7_86, %c0_87, %c128_88], %161 {strides = array<i32>} : memref<8x8x512xbf16, #tpu.memory_space<vmem>>, vector<1x8x256xbf16>,
    %c7_89 = arith.constant 7 : index
    %c0_90 = arith.constant 0 : index
    %c384_91 = arith.constant 384 : index
    %162 = vector.load %arg9[%c7_89, %c0_90, %c384_91] : memref<8x8x512xbf16, #tpu.memory_space<vmem>>, vector<1x8x128xbf16>
    %163 = vector.shape_cast %162 : vector<1x8x128xbf16> to vector<8x128xbf16>
    %164 = vector.shape_cast %0 : vector<8x128xbf16> to vector<1x8x128xbf16>
    tpu.vector_store %arg9[%c7_89, %c0_90, %c384_91], %164 {strides = array<i32>} : memref<8x8x512xbf16, #tpu.memory_space<vmem>>, vector<1x8x128xbf16>,
    %165 = tpu.iota {dimensions = array<i32: 1>} : vector<8x512xi32>
    %c16_i32 = arith.constant 16 : i32
    %c0_i32_92 = arith.constant 0 : i32
    %166 = arith.cmpi eq, %c16_i32, %c0_i32_92 : i32
    %c1_i32_93 = arith.constant 1 : i32
    %167 = arith.select %166, %c1_i32_93, %c16_i32 : i32
    %168 = vector.broadcast %167 : i32 to vector<8x512xi32>
    %169 = arith.remsi %165, %168 : vector<8x512xi32>
    %c0_i32_94 = arith.constant 0 : i32
    %170 = vector.broadcast %c0_i32_94 : i32 to vector<8x512xi32>
    %171 = arith.cmpi ne, %169, %170 : vector<8x512xi32>
    %c0_i32_95 = arith.constant 0 : i32
    %172 = vector.broadcast %c0_i32_95 : i32 to vector<8x512xi32>
    %173 = arith.cmpi slt, %169, %172 : vector<8x512xi32>
    %c0_i32_96 = arith.constant 0 : i32
    %174 = arith.cmpi slt, %167, %c0_i32_96 : i32
    %175 = vector.broadcast %174 : i1 to vector<8x512xi1>
    %176 = vector.broadcast %175 : vector<8x512xi1> to vector<8x512xi1>
    %177 = arith.xori %173, %176 : vector<8x512xi1>
    %178 = arith.andi %177, %171 : vector<8x512xi1>
    %179 = vector.broadcast %167 : i32 to vector<8x512xi32>
    %180 = arith.addi %169, %179 : vector<8x512xi32>
    %181 = arith.select %178, %180, %169 : vector<8x512xi1>, vector<8x512xi32>
    %c0_i32_97 = arith.constant 0 : i32
    %182 = vector.broadcast %c0_i32_97 : i32 to vector<8x512xi32>
    %183 = arith.cmpi ne, %181, %182 : vector<8x512xi32>
    %c15_i32 = arith.constant 15 : i32
    %184 = vector.broadcast %c15_i32 : i32 to vector<8x512xi32>
    %185 = arith.cmpi ne, %181, %184 : vector<8x512xi32>
    %cst_98 = arith.constant 0.000000e+00 : bf16
    %186 = vector.broadcast %cst_98 : bf16 to vector<8x512xbf16>
    %c3_99 = arith.constant 3 : index
    %c0_100 = arith.constant 0 : index
    %c111 = arith.constant 111 : index
    %187 = vector.load %arg9[%c3_99, %c0_100, %c111] : memref<8x8x512xbf16, #tpu.memory_space<vmem>>, vector<1x8x256xbf16>
    %188 = vector.shape_cast %187 : vector<1x8x256xbf16> to vector<8x256xbf16>
    %c7_101 = arith.constant 7 : index
    %c0_102 = arith.constant 0 : index
    %c111_103 = arith.constant 111 : index
    %189 = vector.load %arg9[%c7_101, %c0_102, %c111_103] : memref<8x8x512xbf16, #tpu.memory_space<vmem>>, vector<1x8x256xbf16>
    %190 = vector.shape_cast %189 : vector<1x8x256xbf16> to vector<8x256xbf16>
    %191 = tpu.concatenate %188, %190 in 1 : vector<8x256xbf16>, vector<8x256xbf16> -> vector<8x512xbf16>
    %192 = arith.select %183, %191, %186 : vector<8x512xi1>, vector<8x512xbf16>
    %c2_104 = arith.constant 2 : index
    %c0_105 = arith.constant 0 : index
    %c112 = arith.constant 112 : index
    %193 = vector.load %arg9[%c2_104, %c0_105, %c112] : memref<8x8x512xbf16, #tpu.memory_space<vmem>>, vector<1x8x256xbf16>
    %194 = vector.shape_cast %193 : vector<1x8x256xbf16> to vector<8x256xbf16>
    %c6_106 = arith.constant 6 : index
    %c0_107 = arith.constant 0 : index
    %c112_108 = arith.constant 112 : index
    %195 = vector.load %arg9[%c6_106, %c0_107, %c112_108] : memref<8x8x512xbf16, #tpu.memory_space<vmem>>, vector<1x8x256xbf16>
    %196 = vector.shape_cast %195 : vector<1x8x256xbf16> to vector<8x256xbf16>
    %197 = tpu.concatenate %194, %196 in 1 : vector<8x256xbf16>, vector<8x256xbf16> -> vector<8x512xbf16>
    %c3_109 = arith.constant 3 : index
    %c0_110 = arith.constant 0 : index
    %c112_111 = arith.constant 112 : index
    %198 = vector.load %arg9[%c3_109, %c0_110, %c112_111] : memref<8x8x512xbf16, #tpu.memory_space<vmem>>, vector<1x8x256xbf16>
    %199 = vector.shape_cast %198 : vector<1x8x256xbf16> to vector<8x256xbf16>
    %c7_112 = arith.constant 7 : index
    %c0_113 = arith.constant 0 : index
    %c112_114 = arith.constant 112 : index
    %200 = vector.load %arg9[%c7_112, %c0_113, %c112_114] : memref<8x8x512xbf16, #tpu.memory_space<vmem>>, vector<1x8x256xbf16>
    %201 = vector.shape_cast %200 : vector<1x8x256xbf16> to vector<8x256xbf16>
    %202 = tpu.concatenate %199, %201 in 1 : vector<8x256xbf16>, vector<8x256xbf16> -> vector<8x512xbf16>
    %c2_115 = arith.constant 2 : index
    %c0_116 = arith.constant 0 : index
    %c113 = arith.constant 113 : index
    %203 = vector.load %arg9[%c2_115, %c0_116, %c113] : memref<8x8x512xbf16, #tpu.memory_space<vmem>>, vector<1x8x256xbf16>
    %204 = vector.shape_cast %203 : vector<1x8x256xbf16> to vector<8x256xbf16>
    %c6_117 = arith.constant 6 : index
    %c0_118 = arith.constant 0 : index
    %c113_119 = arith.constant 113 : index
    %205 = vector.load %arg9[%c6_117, %c0_118, %c113_119] : memref<8x8x512xbf16, #tpu.memory_space<vmem>>, vector<1x8x256xbf16>
    %206 = vector.shape_cast %205 : vector<1x8x256xbf16> to vector<8x256xbf16>
    %207 = tpu.concatenate %204, %206 in 1 : vector<8x256xbf16>, vector<8x256xbf16> -> vector<8x512xbf16>
    %208 = arith.select %185, %207, %186 : vector<8x512xi1>, vector<8x512xbf16>
    %c1_120 = arith.constant 1 : index
    %c0_121 = arith.constant 0 : index
    %c127 = arith.constant 127 : index
    %209 = vector.load %arg9[%c1_120, %c0_121, %c127] : memref<8x8x512xbf16, #tpu.memory_space<vmem>>, vector<1x8x256xbf16>
    %210 = vector.shape_cast %209 : vector<1x8x256xbf16> to vector<8x256xbf16>
    %c5_122 = arith.constant 5 : index
    %c0_123 = arith.constant 0 : index
    %c127_124 = arith.constant 127 : index
    %211 = vector.load %arg9[%c5_122, %c0_123, %c127_124] : memref<8x8x512xbf16, #tpu.memory_space<vmem>>, vector<1x8x256xbf16>
    %212 = vector.shape_cast %211 : vector<1x8x256xbf16> to vector<8x256xbf16>
    %213 = tpu.concatenate %210, %212 in 1 : vector<8x256xbf16>, vector<8x256xbf16> -> vector<8x512xbf16>
    %214 = arith.select %183, %213, %186 : vector<8x512xi1>, vector<8x512xbf16>
    %c0_125 = arith.constant 0 : index
    %c0_126 = arith.constant 0 : index
    %c128_127 = arith.constant 128 : index
    %215 = vector.load %arg9[%c0_125, %c0_126, %c128_127] : memref<8x8x512xbf16, #tpu.memory_space<vmem>>, vector<1x8x256xbf16>
    %216 = vector.shape_cast %215 : vector<1x8x256xbf16> to vector<8x256xbf16>
    %c4_128 = arith.constant 4 : index
    %c0_129 = arith.constant 0 : index
    %c128_130 = arith.constant 128 : index
    %217 = vector.load %arg9[%c4_128, %c0_129, %c128_130] : memref<8x8x512xbf16, #tpu.memory_space<vmem>>, vector<1x8x256xbf16>
    %218 = vector.shape_cast %217 : vector<1x8x256xbf16> to vector<8x256xbf16>
    %219 = tpu.concatenate %216, %218 in 1 : vector<8x256xbf16>, vector<8x256xbf16> -> vector<8x512xbf16>
    %c1_131 = arith.constant 1 : index
    %c0_132 = arith.constant 0 : index
    %c128_133 = arith.constant 128 : index
    %220 = vector.load %arg9[%c1_131, %c0_132, %c128_133] : memref<8x8x512xbf16, #tpu.memory_space<vmem>>, vector<1x8x256xbf16>
    %221 = vector.shape_cast %220 : vector<1x8x256xbf16> to vector<8x256xbf16>
    %c5_134 = arith.constant 5 : index
    %c0_135 = arith.constant 0 : index
    %c128_136 = arith.constant 128 : index
    %222 = vector.load %arg9[%c5_134, %c0_135, %c128_136] : memref<8x8x512xbf16, #tpu.memory_space<vmem>>, vector<1x8x256xbf16>
    %223 = vector.shape_cast %222 : vector<1x8x256xbf16> to vector<8x256xbf16>
    %224 = tpu.concatenate %221, %223 in 1 : vector<8x256xbf16>, vector<8x256xbf16> -> vector<8x512xbf16>
    %c0_137 = arith.constant 0 : index
    %c0_138 = arith.constant 0 : index
    %c129 = arith.constant 129 : index
    %225 = vector.load %arg9[%c0_137, %c0_138, %c129] : memref<8x8x512xbf16, #tpu.memory_space<vmem>>, vector<1x8x256xbf16>
    %226 = vector.shape_cast %225 : vector<1x8x256xbf16> to vector<8x256xbf16>
    %c4_139 = arith.constant 4 : index
    %c0_140 = arith.constant 0 : index
    %c129_141 = arith.constant 129 : index
    %227 = vector.load %arg9[%c4_139, %c0_140, %c129_141] : memref<8x8x512xbf16, #tpu.memory_space<vmem>>, vector<1x8x256xbf16>
    %228 = vector.shape_cast %227 : vector<1x8x256xbf16> to vector<8x256xbf16>
    %229 = tpu.concatenate %226, %228 in 1 : vector<8x256xbf16>, vector<8x256xbf16> -> vector<8x512xbf16>
    %230 = arith.select %185, %229, %186 : vector<8x512xi1>, vector<8x512xbf16>
    %c3_142 = arith.constant 3 : index
    %c0_143 = arith.constant 0 : index
    %c127_144 = arith.constant 127 : index
    %231 = vector.load %arg9[%c3_142, %c0_143, %c127_144] : memref<8x8x512xbf16, #tpu.memory_space<vmem>>, vector<1x8x256xbf16>
    %232 = vector.shape_cast %231 : vector<1x8x256xbf16> to vector<8x256xbf16>
    %c7_145 = arith.constant 7 : index
    %c0_146 = arith.constant 0 : index
    %c127_147 = arith.constant 127 : index
    %233 = vector.load %arg9[%c7_145, %c0_146, %c127_147] : memref<8x8x512xbf16, #tpu.memory_space<vmem>>, vector<1x8x256xbf16>
    %234 = vector.shape_cast %233 : vector<1x8x256xbf16> to vector<8x256xbf16>
    %235 = tpu.concatenate %232, %234 in 1 : vector<8x256xbf16>, vector<8x256xbf16> -> vector<8x512xbf16>
    %236 = arith.select %183, %235, %186 : vector<8x512xi1>, vector<8x512xbf16>
    %c2_148 = arith.constant 2 : index
    %c0_149 = arith.constant 0 : index
    %c128_150 = arith.constant 128 : index
    %237 = vector.load %arg9[%c2_148, %c0_149, %c128_150] : memref<8x8x512xbf16, #tpu.memory_space<vmem>>, vector<1x8x256xbf16>
    %238 = vector.shape_cast %237 : vector<1x8x256xbf16> to vector<8x256xbf16>
    %c6_151 = arith.constant 6 : index
    %c0_152 = arith.constant 0 : index
    %c128_153 = arith.constant 128 : index
    %239 = vector.load %arg9[%c6_151, %c0_152, %c128_153] : memref<8x8x512xbf16, #tpu.memory_space<vmem>>, vector<1x8x256xbf16>
    %240 = vector.shape_cast %239 : vector<1x8x256xbf16> to vector<8x256xbf16>
    %241 = tpu.concatenate %238, %240 in 1 : vector<8x256xbf16>, vector<8x256xbf16> -> vector<8x512xbf16>
    %c3_154 = arith.constant 3 : index
    %c0_155 = arith.constant 0 : index
    %c128_156 = arith.constant 128 : index
    %242 = vector.load %arg9[%c3_154, %c0_155, %c128_156] : memref<8x8x512xbf16, #tpu.memory_space<vmem>>, vector<1x8x256xbf16>
    %243 = vector.shape_cast %242 : vector<1x8x256xbf16> to vector<8x256xbf16>
    %c7_157 = arith.constant 7 : index
    %c0_158 = arith.constant 0 : index
    %c128_159 = arith.constant 128 : index
    %244 = vector.load %arg9[%c7_157, %c0_158, %c128_159] : memref<8x8x512xbf16, #tpu.memory_space<vmem>>, vector<1x8x256xbf16>
    %245 = vector.shape_cast %244 : vector<1x8x256xbf16> to vector<8x256xbf16>
    %246 = tpu.concatenate %243, %245 in 1 : vector<8x256xbf16>, vector<8x256xbf16> -> vector<8x512xbf16>
    %c2_160 = arith.constant 2 : index
    %c0_161 = arith.constant 0 : index
    %c129_162 = arith.constant 129 : index
    %247 = vector.load %arg9[%c2_160, %c0_161, %c129_162] : memref<8x8x512xbf16, #tpu.memory_space<vmem>>, vector<1x8x256xbf16>
    %248 = vector.shape_cast %247 : vector<1x8x256xbf16> to vector<8x256xbf16>
    %c6_163 = arith.constant 6 : index
    %c0_164 = arith.constant 0 : index
    %c129_165 = arith.constant 129 : index
    %249 = vector.load %arg9[%c6_163, %c0_164, %c129_165] : memref<8x8x512xbf16, #tpu.memory_space<vmem>>, vector<1x8x256xbf16>
    %250 = vector.shape_cast %249 : vector<1x8x256xbf16> to vector<8x256xbf16>
    %251 = tpu.concatenate %248, %250 in 1 : vector<8x256xbf16>, vector<8x256xbf16> -> vector<8x512xbf16>
    %252 = arith.select %185, %251, %186 : vector<8x512xi1>, vector<8x512xbf16>
    %c1_166 = arith.constant 1 : index
    %c0_167 = arith.constant 0 : index
    %c143 = arith.constant 143 : index
    %253 = vector.load %arg9[%c1_166, %c0_167, %c143] : memref<8x8x512xbf16, #tpu.memory_space<vmem>>, vector<1x8x256xbf16>
    %254 = vector.shape_cast %253 : vector<1x8x256xbf16> to vector<8x256xbf16>
    %c5_168 = arith.constant 5 : index
    %c0_169 = arith.constant 0 : index
    %c143_170 = arith.constant 143 : index
    %255 = vector.load %arg9[%c5_168, %c0_169, %c143_170] : memref<8x8x512xbf16, #tpu.memory_space<vmem>>, vector<1x8x256xbf16>
    %256 = vector.shape_cast %255 : vector<1x8x256xbf16> to vector<8x256xbf16>
    %257 = tpu.concatenate %254, %256 in 1 : vector<8x256xbf16>, vector<8x256xbf16> -> vector<8x512xbf16>
    %258 = arith.select %183, %257, %186 : vector<8x512xi1>, vector<8x512xbf16>
    %c0_171 = arith.constant 0 : index
    %c0_172 = arith.constant 0 : index
    %c144 = arith.constant 144 : index
    %259 = vector.load %arg9[%c0_171, %c0_172, %c144] : memref<8x8x512xbf16, #tpu.memory_space<vmem>>, vector<1x8x256xbf16>
    %260 = vector.shape_cast %259 : vector<1x8x256xbf16> to vector<8x256xbf16>
    %c4_173 = arith.constant 4 : index
    %c0_174 = arith.constant 0 : index
    %c144_175 = arith.constant 144 : index
    %261 = vector.load %arg9[%c4_173, %c0_174, %c144_175] : memref<8x8x512xbf16, #tpu.memory_space<vmem>>, vector<1x8x256xbf16>
    %262 = vector.shape_cast %261 : vector<1x8x256xbf16> to vector<8x256xbf16>
    %263 = tpu.concatenate %260, %262 in 1 : vector<8x256xbf16>, vector<8x256xbf16> -> vector<8x512xbf16>
    %c1_176 = arith.constant 1 : index
    %c0_177 = arith.constant 0 : index
    %c144_178 = arith.constant 144 : index
    %264 = vector.load %arg9[%c1_176, %c0_177, %c144_178] : memref<8x8x512xbf16, #tpu.memory_space<vmem>>, vector<1x8x256xbf16>
    %265 = vector.shape_cast %264 : vector<1x8x256xbf16> to vector<8x256xbf16>
    %c5_179 = arith.constant 5 : index
    %c0_180 = arith.constant 0 : index
    %c144_181 = arith.constant 144 : index
    %266 = vector.load %arg9[%c5_179, %c0_180, %c144_181] : memref<8x8x512xbf16, #tpu.memory_space<vmem>>, vector<1x8x256xbf16>
    %267 = vector.shape_cast %266 : vector<1x8x256xbf16> to vector<8x256xbf16>
    %268 = tpu.concatenate %265, %267 in 1 : vector<8x256xbf16>, vector<8x256xbf16> -> vector<8x512xbf16>
    %c0_182 = arith.constant 0 : index
    %c0_183 = arith.constant 0 : index
    %c145 = arith.constant 145 : index
    %269 = vector.load %arg9[%c0_182, %c0_183, %c145] : memref<8x8x512xbf16, #tpu.memory_space<vmem>>, vector<1x8x256xbf16>
    %270 = vector.shape_cast %269 : vector<1x8x256xbf16> to vector<8x256xbf16>
    %c4_184 = arith.constant 4 : index
    %c0_185 = arith.constant 0 : index
    %c145_186 = arith.constant 145 : index
    %271 = vector.load %arg9[%c4_184, %c0_185, %c145_186] : memref<8x8x512xbf16, #tpu.memory_space<vmem>>, vector<1x8x256xbf16>
    %272 = vector.shape_cast %271 : vector<1x8x256xbf16> to vector<8x256xbf16>
    %273 = tpu.concatenate %270, %272 in 1 : vector<8x256xbf16>, vector<8x256xbf16> -> vector<8x512xbf16>
    %274 = arith.select %185, %273, %186 : vector<8x512xi1>, vector<8x512xbf16>
    %c0_187 = arith.constant 0 : index
    %c0_188 = arith.constant 0 : index
    %c0_189 = arith.constant 0 : index
    %275 = vector.load %arg4[%c0_187, %c0_188, %c0_189] : memref<2x4x256xbf16, #tpu.memory_space<vmem>>, vector<1x4x256xbf16>
    %276 = vector.shape_cast %275 : vector<1x4x256xbf16> to vector<4x256xbf16>
    %c1_190 = arith.constant 1 : index
    %c0_191 = arith.constant 0 : index
    %c0_192 = arith.constant 0 : index
    %277 = vector.load %arg4[%c1_190, %c0_191, %c0_192] : memref<2x4x256xbf16, #tpu.memory_space<vmem>>, vector<1x4x256xbf16>
    %278 = vector.shape_cast %277 : vector<1x4x256xbf16> to vector<4x256xbf16>
    %279 = tpu.concatenate %276, %278 in 1 : vector<4x256xbf16>, vector<4x256xbf16> -> vector<4x512xbf16>
    %c0_193 = arith.constant 0 : index
    %c0_194 = arith.constant 0 : index
    %280 = vector.load %arg6[%c0_193, %c0_194] : memref<8x4xbf16, #tpu.memory_space<vmem>>, vector<8x4xbf16>
    %cst_195 = arith.constant dense<0.000000e+00> : vector<8x512xf32>
    %281 = tpu.matmul %280, %279, %cst_195 {dimension_numbers = #tpu.dot_dimension_numbers<[1], [0], [0], [1], [0, 0, 1, 1], [], []>} : vector<8x4xbf16>, vector<4x512xbf16>, vector<8x512xf32> -> vector<8x512xf32>
    %c0_196 = arith.constant 0 : index
    %c0_197 = arith.constant 0 : index
    %282 = vector.load %arg7[%c0_196, %c0_197] : memref<8x1xf32, #tpu.memory_space<vmem>>, vector<8x1xf32>
    %283 = vector.broadcast %282 : vector<8x1xf32> to vector<8x512xf32>
    %284 = arith.addf %281, %283 : vector<8x512xf32>
    %285 = tpu.concatenate %192, %197, %202, %214, %219, %224, %236, %241, %246 in 0 : vector<8x512xbf16>, vector<8x512xbf16>, vector<8x512xbf16>, vector<8x512xbf16>, vector<8x512xbf16>, vector<8x512xbf16>, vector<8x512xbf16>, vector<8x512xbf16>, vector<8x512xbf16> -> vector<72x512xbf16>
    %286 = tpu.concatenate %197, %202, %208, %219, %224, %230, %241, %246, %252 in 0 : vector<8x512xbf16>, vector<8x512xbf16>, vector<8x512xbf16>, vector<8x512xbf16>, vector<8x512xbf16>, vector<8x512xbf16>, vector<8x512xbf16>, vector<8x512xbf16>, vector<8x512xbf16> -> vector<72x512xbf16>
    %287 = tpu.concatenate %214, %219, %224, %236, %241, %246, %258, %263, %268 in 0 : vector<8x512xbf16>, vector<8x512xbf16>, vector<8x512xbf16>, vector<8x512xbf16>, vector<8x512xbf16>, vector<8x512xbf16>, vector<8x512xbf16>, vector<8x512xbf16>, vector<8x512xbf16> -> vector<72x512xbf16>
    %288 = tpu.concatenate %219, %224, %230, %241, %246, %252, %263, %268, %274 in 0 : vector<8x512xbf16>, vector<8x512xbf16>, vector<8x512xbf16>, vector<8x512xbf16>, vector<8x512xbf16>, vector<8x512xbf16>, vector<8x512xbf16>, vector<8x512xbf16>, vector<8x512xbf16> -> vector<72x512xbf16>
    %289 = tpu.concatenate %285, %286, %287, %288 in 1 : vector<72x512xbf16>, vector<72x512xbf16>, vector<72x512xbf16>, vector<72x512xbf16> -> vector<72x2048xbf16>
    %c0_198 = arith.constant 0 : index
    %c0_199 = arith.constant 0 : index
    %290 = vector.load %arg5[%c0_198, %c0_199] : memref<8x72xbf16, #tpu.memory_space<vmem>>, vector<8x72xbf16>
    %cst_200 = arith.constant dense<0.000000e+00> : vector<8x2048xf32>
    %291 = tpu.matmul %290, %289, %cst_200 {dimension_numbers = #tpu.dot_dimension_numbers<[1], [0], [0], [1], [0, 0, 1, 1], [], []>} : vector<8x72xbf16>, vector<72x2048xbf16>, vector<8x2048xf32> -> vector<8x2048xf32>
    %292 = vector.extract_strided_slice %291 {offsets = [0, 0], sizes = [8, 256], strides = [1, 1]} : vector<8x2048xf32> to vector<8x256xf32>
    %293 = vector.extract_strided_slice %284 {offsets = [0, 0], sizes = [8, 256], strides = [1, 1]} : vector<8x512xf32> to vector<8x256xf32>
    %294 = arith.addf %292, %293 : vector<8x256xf32>
    %295 = arith.truncf %294 : vector<8x256xf32> to vector<8x256xbf16>
    %c0_201 = arith.constant 0 : index
    %c0_202 = arith.constant 0 : index
    %c0_203 = arith.constant 0 : index
    %296 = vector.load %arg8[%c0_201, %c0_202, %c0_203] : memref<2x8x1024xbf16, #tpu.memory_space<vmem>>, vector<1x8x256xbf16>
    %297 = vector.shape_cast %296 : vector<1x8x256xbf16> to vector<8x256xbf16>
    %298 = vector.shape_cast %295 : vector<8x256xbf16> to vector<1x8x256xbf16>
    tpu.vector_store %arg8[%c0_201, %c0_202, %c0_203], %298 {strides = array<i32>} : memref<2x8x1024xbf16, #tpu.memory_space<vmem>>, vector<1x8x256xbf16>,
    %299 = vector.extract_strided_slice %291 {offsets = [0, 256], sizes = [8, 256], strides = [1, 1]} : vector<8x2048xf32> to vector<8x256xf32>
    %300 = vector.extract_strided_slice %284 {offsets = [0, 256], sizes = [8, 256], strides = [1, 1]} : vector<8x512xf32> to vector<8x256xf32>
    %301 = arith.addf %299, %300 : vector<8x256xf32>
    %302 = arith.truncf %301 : vector<8x256xf32> to vector<8x256xbf16>
    %c1_204 = arith.constant 1 : index
    %c0_205 = arith.constant 0 : index
    %c0_206 = arith.constant 0 : index
    %303 = vector.load %arg8[%c1_204, %c0_205, %c0_206] : memref<2x8x1024xbf16, #tpu.memory_space<vmem>>, vector<1x8x256xbf16>
    %304 = vector.shape_cast %303 : vector<1x8x256xbf16> to vector<8x256xbf16>
    %305 = vector.shape_cast %302 : vector<8x256xbf16> to vector<1x8x256xbf16>
    tpu.vector_store %arg8[%c1_204, %c0_205, %c0_206], %305 {strides = array<i32>} : memref<2x8x1024xbf16, #tpu.memory_space<vmem>>, vector<1x8x256xbf16>,
    %306 = vector.extract_strided_slice %291 {offsets = [0, 512], sizes = [8, 256], strides = [1, 1]} : vector<8x2048xf32> to vector<8x256xf32>
    %307 = vector.extract_strided_slice %284 {offsets = [0, 0], sizes = [8, 256], strides = [1, 1]} : vector<8x512xf32> to vector<8x256xf32>
    %308 = arith.addf %306, %307 : vector<8x256xf32>
    %309 = arith.truncf %308 : vector<8x256xf32> to vector<8x256xbf16>
    %c0_207 = arith.constant 0 : index
    %c0_208 = arith.constant 0 : index
    %c256_209 = arith.constant 256 : index
    %310 = vector.load %arg8[%c0_207, %c0_208, %c256_209] : memref<2x8x1024xbf16, #tpu.memory_space<vmem>>, vector<1x8x256xbf16>
    %311 = vector.shape_cast %310 : vector<1x8x256xbf16> to vector<8x256xbf16>
    %312 = vector.shape_cast %309 : vector<8x256xbf16> to vector<1x8x256xbf16>
    tpu.vector_store %arg8[%c0_207, %c0_208, %c256_209], %312 {strides = array<i32>} : memref<2x8x1024xbf16, #tpu.memory_space<vmem>>, vector<1x8x256xbf16>,
    %313 = vector.extract_strided_slice %291 {offsets = [0, 768], sizes = [8, 256], strides = [1, 1]} : vector<8x2048xf32> to vector<8x256xf32>
    %314 = vector.extract_strided_slice %284 {offsets = [0, 256], sizes = [8, 256], strides = [1, 1]} : vector<8x512xf32> to vector<8x256xf32>
    %315 = arith.addf %313, %314 : vector<8x256xf32>
    %316 = arith.truncf %315 : vector<8x256xf32> to vector<8x256xbf16>
    %c1_210 = arith.constant 1 : index
    %c0_211 = arith.constant 0 : index
    %c256_212 = arith.constant 256 : index
    %317 = vector.load %arg8[%c1_210, %c0_211, %c256_212] : memref<2x8x1024xbf16, #tpu.memory_space<vmem>>, vector<1x8x256xbf16>
    %318 = vector.shape_cast %317 : vector<1x8x256xbf16> to vector<8x256xbf16>
    %319 = vector.shape_cast %316 : vector<8x256xbf16> to vector<1x8x256xbf16>
    tpu.vector_store %arg8[%c1_210, %c0_211, %c256_212], %319 {strides = array<i32>} : memref<2x8x1024xbf16, #tpu.memory_space<vmem>>, vector<1x8x256xbf16>,
    %320 = vector.extract_strided_slice %291 {offsets = [0, 1024], sizes = [8, 256], strides = [1, 1]} : vector<8x2048xf32> to vector<8x256xf32>
    %321 = vector.extract_strided_slice %284 {offsets = [0, 0], sizes = [8, 256], strides = [1, 1]} : vector<8x512xf32> to vector<8x256xf32>
    %322 = arith.addf %320, %321 : vector<8x256xf32>
    %323 = arith.truncf %322 : vector<8x256xf32> to vector<8x256xbf16>
    %c0_213 = arith.constant 0 : index
    %c0_214 = arith.constant 0 : index
    %c512_215 = arith.constant 512 : index
    %324 = vector.load %arg8[%c0_213, %c0_214, %c512_215] : memref<2x8x1024xbf16, #tpu.memory_space<vmem>>, vector<1x8x256xbf16>
    %325 = vector.shape_cast %324 : vector<1x8x256xbf16> to vector<8x256xbf16>
    %326 = vector.shape_cast %323 : vector<8x256xbf16> to vector<1x8x256xbf16>
    tpu.vector_store %arg8[%c0_213, %c0_214, %c512_215], %326 {strides = array<i32>} : memref<2x8x1024xbf16, #tpu.memory_space<vmem>>, vector<1x8x256xbf16>,
    %327 = vector.extract_strided_slice %291 {offsets = [0, 1280], sizes = [8, 256], strides = [1, 1]} : vector<8x2048xf32> to vector<8x256xf32>
    %328 = vector.extract_strided_slice %284 {offsets = [0, 256], sizes = [8, 256], strides = [1, 1]} : vector<8x512xf32> to vector<8x256xf32>
    %329 = arith.addf %327, %328 : vector<8x256xf32>
    %330 = arith.truncf %329 : vector<8x256xf32> to vector<8x256xbf16>
    %c1_216 = arith.constant 1 : index
    %c0_217 = arith.constant 0 : index
    %c512_218 = arith.constant 512 : index
    %331 = vector.load %arg8[%c1_216, %c0_217, %c512_218] : memref<2x8x1024xbf16, #tpu.memory_space<vmem>>, vector<1x8x256xbf16>
    %332 = vector.shape_cast %331 : vector<1x8x256xbf16> to vector<8x256xbf16>
    %333 = vector.shape_cast %330 : vector<8x256xbf16> to vector<1x8x256xbf16>
    tpu.vector_store %arg8[%c1_216, %c0_217, %c512_218], %333 {strides = array<i32>} : memref<2x8x1024xbf16, #tpu.memory_space<vmem>>, vector<1x8x256xbf16>,
    %334 = vector.extract_strided_slice %291 {offsets = [0, 1536], sizes = [8, 256], strides = [1, 1]} : vector<8x2048xf32> to vector<8x256xf32>
    %335 = vector.extract_strided_slice %284 {offsets = [0, 0], sizes = [8, 256], strides = [1, 1]} : vector<8x512xf32> to vector<8x256xf32>
    %336 = arith.addf %334, %335 : vector<8x256xf32>
    %337 = arith.truncf %336 : vector<8x256xf32> to vector<8x256xbf16>
    %c0_219 = arith.constant 0 : index
    %c0_220 = arith.constant 0 : index
    %c768_221 = arith.constant 768 : index
    %338 = vector.load %arg8[%c0_219, %c0_220, %c768_221] : memref<2x8x1024xbf16, #tpu.memory_space<vmem>>, vector<1x8x256xbf16>
    %339 = vector.shape_cast %338 : vector<1x8x256xbf16> to vector<8x256xbf16>
    %340 = vector.shape_cast %337 : vector<8x256xbf16> to vector<1x8x256xbf16>
    tpu.vector_store %arg8[%c0_219, %c0_220, %c768_221], %340 {strides = array<i32>} : memref<2x8x1024xbf16, #tpu.memory_space<vmem>>, vector<1x8x256xbf16>,
    %341 = vector.extract_strided_slice %291 {offsets = [0, 1792], sizes = [8, 256], strides = [1, 1]} : vector<8x2048xf32> to vector<8x256xf32>
    %342 = vector.extract_strided_slice %284 {offsets = [0, 256], sizes = [8, 256], strides = [1, 1]} : vector<8x512xf32> to vector<8x256xf32>
    %343 = arith.addf %341, %342 : vector<8x256xf32>
    %344 = arith.truncf %343 : vector<8x256xf32> to vector<8x256xbf16>
    %c1_222 = arith.constant 1 : index
    %c0_223 = arith.constant 0 : index
    %c768_224 = arith.constant 768 : index
    %345 = vector.load %arg8[%c1_222, %c0_223, %c768_224] : memref<2x8x1024xbf16, #tpu.memory_space<vmem>>, vector<1x8x256xbf16>
    %346 = vector.shape_cast %345 : vector<1x8x256xbf16> to vector<8x256xbf16>
    %347 = vector.shape_cast %344 : vector<8x256xbf16> to vector<1x8x256xbf16>
    tpu.vector_store %arg8[%c1_222, %c0_223, %c768_224], %347 {strides = array<i32>} : memref<2x8x1024xbf16, #tpu.memory_space<vmem>>, vector<1x8x256xbf16>,
    return
  }
  func.func @transform_0(%arg0: i32) -> i32 {
    %c0_i32 = arith.constant 0 : i32
    %c0_i32_0 = arith.constant 0 : i32
    return %c0_i32 : i32
  }
  func.func @transform_1(%arg0: i32) -> i32 {
    %c0_i32 = arith.constant 0 : i32
    %c0_i32_0 = arith.constant 0 : i32
    return %c0_i32 : i32
  }
  func.func @transform_2(%arg0: i32) -> (i32, i32, i32) {
    %c0_i32 = arith.constant 0 : i32
    %c0_i32_0 = arith.constant 0 : i32
    %c0_i32_1 = arith.constant 0 : i32
    return %arg0, %c0_i32, %c0_i32_0 : i32, i32, i32
  }
  func.func @transform_3(%arg0: i32) -> (i32, i32, i32) {
    %c0_i32 = arith.constant 0 : i32
    %c0_i32_0 = arith.constant 0 : i32
    %c0_i32_1 = arith.constant 0 : i32
    return %arg0, %c0_i32, %c0_i32_0 : i32, i32, i32
  }
  func.func @transform_4(%arg0: i32) -> (i32, i32) {
    %c0_i32 = arith.constant 0 : i32
    %c0_i32_0 = arith.constant 0 : i32
    %c0_i32_1 = arith.constant 0 : i32
    return %c0_i32, %c0_i32_0 : i32, i32
  }
  func.func @transform_5(%arg0: i32) -> (i32, i32) {
    %c0_i32 = arith.constant 0 : i32
    %c0_i32_0 = arith.constant 0 : i32
    %c0_i32_1 = arith.constant 0 : i32
    return %c0_i32, %c0_i32_0 : i32, i32
  }
  func.func @transform_6(%arg0: i32) -> (i32, i32) {
    %c0_i32 = arith.constant 0 : i32
    %c0_i32_0 = arith.constant 0 : i32
    %c0_i32_1 = arith.constant 0 : i32
    return %c0_i32, %c0_i32_0 : i32, i32
  }
  func.func @transform_7(%arg0: i32) -> (i32, i32, i32) {
    %c0_i32 = arith.constant 0 : i32
    %c0_i32_0 = arith.constant 0 : i32
    %c0_i32_1 = arith.constant 0 : i32
    return %arg0, %c0_i32, %c0_i32_0 : i32, i32, i32
  }
}

</mosaic_0001>

<llo_original>
// kernel: resblock_up_forward.3
$region0: #{resblock_up_forward.3}
  #allocation0 [shape = 'u32[]', space=smem, size = 0x4, offset = 0x4, fixed_abs, tag = 'smem constant byte address 0x4 - core index']
  #allocation1 [shape = 'u32[144,128]{1,0:T(1,128)}', space=vmem, size = 0x12000, scoped, tag = 'internal scratch']
  %s0 = inlined_call_operand.vmem [shape: f32[2,1,8], index: 0, kind: input, shape index: {}]
  %s1 = inlined_call_operand.vmem [shape: f32[8,64], index: 1, kind: input, shape index: {}]
  %s2 = inlined_call_operand.vmem [shape: f32[1,64], index: 2, kind: input, shape index: {}]
  %s3 = inlined_call_operand.vmem [shape: f32[64,4], index: 3, kind: input, shape index: {}]
  %s4 = inlined_call_operand.vmem [shape: f32[1,4], index: 4, kind: input, shape index: {}]
  %s5 = inlined_call_operand.vmem [shape: f32[2,4,256], index: 5, kind: input, shape index: {}]
  %s6 = inlined_call_operand.vmem [shape: f32[2,1,4], index: 6, kind: output, shape index: {0}]
  %s7 = inlined_call_operand.vmem [shape: f32[2,1,2], index: 7, kind: output, shape index: {1}]
  %8 = xla_tuple %s6, %s7
  %s9 = sld [smem:[#allocation0]]
  $region65: #{resblock_up_forward.3} parent=0
    _
  %s11 = ssub.s32 1, %s9
  %s12 = scalar_select 0, %s11, %s9
  loop: start=0, step=1, limit=4
  $region2: #{resblock_up_forward.3} parent=0 // loop_pre_header
    _
  $region3: #{resblock_up_forward.3} parent=0 // loop_header
    %s14 = sphi 0, %s18
    %p15 = scmp.ge.s32.totalorder %s14, 4
    %s24 = sphi 0, %s26
    %s27 = sphi 0, %s24
    %s28 = sphi 0, %s27
    %s44 = sphi 0, %s28
    %s48 = sphi 0, %s48
    %s50 = sphi 0, %s48
    %s51 = sphi 0, %s50
    %s65 = sphi 0, %s51
    %s69 = sphi 0, %s69
    %s71 = sphi 0, %s69
    %s72 = sphi 0, %s71
    %s86 = sphi 0, %s72
    %s90 = sphi 0, %s90
    %s92 = sphi 0, %s90
    %s93 = sphi 0, %s92
    %s107 = sphi 0, %s93
    %s111 = sphi 0, %s111
    %s113 = sphi 0, %s111
    %s114 = sphi 0, %s113
    %s128 = sphi 0, %s114
    %s134 = sphi 0, %s136
    %s137 = sphi 0, %s134
    %s138 = sphi 0, %s137
    %s154 = sphi 0, %s138
    %s160 = sphi 0, %s162
    %s163 = sphi 0, %s160
    %s164 = sphi 0, %s163
    %s180 = sphi 0, %s164
    %s186 = sphi 0, %s188
    %s189 = sphi 0, %s186
    %s190 = sphi 0, %s189
    %s206 = sphi 0, %s190
  $region4: #{resblock_up_forward.3} parent=0 // loop_header_branch
    %17 = sbr.rel (%p15) target = $region8
  $region5: #{resblock_up_forward.3} parent=0 // loop_body
    %s19 = ssub.s32 %s14, 1
    %s20 = ssub.s32 %s14, 2
    %s21 = sadd.s32 %s14, 1
    %s22 = ssub.s32 %s14, %s21
    %p23 = scmp.eq.s32.totalorder %s22, 0
    %s25 = sadd.s32 %s24, 1
    %s26 = scalar_select %p23, %s24, %s25
    %p29 = pneg %p23
    %p30 = scmp.eq.s32.totalorder %s14, 1
    %p31 = por %p29, %p30
    %p32 = scmp.ne.s32.totalorder %s24, %s27
    %p33 = scmp.eq.s32.totalorder %s14, 0
    %p34 = por %p32, %p33
    %p35 = scmp.ne.s32.totalorder %s24, %s27
    %p36 = scmp.eq.s32.totalorder %s19, 1
    %p37 = por %p35, %p36
    %p38 = scmp.ne.s32.totalorder %s27, %s28
    %p39 = scmp.eq.s32.totalorder %s19, 0
    %p40 = por %p38, %p39
    %p41 = scmp.ne.s32.totalorder %s27, %s28
    %p42 = scmp.eq.s32.totalorder %s20, 1
    %p43 = por %p41, %p42
    %p45 = scmp.ne.s32.totalorder %s28, %s44
    %p46 = scmp.eq.s32.totalorder %s20, 0
    %p47 = por %p45, %p46
    %s49 = sadd.s32 %s48, 1
    %p52 = scmp.eq.s32.totalorder %s14, 1
    %p53 = scmp.ne.s32.totalorder %s48, %s50
    %p54 = scmp.eq.s32.totalorder %s14, 0
    %p55 = por %p53, %p54
    %p56 = scmp.ne.s32.totalorder %s48, %s50
    %p57 = scmp.eq.s32.totalorder %s19, 1
    %p58 = por %p56, %p57
    %p59 = scmp.ne.s32.totalorder %s50, %s51
    %p60 = scmp.eq.s32.totalorder %s19, 0
    %p61 = por %p59, %p60
    %p62 = scmp.ne.s32.totalorder %s50, %s51
    %p63 = scmp.eq.s32.totalorder %s20, 1
    %p64 = por %p62, %p63
    %p66 = scmp.ne.s32.totalorder %s51, %s65
    %p67 = scmp.eq.s32.totalorder %s20, 0
    %p68 = por %p66, %p67
    %s70 = sadd.s32 %s69, 1
    %p73 = scmp.eq.s32.totalorder %s14, 1
    %p74 = scmp.ne.s32.totalorder %s69, %s71
    %p75 = scmp.eq.s32.totalorder %s14, 0
    %p76 = por %p74, %p75
    %p77 = scmp.ne.s32.totalorder %s69, %s71
    %p78 = scmp.eq.s32.totalorder %s19, 1
    %p79 = por %p77, %p78
    %p80 = scmp.ne.s32.totalorder %s71, %s72
    %p81 = scmp.eq.s32.totalorder %s19, 0
    %p82 = por %p80, %p81
    %p83 = scmp.ne.s32.totalorder %s71, %s72
    %p84 = scmp.eq.s32.totalorder %s20, 1
    %p85 = por %p83, %p84
    %p87 = scmp.ne.s32.totalorder %s72, %s86
    %p88 = scmp.eq.s32.totalorder %s20, 0
    %p89 = por %p87, %p88
    %s91 = sadd.s32 %s90, 1
    %p94 = scmp.eq.s32.totalorder %s14, 1
    %p95 = scmp.ne.s32.totalorder %s90, %s92
    %p96 = scmp.eq.s32.totalorder %s14, 0
    %p97 = por %p95, %p96
    %p98 = scmp.ne.s32.totalorder %s90, %s92
    %p99 = scmp.eq.s32.totalorder %s19, 1
    %p100 = por %p98, %p99
    %p101 = scmp.ne.s32.totalorder %s92, %s93
    %p102 = scmp.eq.s32.totalorder %s19, 0
    %p103 = por %p101, %p102
    %p104 = scmp.ne.s32.totalorder %s92, %s93
    %p105 = scmp.eq.s32.totalorder %s20, 1
    %p106 = por %p104, %p105
    %p108 = scmp.ne.s32.totalorder %s93, %s107
    %p109 = scmp.eq.s32.totalorder %s20, 0
    %p110 = por %p108, %p109
    %s112 = sadd.s32 %s111, 1
    %p115 = scmp.eq.s32.totalorder %s14, 1
    %p116 = scmp.ne.s32.totalorder %s111, %s113
    %p117 = scmp.eq.s32.totalorder %s14, 0
    %p118 = por %p116, %p117
    %p119 = scmp.ne.s32.totalorder %s111, %s113
    %p120 = scmp.eq.s32.totalorder %s19, 1
    %p121 = por %p119, %p120
    %p122 = scmp.ne.s32.totalorder %s113, %s114
    %p123 = scmp.eq.s32.totalorder %s19, 0
    %p124 = por %p122, %p123
    %p125 = scmp.ne.s32.totalorder %s113, %s114
    %p126 = scmp.eq.s32.totalorder %s20, 1
    %p127 = por %p125, %p126
    %p129 = scmp.ne.s32.totalorder %s114, %s128
    %p130 = scmp.eq.s32.totalorder %s20, 0
    %p131 = por %p129, %p130
    %s132 = ssub.s32 %s14, %s21
    %p133 = scmp.eq.s32.totalorder %s132, 0
    %s135 = sadd.s32 %s134, 1
    %s136 = scalar_select %p133, %s134, %s135
    %p139 = pneg %p133
    %p140 = scmp.eq.s32.totalorder %s14, 1
    %p141 = por %p139, %p140
    %p142 = scmp.ne.s32.totalorder %s134, %s137
    %p143 = scmp.eq.s32.totalorder %s14, 0
    %p144 = por %p142, %p143
    %p145 = scmp.ne.s32.totalorder %s134, %s137
    %p146 = scmp.eq.s32.totalorder %s19, 1
    %p147 = por %p145, %p146
    %p148 = scmp.ne.s32.totalorder %s137, %s138
    %p149 = scmp.eq.s32.totalorder %s19, 0
    %p150 = por %p148, %p149
    %p151 = scmp.ne.s32.totalorder %s137, %s138
    %p152 = scmp.eq.s32.totalorder %s20, 1
    %p153 = por %p151, %p152
    %p155 = scmp.ne.s32.totalorder %s138, %s154
    %p156 = scmp.eq.s32.totalorder %s20, 0
    %p157 = por %p155, %p156
    %s158 = ssub.s32 %s14, %s21
    %p159 = scmp.eq.s32.totalorder %s158, 0
    %s161 = sadd.s32 %s160, 1
    %s162 = scalar_select %p159, %s160, %s161
    %p165 = pneg %p159
    %p166 = scmp.eq.s32.totalorder %s14, 1
    %p167 = por %p165, %p166
    %p168 = scmp.ne.s32.totalorder %s160, %s163
    %p169 = scmp.eq.s32.totalorder %s14, 0
    %p170 = por %p168, %p169
    %p171 = scmp.ne.s32.totalorder %s160, %s163
    %p172 = scmp.eq.s32.totalorder %s19, 1
    %p173 = por %p171, %p172
    %p174 = scmp.ne.s32.totalorder %s163, %s164
    %p175 = scmp.eq.s32.totalorder %s19, 0
    %p176 = por %p174, %p175
    %p177 = scmp.ne.s32.totalorder %s163, %s164
    %p178 = scmp.eq.s32.totalorder %s20, 1
    %p179 = por %p177, %p178
    %p181 = scmp.ne.s32.totalorder %s164, %s180
    %p182 = scmp.eq.s32.totalorder %s20, 0
    %p183 = por %p181, %p182
    %s184 = ssub.s32 %s14, %s21
    %p185 = scmp.eq.s32.totalorder %s184, 0
    %s187 = sadd.s32 %s186, 1
    %s188 = scalar_select %p185, %s186, %s187
    %p191 = pneg %p185
    %p192 = scmp.eq.s32.totalorder %s14, 1
    %p193 = por %p191, %p192
    %p194 = scmp.ne.s32.totalorder %s186, %s189
    %p195 = scmp.eq.s32.totalorder %s14, 0
    %p196 = por %p194, %p195
    %p197 = scmp.ne.s32.totalorder %s186, %s189
    %p198 = scmp.eq.s32.totalorder %s19, 1
    %p199 = por %p197, %p198
    %p200 = scmp.ne.s32.totalorder %s189, %s190
    %p201 = scmp.eq.s32.totalorder %s19, 0
    %p202 = por %p200, %p201
    %p203 = scmp.ne.s32.totalorder %s189, %s190
    %p204 = scmp.eq.s32.totalorder %s20, 1
    %p205 = por %p203, %p204
    %p207 = scmp.ne.s32.totalorder %s190, %s206
    %p208 = scmp.eq.s32.totalorder %s20, 0
    %p209 = por %p207, %p208
    %p210 = scmp.le.s32.totalorder 1, %s14
    %p211 = scmp.lt.s32.totalorder %s14, 3
    %p212 = pnand %p210, %p211
    %p213 = pneg %p212
    // Predicated region
    $region9: #{resblock_up_forward.3} parent=5 // pred_check
      _
    $region10: #{resblock_up_forward.3} parent=5 // pred_check_branch
      %215 = sbr.rel (%p212) target = $region12
    $region11: #{resblock_up_forward.3} parent=5 // pred_region
      %s216 = ssub.s32 %s14, 1
      // Predicated region
      $region13: #{resblock_up_forward.3} parent=11 // pred_check
        %p217 = pneg %p61
      $region14: #{resblock_up_forward.3} parent=11 // pred_check_branch
        %219 = sbr.rel (%p217) target = $region16
      $region15: #{resblock_up_forward.3} parent=11 // pred_region
        _
      $region16: #{resblock_up_forward.3} parent=11 // pred_fallthru
        _
      // Predicated region
      $region17: #{resblock_up_forward.3} parent=11 // pred_check
        %p220 = pneg %p82
      $region18: #{resblock_up_forward.3} parent=11 // pred_check_branch
        %222 = sbr.rel (%p220) target = $region20
      $region19: #{resblock_up_forward.3} parent=11 // pred_region
        _
      $region20: #{resblock_up_forward.3} parent=11 // pred_fallthru
        _
      // Predicated region
      $region21: #{resblock_up_forward.3} parent=11 // pred_check
        %p223 = pneg %p103
      $region22: #{resblock_up_forward.3} parent=11 // pred_check_branch
        %225 = sbr.rel (%p223) target = $region24
      $region23: #{resblock_up_forward.3} parent=11 // pred_region
        _
      $region24: #{resblock_up_forward.3} parent=11 // pred_fallthru
        _
      // Predicated region
      $region25: #{resblock_up_forward.3} parent=11 // pred_check
        %p226 = pneg %p124
      $region26: #{resblock_up_forward.3} parent=11 // pred_check_branch
        %228 = sbr.rel (%p226) target = $region28
      $region27: #{resblock_up_forward.3} parent=11 // pred_region
        _
      $region28: #{resblock_up_forward.3} parent=11 // pred_fallthru
        _
    $region12: #{resblock_up_forward.3} parent=5 // pred_fallthru
      _
    %p229 = scmp.lt.s32.totalorder %s14, 2
    // Predicated region
    $region29: #{resblock_up_forward.3} parent=5 // pred_check
      %p230 = pneg %p229
    $region30: #{resblock_up_forward.3} parent=5 // pred_check_branch
      %232 = sbr.rel (%p230) target = $region32
    $region31: #{resblock_up_forward.3} parent=5 // pred_region
      // Predicated region
      $region33: #{resblock_up_forward.3} parent=31 // pred_check
        %p233 = pneg %p34
      $region34: #{resblock_up_forward.3} parent=31 // pred_check_branch
        %235 = sbr.rel (%p233) target = $region36
      $region35: #{resblock_up_forward.3} parent=31 // pred_region
        %p236 = scmp.lt.s32.totalorder %s14, 1
        %s237 = scalar_select %p236, %s14, 1
        %s238 = scalar_lea.vmem %s0, %s237
      $region36: #{resblock_up_forward.3} parent=31 // pred_fallthru
        _
      // Predicated region
      $region37: #{resblock_up_forward.3} parent=31 // pred_check
        %p239 = pneg %p144
      $region38: #{resblock_up_forward.3} parent=31 // pred_check_branch
        %241 = sbr.rel (%p239) target = $region40
      $region39: #{resblock_up_forward.3} parent=31 // pred_region
        %p242 = scmp.lt.s32.totalorder %s14, 1
        %s243 = scalar_select %p242, %s14, 1
        %s244 = smul.addr %s243, 2
        %s245 = smul.addr %s244, 4
        %s246 = scalar_lea.vmem %s5, %s245
      $region40: #{resblock_up_forward.3} parent=31 // pred_fallthru
        _
    $region32: #{resblock_up_forward.3} parent=5 // pred_fallthru
      _
    %p247 = scmp.le.s32.totalorder 1, %s14
    %p248 = scmp.lt.s32.totalorder %s14, 3
    %p249 = pnand %p247, %p248
    %p250 = pneg %p249
    // Predicated region
    $region41: #{resblock_up_forward.3} parent=5 // pred_check
      _
    $region42: #{resblock_up_forward.3} parent=5 // pred_check_branch
      %252 = sbr.rel (%p249) target = $region44
    $region43: #{resblock_up_forward.3} parent=5 // pred_region
      %s253 = ssub.s32 %s14, 1
      %p254 = scmp.lt.s32.totalorder %s19, 1
      %s255 = scalar_select %p254, %s19, 1
      %s256 = scalar_lea.vmem %s0, %s255
      %p257 = pneg %p40
      %p258 = pneg %p37
      %p259 = pneg %p61
      %p260 = pneg %p58
      %p261 = pneg %p82
      %p262 = pneg %p79
      %p263 = pneg %p103
      %p264 = pneg %p100
      %p265 = pneg %p124
      %p266 = pneg %p121
      %p267 = scmp.lt.s32.totalorder %s19, 1
      %s268 = scalar_select %p267, %s19, 1
      %s269 = smul.addr %s268, 2
      %s270 = smul.addr %s269, 4
      %s271 = scalar_lea.vmem %s5, %s270
      %p272 = pneg %p150
      %p273 = pneg %p147
      %p274 = pneg %p176
      %p275 = pneg %p173
      %p276 = scmp.lt.s32.totalorder %s19, 1
      %s277 = scalar_select %p276, %s19, 1
      %s278 = scalar_lea.vmem %s6, %s277
      %p279 = pneg %p202
      %p280 = pneg %p199
      %p281 = scmp.lt.s32.totalorder %s19, 1
      %s282 = scalar_select %p281, %s19, 1
      %s283 = scalar_lea.vmem %s7, %s282
      %p284 = scmp.lt.s32.totalorder %s19, 1
      %s285 = scalar_select %p284, %s19, 1
      %s286 = scalar_lea.vmem %s0, %s285
      %p287 = scmp.lt.s32.totalorder %s19, 1
      %s288 = scalar_select %p287, %s19, 1
      %s289 = smul.addr %s288, 2
      %s290 = smul.addr %s289, 4
      %s291 = scalar_lea.vmem %s5, %s290
      %p292 = scmp.lt.s32.totalorder %s19, 1
      %s293 = scalar_select %p292, %s19, 1
      %s294 = scalar_lea.vmem %s6, %s293
      %p295 = scmp.lt.s32.totalorder %s19, 1
      %s296 = scalar_select %p295, %s19, 1
      %s297 = scalar_lea.vmem %s7, %s296
      %v298 = vld [vmem:[%s286] sm:$0x1]
      %v299 = vld [vmem:[%s1] sm:$0xff]
      %v300 = vld [vmem:[%s2] sm:$0x1]
      %vm301 = vcmask 64512
      %v303 = vsel %vm301, %v298, 0
      %305 = vmatprep.subr.mxu0 0.0
      %306 = vmatpush1.msra.mxu0 0.0
      %307 = vmatprep.subr.mxu0 0.0
      %308 = vmatpush1.msra.mxu0 0.0
      %309 = vmatprep.subr.mxu0 0.0
      %310 = vmatpush1.msra.mxu0 0.0
      %311 = vmatprep.subr.mxu0 0.0
      %312 = vmatpush1.msra.mxu0 0.0
      %313 = vmatprep.subr.mxu0 0.0
      %314 = vmatpush1.msra.mxu0 0.0
      %315 = vmatprep.subr.mxu0 0.0
      %316 = vmatpush1.msra.mxu0 0.0
      %317 = vmatprep.subr.mxu0 0.0
      %318 = vmatpush1.msra.mxu0 0.0
      %319 = vmatprep.subr.mxu0 0.0
      %320 = vmatpush1.msra.mxu0 0.0
      %321 = vmatprep.subr.mxu0 0.0
      %322 = vmatpush1.msra.mxu0 0.0
      %323 = vmatprep.subr.mxu0 0.0
      %324 = vmatpush1.msra.mxu0 0.0
      %325 = vmatprep.subr.mxu0 0.0
      %326 = vmatpush1.msra.mxu0 0.0
      %327 = vmatprep.subr.mxu0 0.0
      %328 = vmatpush1.msra.mxu0 0.0
      %329 = vmatprep.subr.mxu0 0.0
      %330 = vmatpush1.msra.mxu0 0.0
      %331 = vmatprep.subr.mxu0 0.0
      %332 = vmatpush1.msra.mxu0 0.0
      %333 = vmatprep.subr.mxu0 0.0
      %334 = vmatpush1.msra.mxu0 0.0
      %335 = vmatprep.subr.mxu0 0.0
      %336 = vmatpush1.msra.mxu0 %v299
      %337 = vmatprep.subr.mxu0 0.0
      %338 = vmatpush2.msra.mxu0 0.0
      %339 = vmatprep.subr.mxu0 0.0
      %340 = vmatpush2.msra.mxu0 0.0
      %341 = vmatprep.subr.mxu0 0.0
      %342 = vmatpush2.msra.mxu0 0.0
      %343 = vmatprep.subr.mxu0 0.0
      %344 = vmatpush2.msra.mxu0 0.0
      %345 = vmatprep.subr.mxu0 0.0
      %346 = vmatpush2.msra.mxu0 0.0
      %347 = vmatprep.subr.mxu0 0.0
      %348 = vmatpush2.msra.mxu0 0.0
      %349 = vmatprep.subr.mxu0 0.0
      %350 = vmatpush2.msra.mxu0 0.0
      %351 = vmatprep.subr.mxu0 0.0
      %352 = vmatpush2.msra.mxu0 0.0
      %353 = vmatprep.subr.mxu0 0.0
      %354 = vmatpush2.msra.mxu0 0.0
      %355 = vmatprep.subr.mxu0 0.0
      %356 = vmatpush2.msra.mxu0 0.0
      %357 = vmatprep.subr.mxu0 0.0
      %358 = vmatpush2.msra.mxu0 0.0
      %359 = vmatprep.subr.mxu0 0.0
      %360 = vmatpush2.msra.mxu0 0.0
      %361 = vmatprep.subr.mxu0 0.0
      %362 = vmatpush2.msra.mxu0 0.0
      %363 = vmatprep.subr.mxu0 0.0
      %364 = vmatpush2.msra.mxu0 0.0
      %365 = vmatprep.subr.mxu0 0.0
      %366 = vmatpush2.msra.mxu0 0.0
      %367 = vmatprep.subr.mxu0 0.0
      %368 = vmatpush2.msra.mxu0 0.0
      %369 = vmatprep.mubr.f32.mxu0 0.0
      %370 = vmatmul.mubr.f32.gmra.mxu0 %v303
      %v371 = vpop.f32.mrf.mxu0
      %v372 = vadd.f32 %v300, %v371
      %v373 = vpop.f32.mrf.mxu0
      %374 = vdwg.mxu0
      %v375 = vmax.f32 %v372, 0.0
      %v376 = vld [vmem:[%s3] sm:$0xff]
      %v377 = vld [vmem:[%s3 + $0x8] sm:$0xff]
      %v378 = vld [vmem:[%s3 + $0x10] sm:$0xff]
      %v379 = vld [vmem:[%s3 + $0x18] sm:$0xff]
      %v380 = vld [vmem:[%s3 + $0x20] sm:$0xff]
      %v381 = vld [vmem:[%s3 + $0x28] sm:$0xff]
      %v382 = vld [vmem:[%s3 + $0x30] sm:$0xff]
      %v383 = vld [vmem:[%s3 + $0x38] sm:$0xff]
      %v384 = vld [vmem:[%s4] sm:$0x1]
      %vm385 = vcmask 523264
      %v387 = vsel %vm385, %v375, 0
      %389 = vmatprep.subr.mxu0 0.0
      %390 = vmatpush1.msra.mxu0 0.0
      %391 = vmatprep.subr.mxu0 0.0
      %392 = vmatpush1.msra.mxu0 0.0
      %393 = vmatprep.subr.mxu0 0.0
      %394 = vmatpush1.msra.mxu0 0.0
      %395 = vmatprep.subr.mxu0 0.0
      %396 = vmatpush1.msra.mxu0 0.0
      %397 = vmatprep.subr.mxu0 0.0
      %398 = vmatpush1.msra.mxu0 0.0
      %399 = vmatprep.subr.mxu0 0.0
      %400 = vmatpush1.msra.mxu0 0.0
      %401 = vmatprep.subr.mxu0 0.0
      %402 = vmatpush1.msra.mxu0 0.0
      %403 = vmatprep.subr.mxu0 0.0
      %404 = vmatpush1.msra.mxu0 0.0
      %405 = vmatprep.subr.mxu0 0.0
      %406 = vmatpush1.msra.mxu0 %v383
      %407 = vmatprep.subr.mxu0 0.0
      %408 = vmatpush1.msra.mxu0 %v382
      %409 = vmatprep.subr.mxu0 0.0
      %410 = vmatpush1.msra.mxu0 %v381
      %411 = vmatprep.subr.mxu0 0.0
      %412 = vmatpush1.msra.mxu0 %v380
      %413 = vmatprep.subr.mxu0 0.0
      %414 = vmatpush1.msra.mxu0 %v379
      %415 = vmatprep.subr.mxu0 0.0
      %416 = vmatpush1.msra.mxu0 %v378
      %417 = vmatprep.subr.mxu0 0.0
      %418 = vmatpush1.msra.mxu0 %v377
      %419 = vmatprep.subr.mxu0 0.0
      %420 = vmatpush1.msra.mxu0 %v376
      %421 = vmatprep.subr.mxu0 0.0
      %422 = vmatpush2.msra.mxu0 0.0
      %423 = vmatprep.subr.mxu0 0.0
      %424 = vmatpush2.msra.mxu0 0.0
      %425 = vmatprep.subr.mxu0 0.0
      %426 = vmatpush2.msra.mxu0 0.0
      %427 = vmatprep.subr.mxu0 0.0
      %428 = vmatpush2.msra.mxu0 0.0
      %429 = vmatprep.subr.mxu0 0.0
      %430 = vmatpush2.msra.mxu0 0.0
      %431 = vmatprep.subr.mxu0 0.0
      %432 = vmatpush2.msra.mxu0 0.0
      %433 = vmatprep.subr.mxu0 0.0
      %434 = vmatpush2.msra.mxu0 0.0
      %435 = vmatprep.subr.mxu0 0.0
      %436 = vmatpush2.msra.mxu0 0.0
      %437 = vmatprep.subr.mxu0 0.0
      %438 = vmatpush2.msra.mxu0 0.0
      %439 = vmatprep.subr.mxu0 0.0
      %440 = vmatpush2.msra.mxu0 0.0
      %441 = vmatprep.subr.mxu0 0.0
      %442 = vmatpush2.msra.mxu0 0.0
      %443 = vmatprep.subr.mxu0 0.0
      %444 = vmatpush2.msra.mxu0 0.0
      %445 = vmatprep.subr.mxu0 0.0
      %446 = vmatpush2.msra.mxu0 0.0
      %447 = vmatprep.subr.mxu0 0.0
      %448 = vmatpush2.msra.mxu0 0.0
      %449 = vmatprep.subr.mxu0 0.0
      %450 = vmatpush2.msra.mxu0 0.0
      %451 = vmatprep.subr.mxu0 0.0
      %452 = vmatpush2.msra.mxu0 0.0
      %453 = vmatprep.mubr.f32.mxu0 0.0
      %454 = vmatmul.mubr.f32.gmra.mxu0 %v387
      %v455 = vpop.f32.mrf.mxu0
      %v456 = vadd.f32 %v384, %v455
      %v457 = vpop.f32.mrf.mxu0
      %458 = vdwg.mxu0
      %vm459 = vcmask 24576
      %460 = vst.msk [vmem:[%s294] sm:$0x1] %vm459, %v456
      %v461 = vld [vmem:[%s291] sm:$0xff]
      %v463 = vcombine.high %v461, %v461
      %vm465 = vcmask 1043456
      %v466 = vsel %vm465, %v461, 0.0
      %v467 = vsel %vm465, %v463, 0.0
      %v468 = vadd.f32 %v466, %v467
      %469 = vadd.xlane.f32.xlu0 %v468
      %v470 = vpop.xlane.xlu0 %469
      %v471 = vsel %vm465, %v470, 0.0
      %v472 = vrot.slane %v471, 4
      %v473 = vadd.f32 %v471, %v472
      %v474 = vrot.slane %v473, 2
      %v475 = vadd.f32 %v473, %v474
      %v476 = vrot.slane %v475, 1
      %v477 = vadd.f32 %v475, %v476
      %v478 = vmul.f32 %v461, %v461
      %v480 = vcombine.high %v478, %v478
      %v482 = vsel %vm465, %v478, 0.0
      %v483 = vsel %vm465, %v480, 0.0
      %v484 = vadd.f32 %v482, %v483
      %485 = vadd.xlane.f32.xlu0 %v484
      %v486 = vpop.xlane.xlu0 %485
      %v487 = vsel %vm465, %v486, 0.0
      %v488 = vrot.slane %v487, 4
      %v489 = vadd.f32 %v487, %v488
      %v490 = vrot.slane %v489, 2
      %v491 = vadd.f32 %v489, %v490
      %v492 = vrot.slane %v491, 1
      %v493 = vadd.f32 %v491, %v492
      %vm494 = vcmask 7168
      %v495 = vsel %vm494, %v477, %v493
      %vm496 = vcmask 8192
      %497 = vst.msk [vmem:[%s297] sm:$0x1] %vm496, %v495
      %p498 = scmp.lt.s32.totalorder %s19, 1
      %s499 = scalar_select %p498, %s19, 1
      %s500 = scalar_lea.vmem %s6, %s499
      %p501 = scmp.lt.s32.totalorder %s19, 1
      %s502 = scalar_select %p501, %s19, 1
      %s503 = scalar_lea.vmem %s7, %s502
      // Predicated region
      $region45: #{resblock_up_forward.3} parent=43 // pred_check
        %p504 = pneg %p173
      $region46: #{resblock_up_forward.3} parent=43 // pred_check_branch
        %506 = sbr.rel (%p504) target = $region48
      $region47: #{resblock_up_forward.3} parent=43 // pred_region
        _
      $region48: #{resblock_up_forward.3} parent=43 // pred_fallthru
        _
      // Predicated region
      $region49: #{resblock_up_forward.3} parent=43 // pred_check
        %p507 = pneg %p199
      $region50: #{resblock_up_forward.3} parent=43 // pred_check_branch
        %509 = sbr.rel (%p507) target = $region52
      $region51: #{resblock_up_forward.3} parent=43 // pred_region
        _
      $region52: #{resblock_up_forward.3} parent=43 // pred_fallthru
        _
    $region44: #{resblock_up_forward.3} parent=5 // pred_fallthru
      _
    %p510 = scmp.le.s32.totalorder 2, %s14
    // Predicated region
    $region53: #{resblock_up_forward.3} parent=5 // pred_check
      %p511 = pneg %p510
    $region54: #{resblock_up_forward.3} parent=5 // pred_check_branch
      %513 = sbr.rel (%p511) target = $region56
    $region55: #{resblock_up_forward.3} parent=5 // pred_region
      %s514 = ssub.s32 %s14, 2
      // Predicated region
      $region57: #{resblock_up_forward.3} parent=55 // pred_check
        %p515 = pneg %p179
      $region58: #{resblock_up_forward.3} parent=55 // pred_check_branch
        %517 = sbr.rel (%p515) target = $region60
      $region59: #{resblock_up_forward.3} parent=55 // pred_region
        %p518 = scmp.lt.s32.totalorder %s20, 1
        %s519 = scalar_select %p518, %s20, 1
        %s520 = scalar_lea.vmem %s6, %s519
      $region60: #{resblock_up_forward.3} parent=55 // pred_fallthru
        _
      // Predicated region
      $region61: #{resblock_up_forward.3} parent=55 // pred_check
        %p521 = pneg %p205
      $region62: #{resblock_up_forward.3} parent=55 // pred_check_branch
        %523 = sbr.rel (%p521) target = $region64
      $region63: #{resblock_up_forward.3} parent=55 // pred_region
        %p524 = scmp.lt.s32.totalorder %s20, 1
        %s525 = scalar_select %p524, %s20, 1
        %s526 = scalar_lea.vmem %s7, %s525
      $region64: #{resblock_up_forward.3} parent=55 // pred_fallthru
        _
    $region56: #{resblock_up_forward.3} parent=5 // pred_fallthru
      _
  $region6: #{resblock_up_forward.3} parent=0 // loop_footer
    %s18 = sadd.s32 1, %s14
  $region7: #{resblock_up_forward.3} parent=0 // loop_footer_branch
    %13 = sbr.rel target = $region3
  $region8: #{resblock_up_forward.3} parent=0 // loop_exit
    _

// kernel: resblock_up_forward.4
$region0: #{resblock_up_forward.4}
  #allocation0 [shape = 'u32[]', space=smem, size = 0x4, offset = 0x4, fixed_abs, tag = 'smem constant byte address 0x4 - core index']
  #allocation1 [shape = 'u32[144,128]{1,0:T(1,128)}', space=vmem, size = 0x12000, scoped, tag = 'internal scratch']
  #allocation2 [shape = 'bf16[2,4,512]{2,1,0:T(4,128)(2,1)}', space=vmem, size = 0x2000, scoped, tag = 'scratch operand']
  %s0 = inlined_call_operand.vmem [shape: f32[2], index: 0, kind: input, shape index: {}]
  %s1 = inlined_call_operand.vmem [shape: f32[2], index: 1, kind: input, shape index: {}]
  %s2 = inlined_call_operand.vmem [shape: f32[2,4,256], index: 2, kind: input, shape index: {}]
  %s3 = inlined_call_operand.vmem [shape: bf16[32,36], index: 3, kind: input, shape index: {}]
  %s4 = inlined_call_operand.vmem [shape: bf16[2,8,1024], index: 4, kind: output, shape index: {0}]
  %s5 = inlined_call_operand.vmem [shape: f32[1,1,2], index: 5, kind: output, shape index: {1}]
  %6 = xla_tuple %s4, %s5
  %s7 = sld [smem:[#allocation0]]
  $region42: #{resblock_up_forward.4} parent=0
    _
  %s9 = ssub.s32 1, %s7
  %s10 = scalar_select 0, %s9, %s7
  $region1: #{resblock_up_forward.4} parent=0
    #allocation3 [shape = 'u8[512]{0}', space=smem, size = 0x200, scoped, tag = 'input window, operand 0, single buffered']
    #allocation4 [shape = 's32[1]{0}', space=sflag, size = 0x4, scoped, tag = 'scoped memory for resblock_up_forward.4']
    #allocation5 [shape = 'u8[512]{0}', space=smem, size = 0x200, scoped, tag = 'input window, operand 1, single buffered']
    #allocation6 [shape = 's32[1]{0}', space=sflag, size = 0x4, scoped, tag = 'scoped memory for resblock_up_forward.4']
    %11 = vsyncpa [#allocation4], 0
    %12 = vsyncpa [#allocation6], 0
    // Predicated region
    $region2: #{resblock_up_forward.4} parent=1 // pred_check
      _
    $region3: #{resblock_up_forward.4} parent=1 // pred_check_branch
      %14 = sbr.rel (0) target = $region5
    $region4: #{resblock_up_forward.4} parent=1 // pred_region
      %s16 = ssub.s32 16, 16
      %17 = vsyncadd [#allocation4], %s16
      %s19 = sshll.u32 %s0, 4
      %s20 = int_to_ptr.vmem [resolvable:$true] %s19
      %22 = dma.vmem_to_smem %s20, 16, [#allocation3], [#allocation4]
    $region5: #{resblock_up_forward.4} parent=1 // pred_fallthru
      _
    // Predicated region
    $region6: #{resblock_up_forward.4} parent=1 // pred_check
      _
    $region7: #{resblock_up_forward.4} parent=1 // pred_check_branch
      %24 = sbr.rel (0) target = $region9
    $region8: #{resblock_up_forward.4} parent=1 // pred_region
      %s26 = ssub.s32 16, 16
      %27 = vsyncadd [#allocation6], %s26
      %s29 = sshll.u32 %s1, 4
      %s30 = int_to_ptr.vmem [resolvable:$true] %s29
      %32 = dma.vmem_to_smem %s30, 16, [#allocation5], [#allocation6]
    $region9: #{resblock_up_forward.4} parent=1 // pred_fallthru
      _
    // Predicated region
    $region10: #{resblock_up_forward.4} parent=1 // pred_check
      _
    $region11: #{resblock_up_forward.4} parent=1 // pred_check_branch
      %34 = sbr.rel (0) target = $region13
    $region12: #{resblock_up_forward.4} parent=1 // pred_region
      _
    $region13: #{resblock_up_forward.4} parent=1 // pred_fallthru
      _
    // Predicated region
    $region14: #{resblock_up_forward.4} parent=1 // pred_check
      _
    $region15: #{resblock_up_forward.4} parent=1 // pred_check_branch
      %36 = sbr.rel (0) target = $region17
    $region16: #{resblock_up_forward.4} parent=1 // pred_region
      _
    $region17: #{resblock_up_forward.4} parent=1 // pred_fallthru
      _
    // Predicated region
    $region18: #{resblock_up_forward.4} parent=1 // pred_check
      _
    $region19: #{resblock_up_forward.4} parent=1 // pred_check_branch
      %38 = sbr.rel (0) target = $region21
    $region20: #{resblock_up_forward.4} parent=1 // pred_region
      %39 = dma.done [#allocation4], 16
    $region21: #{resblock_up_forward.4} parent=1 // pred_fallthru
      _
    // Predicated region
    $region22: #{resblock_up_forward.4} parent=1 // pred_check
      _
    $region23: #{resblock_up_forward.4} parent=1 // pred_check_branch
      %41 = sbr.rel (0) target = $region25
    $region24: #{resblock_up_forward.4} parent=1 // pred_region
      %42 = dma.done [#allocation6], 16
    $region25: #{resblock_up_forward.4} parent=1 // pred_fallthru
      _
    %43 = sfence
    %s47 = smul.u32 0, 2
    %v48 = vld [vmem:[%s2] sm:$0xff]
    %s49 = sld [smem:[#allocation3 + %s47]]
    %v50 = vstv %s49
    %v51 = vmul.f32 %v48, %v50
    %s52 = sld [smem:[#allocation5 + %s47]]
    %v53 = vstv %s52
    %v54 = vadd.f32 %v51, %v53
    %v55 = vmax.f32 %v54, 0.0
    %56 = vst [vmem:[#allocation2] sm:$0x3] 0
    %v58 = vcombine.high %v55, %v55
    %v60 = vpack.c.bf16 %v55, %v55
    %v61 = vpack.c.bf16 %v58, %v58
    %v64 = vcombine.low %v60, %v61
    %v66 = vunpack.c.l.s4 1983009808
    %v67 = vunpack.c.0.s8 %v66
    %v68 = vlaneseq
    %v69 = vshrl.u32 %v68, 7
    %v70 = vsub.s32 %v67, %v69
    %v71 = vrot.slane %v64, %v70
    %73 = vst [vmem:[#allocation2 + $0x2] sm:$0xf] %v71
    %74 = vst [vmem:[#allocation2 + $0x6] sm:$0x3] 0
    %s75 = sadd.s32 %s47, 1
    %s76 = scalar_lea.vmem %s2, 8
    %v77 = vld [vmem:[%s76] sm:$0xff]
    %s78 = sld [smem:[#allocation3 + %s75]]
    %v79 = vstv %s78
    %v80 = vmul.f32 %v77, %v79
    %s81 = sld [smem:[#allocation5 + %s75]]
    %v82 = vstv %s81
    %v83 = vadd.f32 %v80, %v82
    %v84 = vmax.f32 %v83, 0.0
    %s85 = scalar_lea.vmem [#allocation2], 8
    %86 = vst [vmem:[%s85] sm:$0x3] 0
    %v88 = vcombine.high %v84, %v84
    %v90 = vpack.c.bf16 %v84, %v84
    %v91 = vpack.c.bf16 %v88, %v88
    %v94 = vcombine.low %v90, %v91
    %v96 = vunpack.c.l.s4 1983009808
    %v97 = vunpack.c.0.s8 %v96
    %v98 = vlaneseq
    %v99 = vshrl.u32 %v98, 7
    %v100 = vsub.s32 %v97, %v99
    %v101 = vrot.slane %v94, %v100
    %103 = vst [vmem:[%s85 + $0x2] sm:$0xf] %v101
    %104 = vst [vmem:[%s85 + $0x6] sm:$0x3] 0
    %v105 = vlaneseq
    %v106 = vand.u32 %v105, 127
    %v107 = vadd.s32 %v106, 128
    %v108 = vadd.s32 %v106, 256
    %v109 = vadd.s32 %v106, 384
    %vm110 = vcmp.lt.s32.totalorder %v106, 0
    %v111 = vsub.s32 0, %v106
    %v112 = vsel %vm110, %v111, %v106
    %v113 = vshrl.u32 %v112, 4
    %v114 = vand.u32 %v112, 15
    %v115 = vsub.s32 0, %v114
    %v116 = vsel %vm110, %v115, %v114
    %vm117 = vcmp.lt.s32.totalorder %v107, 0
    %v118 = vsub.s32 0, %v107
    %v119 = vsel %vm117, %v118, %v107
    %v120 = vshrl.u32 %v119, 4
    %v121 = vand.u32 %v119, 15
    %v122 = vsub.s32 0, %v121
    %v123 = vsel %vm117, %v122, %v121
    %vm124 = vcmp.lt.s32.totalorder %v108, 0
    %v125 = vsub.s32 0, %v108
    %v126 = vsel %vm124, %v125, %v108
    %v127 = vshrl.u32 %v126, 4
    %v128 = vand.u32 %v126, 15
    %v129 = vsub.s32 0, %v128
    %v130 = vsel %vm124, %v129, %v128
    %vm131 = vcmp.lt.s32.totalorder %v109, 0
    %v132 = vsub.s32 0, %v109
    %v133 = vsel %vm131, %v132, %v109
    %v134 = vshrl.u32 %v133, 4
    %v135 = vand.u32 %v133, 15
    %v136 = vsub.s32 0, %v135
    %v137 = vsel %vm131, %v136, %v135
    %vm138 = vcmp.ne.s32.totalorder %v116, 0
    %vm139 = vcmp.ne.s32.totalorder %v123, 0
    %vm140 = vcmp.ne.s32.totalorder %v130, 0
    %vm141 = vcmp.ne.s32.totalorder %v137, 0
    %vm142 = vcmp.lt.s32.totalorder %v116, 0
    %vm143 = vcmp.lt.s32.totalorder %v123, 0
    %vm144 = vcmp.lt.s32.totalorder %v130, 0
    %vm145 = vcmp.lt.s32.totalorder %v137, 0
    %vm146 = vmand %vm142, %vm138
    %vm147 = vmand %vm143, %vm139
    %vm148 = vmand %vm144, %vm140
    %vm149 = vmand %vm145, %vm141
    %v150 = vadd.s32 %v116, 16
    %v151 = vadd.s32 %v123, 16
    %v152 = vadd.s32 %v130, 16
    %v153 = vadd.s32 %v137, 16
    %v154 = vsel %vm146, %v150, %v116
    %v155 = vsel %vm147, %v151, %v123
    %v156 = vsel %vm148, %v152, %v130
    %v157 = vsel %vm149, %v153, %v137
    %vm158 = vcmp.ne.s32.totalorder %v154, 0
    %vm159 = vcmp.ne.s32.totalorder %v155, 0
    %vm160 = vcmp.ne.s32.totalorder %v156, 0
    %vm161 = vcmp.ne.s32.totalorder %v157, 0
    %vm162 = vcmp.ne.s32.totalorder %v154, 15
    %vm163 = vcmp.ne.s32.totalorder %v155, 15
    %vm164 = vcmp.ne.s32.totalorder %v156, 15
    %vm165 = vcmp.ne.s32.totalorder %v157, 15
    %v166 = vld [vmem:[#allocation2] sm:$0x3f]
    %v167 = vld [vmem:[%s85] sm:$0x3f]
    %v169 = vcombine.high %v166, %v166
    %v171 = vunpack.c.l.s4 1983009808
    %v172 = vunpack.c.0.s8 %v171
    %v173 = vlaneseq
    %v174 = vshrl.u32 %v173, 7
    %v175 = vsub.s32 %v172, %v174
    %v176 = vrot.slane %v166, %v175
    %v178 = vunpack.c.l.s4 1983009808
    %v179 = vunpack.c.0.s8 %v178
    %v180 = vlaneseq
    %v181 = vshrl.u32 %v180, 7
    %v182 = vsub.s32 %v179, %v181
    %v183 = vrot.slane %v169, %v182
    %v184 = vcombine.high %v176, %v176
    %185 = vrot.lane.b32.xlu0 %v176, 17
    %v186 = vpop.permute.xlu0 %185
    %187 = vrot.lane.b32.xlu0 %v184, 17
    %v188 = vpop.permute.xlu0 %187
    %189 = vrot.lane.b32.xlu0 %v183, 17
    %v190 = vpop.permute.xlu0 %189
    %vm191 = vcmask 138240
    %v192 = vsel %vm191, %v186, %v188
    %v193 = vsel %vm191, %v188, %v190
    %v197 = vcombine.high %v167, %v167
    %v199 = vunpack.c.l.s4 1983009808
    %v200 = vunpack.c.0.s8 %v199
    %v201 = vlaneseq
    %v202 = vshrl.u32 %v201, 7
    %v203 = vsub.s32 %v200, %v202
    %v204 = vrot.slane %v167, %v203
    %v206 = vunpack.c.l.s4 1983009808
    %v207 = vunpack.c.0.s8 %v206
    %v208 = vlaneseq
    %v209 = vshrl.u32 %v208, 7
    %v210 = vsub.s32 %v207, %v209
    %v211 = vrot.slane %v197, %v210
    %v212 = vcombine.high %v204, %v204
    %213 = vrot.lane.b32.xlu0 %v204, 17
    %v214 = vpop.permute.xlu0 %213
    %215 = vrot.lane.b32.xlu0 %v212, 17
    %v216 = vpop.permute.xlu0 %215
    %217 = vrot.lane.b32.xlu0 %v211, 17
    %v218 = vpop.permute.xlu0 %217
    %v219 = vsel %vm191, %v214, %v216
    %v220 = vsel %vm191, %v216, %v218
    %vm223 = vmpackc.low %vm159, %vm158
    %vm224 = vmpackc.low %vm161, %vm160
    %v225 = vsel %vm223, 65537, 0
    %v226 = vsel %vm224, 65537, 0
    %v227 = vlaneseq
    %v228 = vshrl.u32 %v227, 7
    %v229 = vsub.s32 0, %v228
    %v230 = vrot.slane %v225, %v229
    %v231 = vlaneseq
    %v232 = vshrl.u32 %v231, 7
    %v233 = vsub.s32 4, %v232
    %v234 = vrot.slane %v225, %v233
    %v235 = vlaneseq
    %v236 = vshrl.u32 %v235, 7
    %v237 = vsub.s32 0, %v236
    %v238 = vrot.slane %v226, %v237
    %v239 = vlaneseq
    %v240 = vshrl.u32 %v239, 7
    %v241 = vsub.s32 4, %v240
    %v242 = vrot.slane %v226, %v241
    %vm243 = vcmp.ne.s16.totalorder %v230, 0
    %vm244 = vcmp.ne.s16.totalorder %v234, 0
    %vm245 = vcmp.ne.s16.totalorder %v238, 0
    %vm246 = vcmp.ne.s16.totalorder %v242, 0
    %v247 = vsel %vm243, %v192, 0
    %v248 = vsel %vm244, %v193, 0
    %v249 = vsel %vm245, %v219, 0
    %v250 = vsel %vm246, %v220, 0
    %251 = vrot.lane.b32.xlu0 %v176, 16
    %v252 = vpop.permute.xlu0 %251
    %253 = vrot.lane.b32.xlu0 %v184, 16
    %v254 = vpop.permute.xlu0 %253
    %255 = vrot.lane.b32.xlu0 %v183, 16
    %v256 = vpop.permute.xlu0 %255
    %vm257 = vcmask 130048
    %v258 = vsel %vm257, %v252, %v254
    %v259 = vsel %vm257, %v254, %v256
    %260 = vrot.lane.b32.xlu0 %v204, 16
    %v261 = vpop.permute.xlu0 %260
    %262 = vrot.lane.b32.xlu0 %v212, 16
    %v263 = vpop.permute.xlu0 %262
    %264 = vrot.lane.b32.xlu0 %v211, 16
    %v265 = vpop.permute.xlu0 %264
    %v266 = vsel %vm257, %v261, %v263
    %v267 = vsel %vm257, %v263, %v265
    %268 = vrot.lane.b32.xlu0 %v176, 15
    %v269 = vpop.permute.xlu0 %268
    %270 = vrot.lane.b32.xlu0 %v184, 15
    %v271 = vpop.permute.xlu0 %270
    %272 = vrot.lane.b32.xlu0 %v183, 15
    %v273 = vpop.permute.xlu0 %272
    %vm274 = vcmask 121856
    %v275 = vsel %vm274, %v269, %v271
    %v276 = vsel %vm274, %v271, %v273
    %279 = vrot.lane.b32.xlu0 %v204, 15
    %v280 = vpop.permute.xlu0 %279
    %281 = vrot.lane.b32.xlu0 %v212, 15
    %v282 = vpop.permute.xlu0 %281
    %283 = vrot.lane.b32.xlu0 %v211, 15
    %v284 = vpop.permute.xlu0 %283
    %v285 = vsel %vm274, %v280, %v282
    %v286 = vsel %vm274, %v282, %v284
    %vm289 = vmpackc.low %vm163, %vm162
    %vm290 = vmpackc.low %vm165, %vm164
    %v291 = vsel %vm289, 65537, 0
    %v292 = vsel %vm290, 65537, 0
    %v293 = vlaneseq
    %v294 = vshrl.u32 %v293, 7
    %v295 = vsub.s32 0, %v294
    %v296 = vrot.slane %v291, %v295
    %v297 = vlaneseq
    %v298 = vshrl.u32 %v297, 7
    %v299 = vsub.s32 4, %v298
    %v300 = vrot.slane %v291, %v299
    %v301 = vlaneseq
    %v302 = vshrl.u32 %v301, 7
    %v303 = vsub.s32 0, %v302
    %v304 = vrot.slane %v292, %v303
    %v305 = vlaneseq
    %v306 = vshrl.u32 %v305, 7
    %v307 = vsub.s32 4, %v306
    %v308 = vrot.slane %v292, %v307
    %vm309 = vcmp.ne.s16.totalorder %v296, 0
    %vm310 = vcmp.ne.s16.totalorder %v300, 0
    %vm311 = vcmp.ne.s16.totalorder %v304, 0
    %vm312 = vcmp.ne.s16.totalorder %v308, 0
    %v313 = vsel %vm309, %v275, 0
    %v314 = vsel %vm310, %v276, 0
    %v315 = vsel %vm311, %v285, 0
    %v316 = vsel %vm312, %v286, 0
    %317 = vrot.lane.b32.xlu0 %v176, 1
    %v318 = vpop.permute.xlu0 %317
    %319 = vrot.lane.b32.xlu0 %v184, 1
    %v320 = vpop.permute.xlu0 %319
    %321 = vrot.lane.b32.xlu0 %v183, 1
    %v322 = vpop.permute.xlu0 %321
    %vm323 = vcmask 7168
    %v324 = vsel %vm323, %v318, %v320
    %v325 = vsel %vm323, %v320, %v322
    %328 = vrot.lane.b32.xlu0 %v204, 1
    %v329 = vpop.permute.xlu0 %328
    %330 = vrot.lane.b32.xlu0 %v212, 1
    %v331 = vpop.permute.xlu0 %330
    %332 = vrot.lane.b32.xlu0 %v211, 1
    %v333 = vpop.permute.xlu0 %332
    %v334 = vsel %vm323, %v329, %v331
    %v335 = vsel %vm323, %v331, %v333
    %v338 = vsel %vm243, %v324, 0
    %v339 = vsel %vm244, %v325, 0
    %v340 = vsel %vm245, %v334, 0
    %v341 = vsel %vm246, %v335, 0
    %v342 = vld [vmem:[#allocation2 + $0x2] sm:$0xf]
    %v343 = vld [vmem:[%s85 + $0x2] sm:$0xf]
    %v346 = vunpack.c.l.s4 1983009808
    %v347 = vunpack.c.0.s8 %v346
    %v348 = vlaneseq
    %v349 = vshrl.u32 %v348, 7
    %v350 = vsub.s32 %v347, %v349
    %v351 = vrot.slane %v342, %v350
    %v352 = vcombine.high %v351, %v351
    %v355 = vunpack.c.l.s4 1983009808
    %v356 = vunpack.c.0.s8 %v355
    %v357 = vlaneseq
    %v358 = vshrl.u32 %v357, 7
    %v359 = vsub.s32 %v356, %v358
    %v360 = vrot.slane %v343, %v359
    %v361 = vcombine.high %v360, %v360
    %v362 = vld [vmem:[#allocation2 + $0x2] sm:$0x3f]
    %v363 = vld [vmem:[%s85 + $0x2] sm:$0x3f]
    %v365 = vcombine.high %v362, %v362
    %v367 = vunpack.c.l.s4 1983009808
    %v368 = vunpack.c.0.s8 %v367
    %v369 = vlaneseq
    %v370 = vshrl.u32 %v369, 7
    %v371 = vsub.s32 %v368, %v370
    %v372 = vrot.slane %v362, %v371
    %v374 = vunpack.c.l.s4 1983009808
    %v375 = vunpack.c.0.s8 %v374
    %v376 = vlaneseq
    %v377 = vshrl.u32 %v376, 7
    %v378 = vsub.s32 %v375, %v377
    %v379 = vrot.slane %v365, %v378
    %v380 = vcombine.high %v372, %v372
    %381 = vrot.lane.b32.xlu0 %v372, 127
    %v382 = vpop.permute.xlu0 %381
    %383 = vrot.lane.b32.xlu0 %v380, 127
    %v384 = vpop.permute.xlu0 %383
    %385 = vrot.lane.b32.xlu0 %v379, 127
    %v386 = vpop.permute.xlu0 %385
    %vm387 = vcmask 1039360
    %v388 = vsel %vm387, %v382, %v384
    %v389 = vsel %vm387, %v384, %v386
    %v393 = vcombine.high %v363, %v363
    %v395 = vunpack.c.l.s4 1983009808
    %v396 = vunpack.c.0.s8 %v395
    %v397 = vlaneseq
    %v398 = vshrl.u32 %v397, 7
    %v399 = vsub.s32 %v396, %v398
    %v400 = vrot.slane %v363, %v399
    %v402 = vunpack.c.l.s4 1983009808
    %v403 = vunpack.c.0.s8 %v402
    %v404 = vlaneseq
    %v405 = vshrl.u32 %v404, 7
    %v406 = vsub.s32 %v403, %v405
    %v407 = vrot.slane %v393, %v406
    %v408 = vcombine.high %v400, %v400
    %409 = vrot.lane.b32.xlu0 %v400, 127
    %v410 = vpop.permute.xlu0 %409
    %411 = vrot.lane.b32.xlu0 %v408, 127
    %v412 = vpop.permute.xlu0 %411
    %413 = vrot.lane.b32.xlu0 %v407, 127
    %v414 = vpop.permute.xlu0 %413
    %v415 = vsel %vm387, %v410, %v412
    %v416 = vsel %vm387, %v412, %v414
    %v419 = vsel %vm309, %v388, 0
    %v420 = vsel %vm310, %v389, 0
    %v421 = vsel %vm311, %v415, 0
    %v422 = vsel %vm312, %v416, 0
    %423 = vrot.lane.b32.xlu0 %v372, 113
    %v424 = vpop.permute.xlu0 %423
    %425 = vrot.lane.b32.xlu0 %v380, 113
    %v426 = vpop.permute.xlu0 %425
    %427 = vrot.lane.b32.xlu0 %v379, 113
    %v428 = vpop.permute.xlu0 %427
    %vm429 = vcmask 924672
    %v430 = vsel %vm429, %v424, %v426
    %v431 = vsel %vm429, %v426, %v428
    %434 = vrot.lane.b32.xlu0 %v400, 113
    %v435 = vpop.permute.xlu0 %434
    %436 = vrot.lane.b32.xlu0 %v408, 113
    %v437 = vpop.permute.xlu0 %436
    %438 = vrot.lane.b32.xlu0 %v407, 113
    %v439 = vpop.permute.xlu0 %438
    %v440 = vsel %vm429, %v435, %v437
    %v441 = vsel %vm429, %v437, %v439
    %v444 = vsel %vm243, %v430, 0
    %v445 = vsel %vm244, %v431, 0
    %v446 = vsel %vm245, %v440, 0
    %v447 = vsel %vm246, %v441, 0
    %448 = vrot.lane.b32.xlu0 %v372, 112
    %v449 = vpop.permute.xlu0 %448
    %450 = vrot.lane.b32.xlu0 %v380, 112
    %v451 = vpop.permute.xlu0 %450
    %452 = vrot.lane.b32.xlu0 %v379, 112
    %v453 = vpop.permute.xlu0 %452
    %vm454 = vcmask 916480
    %v455 = vsel %vm454, %v449, %v451
    %v456 = vsel %vm454, %v451, %v453
    %457 = vrot.lane.b32.xlu0 %v400, 112
    %v458 = vpop.permute.xlu0 %457
    %459 = vrot.lane.b32.xlu0 %v408, 112
    %v460 = vpop.permute.xlu0 %459
    %461 = vrot.lane.b32.xlu0 %v407, 112
    %v462 = vpop.permute.xlu0 %461
    %v463 = vsel %vm454, %v458, %v460
    %v464 = vsel %vm454, %v460, %v462
    %465 = vrot.lane.b32.xlu0 %v372, 111
    %v466 = vpop.permute.xlu0 %465
    %467 = vrot.lane.b32.xlu0 %v380, 111
    %v468 = vpop.permute.xlu0 %467
    %469 = vrot.lane.b32.xlu0 %v379, 111
    %v470 = vpop.permute.xlu0 %469
    %vm471 = vcmask 908288
    %v472 = vsel %vm471, %v466, %v468
    %v473 = vsel %vm471, %v468, %v470
    %476 = vrot.lane.b32.xlu0 %v400, 111
    %v477 = vpop.permute.xlu0 %476
    %478 = vrot.lane.b32.xlu0 %v408, 111
    %v479 = vpop.permute.xlu0 %478
    %480 = vrot.lane.b32.xlu0 %v407, 111
    %v481 = vpop.permute.xlu0 %480
    %v482 = vsel %vm471, %v477, %v479
    %v483 = vsel %vm471, %v479, %v481
    %v486 = vsel %vm309, %v472, 0
    %v487 = vsel %vm310, %v473, 0
    %v488 = vsel %vm311, %v482, 0
    %v489 = vsel %vm312, %v483, 0
    %v490 = vrot.slane %v258, 6
    %v491 = vrot.slane %v259, 6
    %v492 = vrot.slane %v266, 6
    %v493 = vrot.slane %v267, 6
    %v498 = vrot.slane %v313, 4
    %v499 = vrot.slane %v314, 4
    %v500 = vrot.slane %v315, 4
    %v501 = vrot.slane %v316, 4
    %v506 = vrot.slane %v338, 2
    %v507 = vrot.slane %v339, 2
    %v508 = vrot.slane %v340, 2
    %v509 = vrot.slane %v341, 2
    %v514 = vrot.slane %v419, 6
    %v515 = vrot.slane %v420, 6
    %v516 = vrot.slane %v421, 6
    %v517 = vrot.slane %v422, 6
    %v522 = vrot.slane %v444, 4
    %v523 = vrot.slane %v445, 4
    %v524 = vrot.slane %v446, 4
    %v525 = vrot.slane %v447, 4
    %v526 = vrot.slane %v455, 2
    %v527 = vrot.slane %v456, 2
    %v528 = vrot.slane %v463, 2
    %v529 = vrot.slane %v464, 2
    %vm530 = vcmask 1041408
    %v533 = vsel %vm530, %v247, %v490
    %v536 = vsel %vm530, %v248, %v491
    %v539 = vsel %vm530, %v249, %v492
    %v542 = vsel %vm530, %v250, %v493
    %vm543 = vcmask 1043456
    %v545 = vsel %vm543, %v533, %v498
    %v547 = vsel %vm543, %v536, %v499
    %v549 = vsel %vm543, %v539, %v500
    %v551 = vsel %vm543, %v542, %v501
    %vm552 = vcmask 1045504
    %v554 = vsel %vm552, %v545, %v506
    %v557 = vsel %vm552, %v547, %v507
    %v560 = vsel %vm552, %v549, %v508
    %v563 = vsel %vm552, %v551, %v509
    %v567 = vsel %vm530, %v351, %v514
    %v570 = vsel %vm530, %v352, %v515
    %v573 = vsel %vm530, %v360, %v516
    %v576 = vsel %vm530, %v361, %v517
    %v578 = vsel %vm543, %v567, %v522
    %v580 = vsel %vm543, %v570, %v523
    %v582 = vsel %vm543, %v573, %v524
    %v584 = vsel %vm543, %v576, %v525
    %v586 = vsel %vm552, %v578, %v526
    %v589 = vsel %vm552, %v580, %v527
    %v592 = vsel %vm552, %v582, %v528
    %v595 = vsel %vm552, %v584, %v529
    %v597 = vld [vmem:[%s3] sm:$0xf]
    %v598 = vld [vmem:[%s3 + $0x4] sm:$0xf]
    %v599 = vld [vmem:[%s3 + $0x8] sm:$0xf]
    %v600 = vld [vmem:[%s3 + $0xc] sm:$0xf]
    %v605 = vunpack.c.l.b16 %v597
    %v606 = vunpack.c.l.b16 %v598
    %v607 = vunpack.c.l.b16 %v599
    %v608 = vunpack.c.l.b16 %v600
    %v609 = vpack.c.b16 %v606, %v605
    %v610 = vpack.c.b16 %v608, %v607
    %vm611 = vcmask 293888
    %v613 = vsel %vm611, %v609, 0
    %v616 = vsel %vm611, %v610, 0
    %v619 = vsel %vm530, %v486, 0
    %v622 = vsel %vm530, %v487, 0
    %v625 = vsel %vm530, %v488, 0
    %v628 = vsel %vm530, %v489, 0
    %630 = vmatprep.subr.bf16.mxu0 0
    %631 = vmatpush1.bf16.msra.mxu0 0
    %632 = vmatprep.subr.bf16.mxu0 0
    %633 = vmatpush1.bf16.msra.mxu0 0
    %634 = vmatprep.subr.bf16.mxu0 0
    %635 = vmatpush1.bf16.msra.mxu0 0
    %636 = vmatprep.subr.bf16.mxu0 0
    %637 = vmatpush1.bf16.msra.mxu0 0
    %638 = vmatprep.subr.bf16.mxu0 0
    %639 = vmatpush1.bf16.msra.mxu0 0
    %640 = vmatprep.subr.bf16.mxu0 %v622
    %641 = vmatpush1.bf16.msra.mxu0 %v619
    %642 = vmatprep.subr.bf16.mxu0 %v589
    %643 = vmatpush1.bf16.msra.mxu0 %v586
    %644 = vmatprep.subr.bf16.mxu0 %v557
    %645 = vmatpush1.bf16.msra.mxu0 %v554
    %646 = vmatprep.subr.bf16.mxu0 0
    %647 = vmatpush2.bf16.msra.mxu0 0
    %648 = vmatprep.subr.bf16.mxu0 0
    %649 = vmatpush2.bf16.msra.mxu0 0
    %650 = vmatprep.subr.bf16.mxu0 0
    %651 = vmatpush2.bf16.msra.mxu0 0
    %652 = vmatprep.subr.bf16.mxu0 0
    %653 = vmatpush2.bf16.msra.mxu0 0
    %654 = vmatprep.subr.bf16.mxu0 0
    %655 = vmatpush2.bf16.msra.mxu0 0
    %656 = vmatprep.subr.bf16.mxu0 0
    %657 = vmatpush2.bf16.msra.mxu0 0
    %658 = vmatprep.subr.bf16.mxu0 0
    %659 = vmatpush2.bf16.msra.mxu0 0
    %660 = vmatprep.subr.bf16.mxu0 0
    %661 = vmatpush2.bf16.msra.mxu0 0
    %662 = vmatprep.mubr.bf16.mxu0 0
    %663 = vmatmul.mubr.bf16.gmra.mxu0 %v613
    %v664 = vpop.f32.mrf.mxu0
    %v665 = vadd.f32 0.0, %v664
    %v666 = vpop.f32.mrf.mxu0
    %v667 = vadd.f32 0.0, %v666
    %v668 = vpop.f32.mrf.mxu0
    %v669 = vadd.f32 0.0, %v668
    %v670 = vpop.f32.mrf.mxu0
    %v671 = vadd.f32 0.0, %v670
    %672 = vmatprep.mubr.bf16.mxu0 0
    %673 = vmatmul.mubr.bf16.gmra.mxu0 %v616
    %v674 = vpop.f32.mrf.mxu0
    %v675 = vadd.f32 0.0, %v674
    %v676 = vpop.f32.mrf.mxu0
    %v677 = vadd.f32 0.0, %v676
    %v678 = vpop.f32.mrf.mxu0
    %v679 = vadd.f32 0.0, %v678
    %v680 = vpop.f32.mrf.mxu0
    %v681 = vadd.f32 0.0, %v680
    %682 = vdwg.mxu0
    %683 = vmatprep.subr.bf16.mxu0 0
    %684 = vmatpush1.bf16.msra.mxu0 0
    %685 = vmatprep.subr.bf16.mxu0 0
    %686 = vmatpush1.bf16.msra.mxu0 0
    %687 = vmatprep.subr.bf16.mxu0 0
    %688 = vmatpush1.bf16.msra.mxu0 0
    %689 = vmatprep.subr.bf16.mxu0 0
    %690 = vmatpush1.bf16.msra.mxu0 0
    %691 = vmatprep.subr.bf16.mxu0 0
    %692 = vmatpush1.bf16.msra.mxu0 0
    %693 = vmatprep.subr.bf16.mxu0 %v628
    %694 = vmatpush1.bf16.msra.mxu0 %v625
    %695 = vmatprep.subr.bf16.mxu0 %v595
    %696 = vmatpush1.bf16.msra.mxu0 %v592
    %697 = vmatprep.subr.bf16.mxu0 %v563
    %698 = vmatpush1.bf16.msra.mxu0 %v560
    %699 = vmatprep.subr.bf16.mxu0 0
    %700 = vmatpush2.bf16.msra.mxu0 0
    %701 = vmatprep.subr.bf16.mxu0 0
    %702 = vmatpush2.bf16.msra.mxu0 0
    %703 = vmatprep.subr.bf16.mxu0 0
    %704 = vmatpush2.bf16.msra.mxu0 0
    %705 = vmatprep.subr.bf16.mxu0 0
    %706 = vmatpush2.bf16.msra.mxu0 0
    %707 = vmatprep.subr.bf16.mxu0 0
    %708 = vmatpush2.bf16.msra.mxu0 0
    %709 = vmatprep.subr.bf16.mxu0 0
    %710 = vmatpush2.bf16.msra.mxu0 0
    %711 = vmatprep.subr.bf16.mxu0 0
    %712 = vmatpush2.bf16.msra.mxu0 0
    %713 = vmatprep.subr.bf16.mxu0 0
    %714 = vmatpush2.bf16.msra.mxu0 0
    %715 = vmatprep.mubr.bf16.mxu0 0
    %716 = vmatmul.mubr.bf16.gmra.mxu0 %v613
    %v717 = vpop.f32.mrf.mxu0
    %v718 = vadd.f32 0.0, %v717
    %v719 = vpop.f32.mrf.mxu0
    %v720 = vadd.f32 0.0, %v719
    %v721 = vpop.f32.mrf.mxu0
    %v722 = vadd.f32 0.0, %v721
    %v723 = vpop.f32.mrf.mxu0
    %v724 = vadd.f32 0.0, %v723
    %725 = vmatprep.mubr.bf16.mxu0 0
    %726 = vmatmul.mubr.bf16.gmra.mxu0 %v616
    %v727 = vpop.f32.mrf.mxu0
    %v728 = vadd.f32 0.0, %v727
    %v729 = vpop.f32.mrf.mxu0
    %v730 = vadd.f32 0.0, %v729
    %v731 = vpop.f32.mrf.mxu0
    %v732 = vadd.f32 0.0, %v731
    %v733 = vpop.f32.mrf.mxu0
    %v734 = vadd.f32 0.0, %v733
    %735 = vdwg.mxu0
    %v736 = vadd.f32 %v665, %v667
    %v737 = vadd.f32 %v736, %v718
    %v738 = vadd.f32 %v737, %v720
    %739 = vadd.xlane.f32.xlu0 %v738
    %v740 = vpop.xlane.xlu0 %739
    %v741 = vadd.f32 %v669, %v671
    %v742 = vadd.f32 %v741, %v722
    %v743 = vadd.f32 %v742, %v724
    %744 = vadd.xlane.f32.xlu0 %v743
    %v745 = vpop.xlane.xlu0 %744
    %v746 = vadd.f32 %v675, %v677
    %v747 = vadd.f32 %v746, %v728
    %v748 = vadd.f32 %v747, %v730
    %749 = vadd.xlane.f32.xlu0 %v748
    %v750 = vpop.xlane.xlu0 %749
    %v751 = vadd.f32 %v679, %v681
    %v752 = vadd.f32 %v751, %v732
    %v753 = vadd.f32 %v752, %v734
    %754 = vadd.xlane.f32.xlu0 %v753
    %v755 = vpop.xlane.xlu0 %754
    %v756 = vadd.f32 %v740, %v745
    %v757 = vadd.f32 %v756, %v750
    %v758 = vadd.f32 %v757, %v755
    %v759 = vrot.slane %v758, 4
    %v760 = vadd.f32 %v758, %v759
    %v761 = vrot.slane %v760, 2
    %v762 = vadd.f32 %v760, %v761
    %v763 = vrot.slane %v762, 1
    %v764 = vadd.f32 %v762, %v763
    %v765 = vmul.f32 %v665, %v665
    %v766 = vmul.f32 %v667, %v667
    %v767 = vmul.f32 %v718, %v718
    %v768 = vmul.f32 %v720, %v720
    %v769 = vmul.f32 %v669, %v669
    %v770 = vmul.f32 %v671, %v671
    %v771 = vmul.f32 %v722, %v722
    %v772 = vmul.f32 %v724, %v724
    %v773 = vmul.f32 %v675, %v675
    %v774 = vmul.f32 %v677, %v677
    %v775 = vmul.f32 %v728, %v728
    %v776 = vmul.f32 %v730, %v730
    %v777 = vmul.f32 %v679, %v679
    %v778 = vmul.f32 %v681, %v681
    %v779 = vmul.f32 %v732, %v732
    %v780 = vmul.f32 %v734, %v734
    %v781 = vadd.f32 %v765, %v766
    %v782 = vadd.f32 %v781, %v767
    %v783 = vadd.f32 %v782, %v768
    %784 = vadd.xlane.f32.xlu0 %v783
    %v785 = vpop.xlane.xlu0 %784
    %v786 = vadd.f32 %v769, %v770
    %v787 = vadd.f32 %v786, %v771
    %v788 = vadd.f32 %v787, %v772
    %789 = vadd.xlane.f32.xlu0 %v788
    %v790 = vpop.xlane.xlu0 %789
    %v791 = vadd.f32 %v773, %v774
    %v792 = vadd.f32 %v791, %v775
    %v793 = vadd.f32 %v792, %v776
    %794 = vadd.xlane.f32.xlu0 %v793
    %v795 = vpop.xlane.xlu0 %794
    %v796 = vadd.f32 %v777, %v778
    %v797 = vadd.f32 %v796, %v779
    %v798 = vadd.f32 %v797, %v780
    %799 = vadd.xlane.f32.xlu0 %v798
    %v800 = vpop.xlane.xlu0 %799
    %v801 = vadd.f32 %v785, %v790
    %v802 = vadd.f32 %v801, %v795
    %v803 = vadd.f32 %v802, %v800
    %v804 = vrot.slane %v803, 4
    %v805 = vadd.f32 %v803, %v804
    %v806 = vrot.slane %v805, 2
    %v807 = vadd.f32 %v805, %v806
    %v808 = vrot.slane %v807, 1
    %v809 = vadd.f32 %v807, %v808
    %vm810 = vcmask 7168
    %v811 = vsel %vm810, %v764, %v809
    %vm812 = vcmask 8192
    %813 = vst.msk [vmem:[%s5] sm:$0x1] %vm812, %v811
    %v814 = vpack.c.bf16 %v669, %v665
    %v815 = vpack.c.bf16 %v671, %v667
    %v816 = vpack.c.bf16 %v722, %v718
    %v817 = vpack.c.bf16 %v724, %v720
    %v818 = vpack.c.bf16 %v679, %v675
    %v819 = vpack.c.bf16 %v681, %v677
    %v820 = vpack.c.bf16 %v732, %v728
    %v821 = vpack.c.bf16 %v734, %v730
    %v824 = vunpack.c.l.b16 %v814
    %v825 = vunpack.c.l.b16 %v815
    %v826 = vpack.c.b16 %v825, %v824
    %828 = vst [vmem:[%s4] sm:$0xff] %v826
    %v831 = vunpack.c.l.b16 %v816
    %v832 = vunpack.c.l.b16 %v817
    %v833 = vpack.c.b16 %v832, %v831
    %s835 = scalar_lea.vmem %s4, 32
    %836 = vst [vmem:[%s835] sm:$0xff] %v833
    %v837 = vunpack.c.h.b16 %v814
    %v838 = vunpack.c.h.b16 %v815
    %v839 = vpack.c.b16 %v838, %v837
    %841 = vst [vmem:[%s4 + $0x8] sm:$0xff] %v839
    %v842 = vunpack.c.h.b16 %v816
    %v843 = vunpack.c.h.b16 %v817
    %v844 = vpack.c.b16 %v843, %v842
    %846 = vst [vmem:[%s835 + $0x8] sm:$0xff] %v844
    %v849 = vunpack.c.l.b16 %v818
    %v850 = vunpack.c.l.b16 %v819
    %v851 = vpack.c.b16 %v850, %v849
    %853 = vst [vmem:[%s4 + $0x10] sm:$0xff] %v851
    %v856 = vunpack.c.l.b16 %v820
    %v857 = vunpack.c.l.b16 %v821
    %v858 = vpack.c.b16 %v857, %v856
    %860 = vst [vmem:[%s835 + $0x10] sm:$0xff] %v858
    %v861 = vunpack.c.h.b16 %v818
    %v862 = vunpack.c.h.b16 %v819
    %v863 = vpack.c.b16 %v862, %v861
    %865 = vst [vmem:[%s4 + $0x18] sm:$0xff] %v863
    %v866 = vunpack.c.h.b16 %v820
    %v867 = vunpack.c.h.b16 %v821
    %v868 = vpack.c.b16 %v867, %v866
    %870 = vst [vmem:[%s835 + $0x18] sm:$0xff] %v868
    // Predicated region
    $region26: #{resblock_up_forward.4} parent=1 // pred_check
      _
    $region27: #{resblock_up_forward.4} parent=1 // pred_check_branch
      %872 = sbr.rel (0) target = $region29
    $region28: #{resblock_up_forward.4} parent=1 // pred_region
      _
    $region29: #{resblock_up_forward.4} parent=1 // pred_fallthru
      _
    // Predicated region
    $region30: #{resblock_up_forward.4} parent=1 // pred_check
      _
    $region31: #{resblock_up_forward.4} parent=1 // pred_check_branch
      %874 = sbr.rel (0) target = $region33
    $region32: #{resblock_up_forward.4} parent=1 // pred_region
      _
    $region33: #{resblock_up_forward.4} parent=1 // pred_fallthru
      _
    // Predicated region
    $region34: #{resblock_up_forward.4} parent=1 // pred_check
      _
    $region35: #{resblock_up_forward.4} parent=1 // pred_check_branch
      %876 = sbr.rel (0) target = $region37
    $region36: #{resblock_up_forward.4} parent=1 // pred_region
      _
    $region37: #{resblock_up_forward.4} parent=1 // pred_fallthru
      _
    // Predicated region
    $region38: #{resblock_up_forward.4} parent=1 // pred_check
      _
    $region39: #{resblock_up_forward.4} parent=1 // pred_check_branch
      %878 = sbr.rel (0) target = $region41
    $region40: #{resblock_up_forward.4} parent=1 // pred_region
      _
    $region41: #{resblock_up_forward.4} parent=1 // pred_fallthru
      _
    %879 = vsyncpa [#allocation4], 1
    %880 = vsyncpa [#allocation6], 1

// kernel: resblock_up_forward.5
$region0: #{resblock_up_forward.5}
  #allocation0 [shape = 'u32[]', space=smem, size = 0x4, offset = 0x4, fixed_abs, tag = 'smem constant byte address 0x4 - core index']
  #allocation1 [shape = 'u32[144,128]{1,0:T(1,128)}', space=vmem, size = 0x12000, scoped, tag = 'internal scratch']
  #allocation2 [shape = 'bf16[8,8,512]{2,1,0:T(8,128)(2,1)}', space=vmem, size = 0x10000, scoped, tag = 'scratch operand']
  %s0 = inlined_call_operand.vmem [shape: f32[2], index: 0, kind: input, shape index: {}]
  %s1 = inlined_call_operand.vmem [shape: f32[2], index: 1, kind: input, shape index: {}]
  %s2 = inlined_call_operand.vmem [shape: bf16[2,8,1024], index: 2, kind: input, shape index: {}]
  %s3 = inlined_call_operand.vmem [shape: bf16[2,4,256], index: 3, kind: input, shape index: {}]
  %s4 = inlined_call_operand.vmem [shape: bf16[8,72], index: 4, kind: input, shape index: {}]
  %s5 = inlined_call_operand.vmem [shape: bf16[8,4], index: 5, kind: input, shape index: {}]
  %s6 = inlined_call_operand.vmem [shape: f32[8,1], index: 6, kind: input, shape index: {}]
  %s7 = inlined_call_operand.vmem [shape: bf16[2,8,1024], index: 7, kind: output, shape index: {}]
  %s8 = sld [smem:[#allocation0]]
  $region46: #{resblock_up_forward.5} parent=0
    _
  %s10 = ssub.s32 1, %s8
  %s11 = scalar_select 0, %s10, %s8
  $region1: #{resblock_up_forward.5} parent=0
    #allocation3 [shape = 'u8[512]{0}', space=smem, size = 0x200, scoped, tag = 'input window, operand 0, single buffered']
    #allocation4 [shape = 's32[1]{0}', space=sflag, size = 0x4, scoped, tag = 'scoped memory for resblock_up_forward.5']
    #allocation5 [shape = 'u8[512]{0}', space=smem, size = 0x200, scoped, tag = 'input window, operand 1, single buffered']
    #allocation6 [shape = 's32[1]{0}', space=sflag, size = 0x4, scoped, tag = 'scoped memory for resblock_up_forward.5']
    %12 = vsyncpa [#allocation4], 0
    %13 = vsyncpa [#allocation6], 0
    // Predicated region
    $region2: #{resblock_up_forward.5} parent=1 // pred_check
      _
    $region3: #{resblock_up_forward.5} parent=1 // pred_check_branch
      %15 = sbr.rel (0) target = $region5
    $region4: #{resblock_up_forward.5} parent=1 // pred_region
      %s17 = ssub.s32 16, 16
      %18 = vsyncadd [#allocation4], %s17
      %s20 = sshll.u32 %s0, 4
      %s21 = int_to_ptr.vmem [resolvable:$true] %s20
      %23 = dma.vmem_to_smem %s21, 16, [#allocation3], [#allocation4]
    $region5: #{resblock_up_forward.5} parent=1 // pred_fallthru
      _
    // Predicated region
    $region6: #{resblock_up_forward.5} parent=1 // pred_check
      _
    $region7: #{resblock_up_forward.5} parent=1 // pred_check_branch
      %25 = sbr.rel (0) target = $region9
    $region8: #{resblock_up_forward.5} parent=1 // pred_region
      %s27 = ssub.s32 16, 16
      %28 = vsyncadd [#allocation6], %s27
      %s30 = sshll.u32 %s1, 4
      %s31 = int_to_ptr.vmem [resolvable:$true] %s30
      %33 = dma.vmem_to_smem %s31, 16, [#allocation5], [#allocation6]
    $region9: #{resblock_up_forward.5} parent=1 // pred_fallthru
      _
    // Predicated region
    $region10: #{resblock_up_forward.5} parent=1 // pred_check
      _
    $region11: #{resblock_up_forward.5} parent=1 // pred_check_branch
      %35 = sbr.rel (0) target = $region13
    $region12: #{resblock_up_forward.5} parent=1 // pred_region
      _
    $region13: #{resblock_up_forward.5} parent=1 // pred_fallthru
      _
    // Predicated region
    $region14: #{resblock_up_forward.5} parent=1 // pred_check
      _
    $region15: #{resblock_up_forward.5} parent=1 // pred_check_branch
      %37 = sbr.rel (0) target = $region17
    $region16: #{resblock_up_forward.5} parent=1 // pred_region
      _
    $region17: #{resblock_up_forward.5} parent=1 // pred_fallthru
      _
    // Predicated region
    $region18: #{resblock_up_forward.5} parent=1 // pred_check
      _
    $region19: #{resblock_up_forward.5} parent=1 // pred_check_branch
      %39 = sbr.rel (0) target = $region21
    $region20: #{resblock_up_forward.5} parent=1 // pred_region
      _
    $region21: #{resblock_up_forward.5} parent=1 // pred_fallthru
      _
    // Predicated region
    $region22: #{resblock_up_forward.5} parent=1 // pred_check
      _
    $region23: #{resblock_up_forward.5} parent=1 // pred_check_branch
      %41 = sbr.rel (0) target = $region25
    $region24: #{resblock_up_forward.5} parent=1 // pred_region
      _
    $region25: #{resblock_up_forward.5} parent=1 // pred_fallthru
      _
    // Predicated region
    $region26: #{resblock_up_forward.5} parent=1 // pred_check
      _
    $region27: #{resblock_up_forward.5} parent=1 // pred_check_branch
      %43 = sbr.rel (0) target = $region29
    $region28: #{resblock_up_forward.5} parent=1 // pred_region
      _
    $region29: #{resblock_up_forward.5} parent=1 // pred_fallthru
      _
    // Predicated region
    $region30: #{resblock_up_forward.5} parent=1 // pred_check
      _
    $region31: #{resblock_up_forward.5} parent=1 // pred_check_branch
      %45 = sbr.rel (0) target = $region33
    $region32: #{resblock_up_forward.5} parent=1 // pred_region
      %46 = dma.done [#allocation4], 16
    $region33: #{resblock_up_forward.5} parent=1 // pred_fallthru
      _
    // Predicated region
    $region34: #{resblock_up_forward.5} parent=1 // pred_check
      _
    $region35: #{resblock_up_forward.5} parent=1 // pred_check_branch
      %48 = sbr.rel (0) target = $region37
    $region36: #{resblock_up_forward.5} parent=1 // pred_region
      %49 = dma.done [#allocation6], 16
    $region37: #{resblock_up_forward.5} parent=1 // pred_fallthru
      _
    %50 = sfence
    %s54 = smul.u32 0, 2
    %s55 = sld [smem:[#allocation3 + %s54]]
    %s56 = sld [smem:[#allocation5 + %s54]]
    %v57 = vld [vmem:[%s2] sm:$0xff]
    %v58 = vunpack.c.l.bf16 %v57
    %v59 = vunpack.c.h.bf16 %v57
    %60 = vst [vmem:[#allocation2] sm:$0xf] 0
    %v61 = vstv %s55
    %v62 = vmul.f32 %v58, %v61
    %v63 = vmul.f32 %v59, %v61
    %v64 = vstv %s56
    %v65 = vadd.f32 %v62, %v64
    %v66 = vadd.f32 %v63, %v64
    %v67 = vmax.f32 %v65, 0.0
    %v68 = vmax.f32 %v66, 0.0
    %v69 = vpack.c.bf16 %v67, %v67
    %v70 = vpack.c.bf16 %v68, %v68
    %v73 = vunpack.c.l.b16 %v69
    %v74 = vunpack.c.l.b16 %v70
    %v75 = vpack.c.b16 %v74, %v73
    %77 = vst [vmem:[#allocation2 + $0x4] sm:$0xff] %v75
    %78 = vst [vmem:[#allocation2 + $0xc] sm:$0xf] 0
    %v79 = vld [vmem:[%s2 + $0x8] sm:$0xff]
    %v80 = vunpack.c.l.bf16 %v79
    %v81 = vunpack.c.h.bf16 %v79
    %s82 = scalar_lea.vmem [#allocation2], 16
    %83 = vst [vmem:[%s82] sm:$0xf] 0
    %v84 = vmul.f32 %v80, %v61
    %v85 = vmul.f32 %v81, %v61
    %v86 = vadd.f32 %v84, %v64
    %v87 = vadd.f32 %v85, %v64
    %v88 = vmax.f32 %v86, 0.0
    %v89 = vmax.f32 %v87, 0.0
    %v90 = vpack.c.bf16 %v88, %v88
    %v91 = vpack.c.bf16 %v89, %v89
    %v94 = vunpack.c.l.b16 %v90
    %v95 = vunpack.c.l.b16 %v91
    %v96 = vpack.c.b16 %v95, %v94
    %98 = vst [vmem:[%s82 + $0x4] sm:$0xff] %v96
    %99 = vst [vmem:[%s82 + $0xc] sm:$0xf] 0
    %v100 = vld [vmem:[%s2 + $0x10] sm:$0xff]
    %v101 = vunpack.c.l.bf16 %v100
    %v102 = vunpack.c.h.bf16 %v100
    %s103 = scalar_lea.vmem [#allocation2], 32
    %104 = vst [vmem:[%s103] sm:$0xf] 0
    %v105 = vmul.f32 %v101, %v61
    %v106 = vmul.f32 %v102, %v61
    %v107 = vadd.f32 %v105, %v64
    %v108 = vadd.f32 %v106, %v64
    %v109 = vmax.f32 %v107, 0.0
    %v110 = vmax.f32 %v108, 0.0
    %v111 = vpack.c.bf16 %v109, %v109
    %v112 = vpack.c.bf16 %v110, %v110
    %v115 = vunpack.c.l.b16 %v111
    %v116 = vunpack.c.l.b16 %v112
    %v117 = vpack.c.b16 %v116, %v115
    %119 = vst [vmem:[%s103 + $0x4] sm:$0xff] %v117
    %120 = vst [vmem:[%s103 + $0xc] sm:$0xf] 0
    %v121 = vld [vmem:[%s2 + $0x18] sm:$0xff]
    %v122 = vunpack.c.l.bf16 %v121
    %v123 = vunpack.c.h.bf16 %v121
    %s124 = scalar_lea.vmem [#allocation2], 48
    %125 = vst [vmem:[%s124] sm:$0xf] 0
    %v126 = vmul.f32 %v122, %v61
    %v127 = vmul.f32 %v123, %v61
    %v128 = vadd.f32 %v126, %v64
    %v129 = vadd.f32 %v127, %v64
    %v130 = vmax.f32 %v128, 0.0
    %v131 = vmax.f32 %v129, 0.0
    %v132 = vpack.c.bf16 %v130, %v130
    %v133 = vpack.c.bf16 %v131, %v131
    %v136 = vunpack.c.l.b16 %v132
    %v137 = vunpack.c.l.b16 %v133
    %v138 = vpack.c.b16 %v137, %v136
    %140 = vst [vmem:[%s124 + $0x4] sm:$0xff] %v138
    %141 = vst [vmem:[%s124 + $0xc] sm:$0xf] 0
    %s142 = sadd.s32 %s54, 1
    %s143 = sld [smem:[#allocation3 + %s142]]
    %s144 = sld [smem:[#allocation5 + %s142]]
    %s145 = scalar_lea.vmem %s2, 32
    %v146 = vld [vmem:[%s145] sm:$0xff]
    %v147 = vunpack.c.l.bf16 %v146
    %v148 = vunpack.c.h.bf16 %v146
    %s149 = scalar_lea.vmem [#allocation2], 64
    %150 = vst [vmem:[%s149] sm:$0xf] 0
    %v151 = vstv %s143
    %v152 = vmul.f32 %v147, %v151
    %v153 = vmul.f32 %v148, %v151
    %v154 = vstv %s144
    %v155 = vadd.f32 %v152, %v154
    %v156 = vadd.f32 %v153, %v154
    %v157 = vmax.f32 %v155, 0.0
    %v158 = vmax.f32 %v156, 0.0
    %v159 = vpack.c.bf16 %v157, %v157
    %v160 = vpack.c.bf16 %v158, %v158
    %v163 = vunpack.c.l.b16 %v159
    %v164 = vunpack.c.l.b16 %v160
    %v165 = vpack.c.b16 %v164, %v163
    %167 = vst [vmem:[%s149 + $0x4] sm:$0xff] %v165
    %168 = vst [vmem:[%s149 + $0xc] sm:$0xf] 0
    %v169 = vld [vmem:[%s145 + $0x8] sm:$0xff]
    %v170 = vunpack.c.l.bf16 %v169
    %v171 = vunpack.c.h.bf16 %v169
    %s172 = scalar_lea.vmem [#allocation2], 80
    %173 = vst [vmem:[%s172] sm:$0xf] 0
    %v174 = vmul.f32 %v170, %v151
    %v175 = vmul.f32 %v171, %v151
    %v176 = vadd.f32 %v174, %v154
    %v177 = vadd.f32 %v175, %v154
    %v178 = vmax.f32 %v176, 0.0
    %v179 = vmax.f32 %v177, 0.0
    %v180 = vpack.c.bf16 %v178, %v178
    %v181 = vpack.c.bf16 %v179, %v179
    %v184 = vunpack.c.l.b16 %v180
    %v185 = vunpack.c.l.b16 %v181
    %v186 = vpack.c.b16 %v185, %v184
    %188 = vst [vmem:[%s172 + $0x4] sm:$0xff] %v186
    %189 = vst [vmem:[%s172 + $0xc] sm:$0xf] 0
    %v190 = vld [vmem:[%s145 + $0x10] sm:$0xff]
    %v191 = vunpack.c.l.bf16 %v190
    %v192 = vunpack.c.h.bf16 %v190
    %s193 = scalar_lea.vmem [#allocation2], 96
    %194 = vst [vmem:[%s193] sm:$0xf] 0
    %v195 = vmul.f32 %v191, %v151
    %v196 = vmul.f32 %v192, %v151
    %v197 = vadd.f32 %v195, %v154
    %v198 = vadd.f32 %v196, %v154
    %v199 = vmax.f32 %v197, 0.0
    %v200 = vmax.f32 %v198, 0.0
    %v201 = vpack.c.bf16 %v199, %v199
    %v202 = vpack.c.bf16 %v200, %v200
    %v205 = vunpack.c.l.b16 %v201
    %v206 = vunpack.c.l.b16 %v202
    %v207 = vpack.c.b16 %v206, %v205
    %209 = vst [vmem:[%s193 + $0x4] sm:$0xff] %v207
    %210 = vst [vmem:[%s193 + $0xc] sm:$0xf] 0
    %v211 = vld [vmem:[%s145 + $0x18] sm:$0xff]
    %v212 = vunpack.c.l.bf16 %v211
    %v213 = vunpack.c.h.bf16 %v211
    %s214 = scalar_lea.vmem [#allocation2], 112
    %215 = vst [vmem:[%s214] sm:$0xf] 0
    %v216 = vmul.f32 %v212, %v151
    %v217 = vmul.f32 %v213, %v151
    %v218 = vadd.f32 %v216, %v154
    %v219 = vadd.f32 %v217, %v154
    %v220 = vmax.f32 %v218, 0.0
    %v221 = vmax.f32 %v219, 0.0
    %v222 = vpack.c.bf16 %v220, %v220
    %v223 = vpack.c.bf16 %v221, %v221
    %v226 = vunpack.c.l.b16 %v222
    %v227 = vunpack.c.l.b16 %v223
    %v228 = vpack.c.b16 %v227, %v226
    %230 = vst [vmem:[%s214 + $0x4] sm:$0xff] %v228
    %231 = vst [vmem:[%s214 + $0xc] sm:$0xf] 0
    %v232 = vlaneseq
    %v233 = vand.u32 %v232, 127
    %v234 = vadd.s32 %v233, 128
    %v235 = vadd.s32 %v233, 256
    %v236 = vadd.s32 %v233, 384
    %vm237 = vcmp.lt.s32.totalorder %v233, 0
    %v238 = vsub.s32 0, %v233
    %v239 = vsel %vm237, %v238, %v233
    %v240 = vshrl.u32 %v239, 4
    %v241 = vand.u32 %v239, 15
    %v242 = vsub.s32 0, %v241
    %v243 = vsel %vm237, %v242, %v241
    %vm244 = vcmp.lt.s32.totalorder %v234, 0
    %v245 = vsub.s32 0, %v234
    %v246 = vsel %vm244, %v245, %v234
    %v247 = vshrl.u32 %v246, 4
    %v248 = vand.u32 %v246, 15
    %v249 = vsub.s32 0, %v248
    %v250 = vsel %vm244, %v249, %v248
    %vm251 = vcmp.lt.s32.totalorder %v235, 0
    %v252 = vsub.s32 0, %v235
    %v253 = vsel %vm251, %v252, %v235
    %v254 = vshrl.u32 %v253, 4
    %v255 = vand.u32 %v253, 15
    %v256 = vsub.s32 0, %v255
    %v257 = vsel %vm251, %v256, %v255
    %vm258 = vcmp.lt.s32.totalorder %v236, 0
    %v259 = vsub.s32 0, %v236
    %v260 = vsel %vm258, %v259, %v236
    %v261 = vshrl.u32 %v260, 4
    %v262 = vand.u32 %v260, 15
    %v263 = vsub.s32 0, %v262
    %v264 = vsel %vm258, %v263, %v262
    %vm265 = vcmp.ne.s32.totalorder %v243, 0
    %vm266 = vcmp.ne.s32.totalorder %v250, 0
    %vm267 = vcmp.ne.s32.totalorder %v257, 0
    %vm268 = vcmp.ne.s32.totalorder %v264, 0
    %vm269 = vcmp.lt.s32.totalorder %v243, 0
    %vm270 = vcmp.lt.s32.totalorder %v250, 0
    %vm271 = vcmp.lt.s32.totalorder %v257, 0
    %vm272 = vcmp.lt.s32.totalorder %v264, 0
    %vm273 = vmand %vm269, %vm265
    %vm274 = vmand %vm270, %vm266
    %vm275 = vmand %vm271, %vm267
    %vm276 = vmand %vm272, %vm268
    %v277 = vadd.s32 %v243, 16
    %v278 = vadd.s32 %v250, 16
    %v279 = vadd.s32 %v257, 16
    %v280 = vadd.s32 %v264, 16
    %v281 = vsel %vm273, %v277, %v243
    %v282 = vsel %vm274, %v278, %v250
    %v283 = vsel %vm275, %v279, %v257
    %v284 = vsel %vm276, %v280, %v264
    %vm285 = vcmp.ne.s32.totalorder %v281, 0
    %vm286 = vcmp.ne.s32.totalorder %v282, 0
    %vm287 = vcmp.ne.s32.totalorder %v283, 0
    %vm288 = vcmp.ne.s32.totalorder %v284, 0
    %vm289 = vcmp.ne.s32.totalorder %v281, 15
    %vm290 = vcmp.ne.s32.totalorder %v282, 15
    %vm291 = vcmp.ne.s32.totalorder %v283, 15
    %vm292 = vcmp.ne.s32.totalorder %v284, 15
    %v293 = vld [vmem:[%s124] sm:$0xff]
    %v294 = vld [vmem:[%s124 + $0x8] sm:$0xf]
    %v295 = vld [vmem:[%s214] sm:$0xff]
    %v296 = vld [vmem:[%s214 + $0x8] sm:$0xf]
    %v299 = vunpack.c.l.b16 %v293
    %v300 = vunpack.c.h.b16 %v293
    %v301 = vunpack.c.l.b16 %v294
    %v302 = vpack.c.b16 %v299, %v299
    %v303 = vpack.c.b16 %v300, %v300
    %v304 = vpack.c.b16 %v301, %v301
    %305 = vrot.lane.b32.xlu0 %v302, 17
    %v306 = vpop.permute.xlu0 %305
    %307 = vrot.lane.b32.xlu0 %v303, 17
    %v308 = vpop.permute.xlu0 %307
    %309 = vrot.lane.b32.xlu0 %v304, 17
    %v310 = vpop.permute.xlu0 %309
    %vm311 = vcmask 138240
    %v312 = vsel %vm311, %v306, %v308
    %v313 = vsel %vm311, %v308, %v310
    %v318 = vunpack.c.l.b16 %v295
    %v319 = vunpack.c.h.b16 %v295
    %v320 = vunpack.c.l.b16 %v296
    %v321 = vpack.c.b16 %v318, %v318
    %v322 = vpack.c.b16 %v319, %v319
    %v323 = vpack.c.b16 %v320, %v320
    %324 = vrot.lane.b32.xlu0 %v321, 17
    %v325 = vpop.permute.xlu0 %324
    %326 = vrot.lane.b32.xlu0 %v322, 17
    %v327 = vpop.permute.xlu0 %326
    %328 = vrot.lane.b32.xlu0 %v323, 17
    %v329 = vpop.permute.xlu0 %328
    %v330 = vsel %vm311, %v325, %v327
    %v331 = vsel %vm311, %v327, %v329
    %vm334 = vmpackc.low %vm286, %vm285
    %vm335 = vmpackc.low %vm288, %vm287
    %v336 = vsel %vm334, 65537, 0
    %v337 = vsel %vm335, 65537, 0
    %v338 = vlaneseq
    %v339 = vshrl.u32 %v338, 7
    %v340 = vsub.s32 0, %v339
    %v341 = vrot.slane %v336, %v340
    %v342 = vlaneseq
    %v343 = vshrl.u32 %v342, 7
    %v344 = vsub.s32 4, %v343
    %v345 = vrot.slane %v336, %v344
    %v346 = vlaneseq
    %v347 = vshrl.u32 %v346, 7
    %v348 = vsub.s32 0, %v347
    %v349 = vrot.slane %v337, %v348
    %v350 = vlaneseq
    %v351 = vshrl.u32 %v350, 7
    %v352 = vsub.s32 4, %v351
    %v353 = vrot.slane %v337, %v352
    %vm354 = vcmp.ne.s16.totalorder %v341, 0
    %vm355 = vcmp.ne.s16.totalorder %v345, 0
    %vm356 = vcmp.ne.s16.totalorder %v349, 0
    %vm357 = vcmp.ne.s16.totalorder %v353, 0
    %v358 = vsel %vm354, %v312, 0
    %v359 = vsel %vm355, %v313, 0
    %v360 = vsel %vm356, %v330, 0
    %v361 = vsel %vm357, %v331, 0
    %v362 = vld [vmem:[%s103] sm:$0xff]
    %v363 = vld [vmem:[%s103 + $0x8] sm:$0xf]
    %v364 = vld [vmem:[%s193] sm:$0xff]
    %v365 = vld [vmem:[%s193 + $0x8] sm:$0xf]
    %v368 = vunpack.c.l.b16 %v362
    %v369 = vunpack.c.h.b16 %v362
    %v370 = vunpack.c.l.b16 %v363
    %v371 = vpack.c.b16 %v368, %v368
    %v372 = vpack.c.b16 %v369, %v369
    %v373 = vpack.c.b16 %v370, %v370
    %374 = vrot.lane.b32.xlu0 %v371, 16
    %v375 = vpop.permute.xlu0 %374
    %376 = vrot.lane.b32.xlu0 %v372, 16
    %v377 = vpop.permute.xlu0 %376
    %378 = vrot.lane.b32.xlu0 %v373, 16
    %v379 = vpop.permute.xlu0 %378
    %vm380 = vcmask 130048
    %v381 = vsel %vm380, %v375, %v377
    %v382 = vsel %vm380, %v377, %v379
    %v385 = vunpack.c.l.b16 %v364
    %v386 = vunpack.c.h.b16 %v364
    %v387 = vunpack.c.l.b16 %v365
    %v388 = vpack.c.b16 %v385, %v385
    %v389 = vpack.c.b16 %v386, %v386
    %v390 = vpack.c.b16 %v387, %v387
    %391 = vrot.lane.b32.xlu0 %v388, 16
    %v392 = vpop.permute.xlu0 %391
    %393 = vrot.lane.b32.xlu0 %v389, 16
    %v394 = vpop.permute.xlu0 %393
    %395 = vrot.lane.b32.xlu0 %v390, 16
    %v396 = vpop.permute.xlu0 %395
    %v397 = vsel %vm380, %v392, %v394
    %v398 = vsel %vm380, %v394, %v396
    %399 = vrot.lane.b32.xlu0 %v302, 16
    %v400 = vpop.permute.xlu0 %399
    %401 = vrot.lane.b32.xlu0 %v303, 16
    %v402 = vpop.permute.xlu0 %401
    %403 = vrot.lane.b32.xlu0 %v304, 16
    %v404 = vpop.permute.xlu0 %403
    %v405 = vsel %vm380, %v400, %v402
    %v406 = vsel %vm380, %v402, %v404
    %407 = vrot.lane.b32.xlu0 %v321, 16
    %v408 = vpop.permute.xlu0 %407
    %409 = vrot.lane.b32.xlu0 %v322, 16
    %v410 = vpop.permute.xlu0 %409
    %411 = vrot.lane.b32.xlu0 %v323, 16
    %v412 = vpop.permute.xlu0 %411
    %v413 = vsel %vm380, %v408, %v410
    %v414 = vsel %vm380, %v410, %v412
    %415 = vrot.lane.b32.xlu0 %v371, 15
    %v416 = vpop.permute.xlu0 %415
    %417 = vrot.lane.b32.xlu0 %v372, 15
    %v418 = vpop.permute.xlu0 %417
    %419 = vrot.lane.b32.xlu0 %v373, 15
    %v420 = vpop.permute.xlu0 %419
    %vm421 = vcmask 121856
    %v422 = vsel %vm421, %v416, %v418
    %v423 = vsel %vm421, %v418, %v420
    %426 = vrot.lane.b32.xlu0 %v388, 15
    %v427 = vpop.permute.xlu0 %426
    %428 = vrot.lane.b32.xlu0 %v389, 15
    %v429 = vpop.permute.xlu0 %428
    %430 = vrot.lane.b32.xlu0 %v390, 15
    %v431 = vpop.permute.xlu0 %430
    %v432 = vsel %vm421, %v427, %v429
    %v433 = vsel %vm421, %v429, %v431
    %vm436 = vmpackc.low %vm290, %vm289
    %vm437 = vmpackc.low %vm292, %vm291
    %v438 = vsel %vm436, 65537, 0
    %v439 = vsel %vm437, 65537, 0
    %v440 = vlaneseq
    %v441 = vshrl.u32 %v440, 7
    %v442 = vsub.s32 0, %v441
    %v443 = vrot.slane %v438, %v442
    %v444 = vlaneseq
    %v445 = vshrl.u32 %v444, 7
    %v446 = vsub.s32 4, %v445
    %v447 = vrot.slane %v438, %v446
    %v448 = vlaneseq
    %v449 = vshrl.u32 %v448, 7
    %v450 = vsub.s32 0, %v449
    %v451 = vrot.slane %v439, %v450
    %v452 = vlaneseq
    %v453 = vshrl.u32 %v452, 7
    %v454 = vsub.s32 4, %v453
    %v455 = vrot.slane %v439, %v454
    %vm456 = vcmp.ne.s16.totalorder %v443, 0
    %vm457 = vcmp.ne.s16.totalorder %v447, 0
    %vm458 = vcmp.ne.s16.totalorder %v451, 0
    %vm459 = vcmp.ne.s16.totalorder %v455, 0
    %v460 = vsel %vm456, %v422, 0
    %v461 = vsel %vm457, %v423, 0
    %v462 = vsel %vm458, %v432, 0
    %v463 = vsel %vm459, %v433, 0
    %v464 = vld [vmem:[%s82] sm:$0xff]
    %v465 = vld [vmem:[%s82 + $0x8] sm:$0xf]
    %v466 = vld [vmem:[%s172] sm:$0xff]
    %v467 = vld [vmem:[%s172 + $0x8] sm:$0xf]
    %v470 = vunpack.c.l.b16 %v464
    %v471 = vunpack.c.h.b16 %v464
    %v472 = vunpack.c.l.b16 %v465
    %v473 = vpack.c.b16 %v470, %v470
    %v474 = vpack.c.b16 %v471, %v471
    %v475 = vpack.c.b16 %v472, %v472
    %476 = vrot.lane.b32.xlu0 %v473, 1
    %v477 = vpop.permute.xlu0 %476
    %478 = vrot.lane.b32.xlu0 %v474, 1
    %v479 = vpop.permute.xlu0 %478
    %480 = vrot.lane.b32.xlu0 %v475, 1
    %v481 = vpop.permute.xlu0 %480
    %vm482 = vcmask 7168
    %v483 = vsel %vm482, %v477, %v479
    %v484 = vsel %vm482, %v479, %v481
    %v489 = vunpack.c.l.b16 %v466
    %v490 = vunpack.c.h.b16 %v466
    %v491 = vunpack.c.l.b16 %v467
    %v492 = vpack.c.b16 %v489, %v489
    %v493 = vpack.c.b16 %v490, %v490
    %v494 = vpack.c.b16 %v491, %v491
    %495 = vrot.lane.b32.xlu0 %v492, 1
    %v496 = vpop.permute.xlu0 %495
    %497 = vrot.lane.b32.xlu0 %v493, 1
    %v498 = vpop.permute.xlu0 %497
    %499 = vrot.lane.b32.xlu0 %v494, 1
    %v500 = vpop.permute.xlu0 %499
    %v501 = vsel %vm482, %v496, %v498
    %v502 = vsel %vm482, %v498, %v500
    %v505 = vsel %vm354, %v483, 0
    %v506 = vsel %vm355, %v484, 0
    %v507 = vsel %vm356, %v501, 0
    %v508 = vsel %vm357, %v502, 0
    %v509 = vld [vmem:[#allocation2 + $0x4] sm:$0xff]
    %v510 = vld [vmem:[%s149 + $0x4] sm:$0xff]
    %v512 = vunpack.c.l.b16 %v509
    %v513 = vunpack.c.h.b16 %v509
    %v514 = vpack.c.b16 %v512, %v512
    %v515 = vpack.c.b16 %v513, %v513
    %v517 = vunpack.c.l.b16 %v510
    %v518 = vunpack.c.h.b16 %v510
    %v519 = vpack.c.b16 %v517, %v517
    %v520 = vpack.c.b16 %v518, %v518
    %v521 = vld [vmem:[%s82 + $0x4] sm:$0xff]
    %v522 = vld [vmem:[%s172 + $0x4] sm:$0xff]
    %v524 = vunpack.c.l.b16 %v521
    %v525 = vunpack.c.h.b16 %v521
    %v526 = vpack.c.b16 %v524, %v524
    %v527 = vpack.c.b16 %v525, %v525
    %v529 = vunpack.c.l.b16 %v522
    %v530 = vunpack.c.h.b16 %v522
    %v531 = vpack.c.b16 %v529, %v529
    %v532 = vpack.c.b16 %v530, %v530
    %v533 = vld [vmem:[#allocation2 + $0xc] sm:$0xf]
    %v534 = vld [vmem:[%s149 + $0xc] sm:$0xf]
    %v536 = vunpack.c.l.b16 %v533
    %v537 = vpack.c.b16 %v536, %v536
    %538 = vrot.lane.b32.xlu0 %v514, 127
    %v539 = vpop.permute.xlu0 %538
    %540 = vrot.lane.b32.xlu0 %v515, 127
    %v541 = vpop.permute.xlu0 %540
    %542 = vrot.lane.b32.xlu0 %v537, 127
    %v543 = vpop.permute.xlu0 %542
    %vm544 = vcmask 1039360
    %v545 = vsel %vm544, %v539, %v541
    %v546 = vsel %vm544, %v541, %v543
    %v550 = vunpack.c.l.b16 %v534
    %v551 = vpack.c.b16 %v550, %v550
    %552 = vrot.lane.b32.xlu0 %v519, 127
    %v553 = vpop.permute.xlu0 %552
    %554 = vrot.lane.b32.xlu0 %v520, 127
    %v555 = vpop.permute.xlu0 %554
    %556 = vrot.lane.b32.xlu0 %v551, 127
    %v557 = vpop.permute.xlu0 %556
    %v558 = vsel %vm544, %v553, %v555
    %v559 = vsel %vm544, %v555, %v557
    %v562 = vsel %vm456, %v545, 0
    %v563 = vsel %vm457, %v546, 0
    %v564 = vsel %vm458, %v558, 0
    %v565 = vsel %vm459, %v559, 0
    %566 = vrot.lane.b32.xlu0 %v302, 1
    %v567 = vpop.permute.xlu0 %566
    %568 = vrot.lane.b32.xlu0 %v303, 1
    %v569 = vpop.permute.xlu0 %568
    %570 = vrot.lane.b32.xlu0 %v304, 1
    %v571 = vpop.permute.xlu0 %570
    %v572 = vsel %vm482, %v567, %v569
    %v573 = vsel %vm482, %v569, %v571
    %576 = vrot.lane.b32.xlu0 %v321, 1
    %v577 = vpop.permute.xlu0 %576
    %578 = vrot.lane.b32.xlu0 %v322, 1
    %v579 = vpop.permute.xlu0 %578
    %580 = vrot.lane.b32.xlu0 %v323, 1
    %v581 = vpop.permute.xlu0 %580
    %v582 = vsel %vm482, %v577, %v579
    %v583 = vsel %vm482, %v579, %v581
    %v586 = vsel %vm354, %v572, 0
    %v587 = vsel %vm355, %v573, 0
    %v588 = vsel %vm356, %v582, 0
    %v589 = vsel %vm357, %v583, 0
    %v590 = vld [vmem:[%s103 + $0x4] sm:$0xff]
    %v591 = vld [vmem:[%s193 + $0x4] sm:$0xff]
    %v593 = vunpack.c.l.b16 %v590
    %v594 = vunpack.c.h.b16 %v590
    %v595 = vpack.c.b16 %v593, %v593
    %v596 = vpack.c.b16 %v594, %v594
    %v598 = vunpack.c.l.b16 %v591
    %v599 = vunpack.c.h.b16 %v591
    %v600 = vpack.c.b16 %v598, %v598
    %v601 = vpack.c.b16 %v599, %v599
    %v602 = vld [vmem:[%s124 + $0x4] sm:$0xff]
    %v603 = vld [vmem:[%s214 + $0x4] sm:$0xff]
    %v605 = vunpack.c.l.b16 %v602
    %v606 = vunpack.c.h.b16 %v602
    %v607 = vpack.c.b16 %v605, %v605
    %v608 = vpack.c.b16 %v606, %v606
    %v610 = vunpack.c.l.b16 %v603
    %v611 = vunpack.c.h.b16 %v603
    %v612 = vpack.c.b16 %v610, %v610
    %v613 = vpack.c.b16 %v611, %v611
    %v614 = vld [vmem:[%s103 + $0xc] sm:$0xf]
    %v615 = vld [vmem:[%s193 + $0xc] sm:$0xf]
    %v617 = vunpack.c.l.b16 %v614
    %v618 = vpack.c.b16 %v617, %v617
    %619 = vrot.lane.b32.xlu0 %v595, 127
    %v620 = vpop.permute.xlu0 %619
    %621 = vrot.lane.b32.xlu0 %v596, 127
    %v622 = vpop.permute.xlu0 %621
    %623 = vrot.lane.b32.xlu0 %v618, 127
    %v624 = vpop.permute.xlu0 %623
    %v625 = vsel %vm544, %v620, %v622
    %v626 = vsel %vm544, %v622, %v624
    %v630 = vunpack.c.l.b16 %v615
    %v631 = vpack.c.b16 %v630, %v630
    %632 = vrot.lane.b32.xlu0 %v600, 127
    %v633 = vpop.permute.xlu0 %632
    %634 = vrot.lane.b32.xlu0 %v601, 127
    %v635 = vpop.permute.xlu0 %634
    %636 = vrot.lane.b32.xlu0 %v631, 127
    %v637 = vpop.permute.xlu0 %636
    %v638 = vsel %vm544, %v633, %v635
    %v639 = vsel %vm544, %v635, %v637
    %v642 = vsel %vm456, %v625, 0
    %v643 = vsel %vm457, %v626, 0
    %v644 = vsel %vm458, %v638, 0
    %v645 = vsel %vm459, %v639, 0
    %v646 = vld [vmem:[%s82 + $0xc] sm:$0xf]
    %v647 = vld [vmem:[%s172 + $0xc] sm:$0xf]
    %v649 = vunpack.c.l.b16 %v646
    %v650 = vpack.c.b16 %v649, %v649
    %651 = vrot.lane.b32.xlu0 %v526, 113
    %v652 = vpop.permute.xlu0 %651
    %653 = vrot.lane.b32.xlu0 %v527, 113
    %v654 = vpop.permute.xlu0 %653
    %655 = vrot.lane.b32.xlu0 %v650, 113
    %v656 = vpop.permute.xlu0 %655
    %vm657 = vcmask 924672
    %v658 = vsel %vm657, %v652, %v654
    %v659 = vsel %vm657, %v654, %v656
    %v663 = vunpack.c.l.b16 %v647
    %v664 = vpack.c.b16 %v663, %v663
    %665 = vrot.lane.b32.xlu0 %v531, 113
    %v666 = vpop.permute.xlu0 %665
    %667 = vrot.lane.b32.xlu0 %v532, 113
    %v668 = vpop.permute.xlu0 %667
    %669 = vrot.lane.b32.xlu0 %v664, 113
    %v670 = vpop.permute.xlu0 %669
    %v671 = vsel %vm657, %v666, %v668
    %v672 = vsel %vm657, %v668, %v670
    %v675 = vsel %vm354, %v658, 0
    %v676 = vsel %vm355, %v659, 0
    %v677 = vsel %vm356, %v671, 0
    %v678 = vsel %vm357, %v672, 0
    %679 = vrot.lane.b32.xlu0 %v514, 112
    %v680 = vpop.permute.xlu0 %679
    %681 = vrot.lane.b32.xlu0 %v515, 112
    %v682 = vpop.permute.xlu0 %681
    %683 = vrot.lane.b32.xlu0 %v537, 112
    %v684 = vpop.permute.xlu0 %683
    %vm685 = vcmask 916480
    %v686 = vsel %vm685, %v680, %v682
    %v687 = vsel %vm685, %v682, %v684
    %688 = vrot.lane.b32.xlu0 %v519, 112
    %v689 = vpop.permute.xlu0 %688
    %690 = vrot.lane.b32.xlu0 %v520, 112
    %v691 = vpop.permute.xlu0 %690
    %692 = vrot.lane.b32.xlu0 %v551, 112
    %v693 = vpop.permute.xlu0 %692
    %v694 = vsel %vm685, %v689, %v691
    %v695 = vsel %vm685, %v691, %v693
    %696 = vrot.lane.b32.xlu0 %v526, 112
    %v697 = vpop.permute.xlu0 %696
    %698 = vrot.lane.b32.xlu0 %v527, 112
    %v699 = vpop.permute.xlu0 %698
    %700 = vrot.lane.b32.xlu0 %v650, 112
    %v701 = vpop.permute.xlu0 %700
    %v702 = vsel %vm685, %v697, %v699
    %v703 = vsel %vm685, %v699, %v701
    %704 = vrot.lane.b32.xlu0 %v531, 112
    %v705 = vpop.permute.xlu0 %704
    %706 = vrot.lane.b32.xlu0 %v532, 112
    %v707 = vpop.permute.xlu0 %706
    %708 = vrot.lane.b32.xlu0 %v664, 112
    %v709 = vpop.permute.xlu0 %708
    %v710 = vsel %vm685, %v705, %v707
    %v711 = vsel %vm685, %v707, %v709
    %712 = vrot.lane.b32.xlu0 %v514, 111
    %v713 = vpop.permute.xlu0 %712
    %714 = vrot.lane.b32.xlu0 %v515, 111
    %v715 = vpop.permute.xlu0 %714
    %716 = vrot.lane.b32.xlu0 %v537, 111
    %v717 = vpop.permute.xlu0 %716
    %vm718 = vcmask 908288
    %v719 = vsel %vm718, %v713, %v715
    %v720 = vsel %vm718, %v715, %v717
    %723 = vrot.lane.b32.xlu0 %v519, 111
    %v724 = vpop.permute.xlu0 %723
    %725 = vrot.lane.b32.xlu0 %v520, 111
    %v726 = vpop.permute.xlu0 %725
    %727 = vrot.lane.b32.xlu0 %v551, 111
    %v728 = vpop.permute.xlu0 %727
    %v729 = vsel %vm718, %v724, %v726
    %v730 = vsel %vm718, %v726, %v728
    %v733 = vsel %vm456, %v719, 0
    %v734 = vsel %vm457, %v720, 0
    %v735 = vsel %vm458, %v729, 0
    %v736 = vsel %vm459, %v730, 0
    %v737 = vld [vmem:[%s3] sm:$0xf]
    %s738 = scalar_lea.vmem %s3, 4
    %v739 = vld [vmem:[%s738] sm:$0xf]
    %v742 = vunpack.c.l.s4 1983009808
    %v743 = vunpack.c.0.s8 %v742
    %v744 = vlaneseq
    %v745 = vshrl.u32 %v744, 7
    %v746 = vsub.s32 %v743, %v745
    %v747 = vrot.slane %v737, %v746
    %v748 = vcombine.high %v747, %v747
    %v751 = vunpack.c.l.s4 1983009808
    %v752 = vunpack.c.0.s8 %v751
    %v753 = vlaneseq
    %v754 = vshrl.u32 %v753, 7
    %v755 = vsub.s32 %v752, %v754
    %v756 = vrot.slane %v739, %v755
    %v757 = vcombine.high %v756, %v756
    %v758 = vld [vmem:[%s5] sm:$0xf]
    %v759 = vld [vmem:[%s6] sm:$0xff]
    %761 = vset.pattern.permute.xlu0 0
    %762 = vperm.xlu0 %761, %v759
    %v763 = vpop.permute.xlu0 %762
    %vm765 = vcmask 31744
    %v767 = vsel %vm765, %v758, 0
    %vm769 = vcmask 1041408
    %v771 = vsel %vm769, %v747, 0
    %v774 = vsel %vm769, %v748, 0
    %v777 = vsel %vm769, %v756, 0
    %v780 = vsel %vm769, %v757, 0
    %782 = vmatprep.subr.bf16.mxu0 0
    %783 = vmatpush1.bf16.msra.mxu0 0
    %784 = vmatprep.subr.bf16.mxu0 0
    %785 = vmatpush1.bf16.msra.mxu0 0
    %786 = vmatprep.subr.bf16.mxu0 0
    %787 = vmatpush1.bf16.msra.mxu0 0
    %788 = vmatprep.subr.bf16.mxu0 0
    %789 = vmatpush1.bf16.msra.mxu0 0
    %790 = vmatprep.subr.bf16.mxu0 0
    %791 = vmatpush1.bf16.msra.mxu0 0
    %792 = vmatprep.subr.bf16.mxu0 0
    %793 = vmatpush1.bf16.msra.mxu0 0
    %794 = vmatprep.subr.bf16.mxu0 0
    %795 = vmatpush1.bf16.msra.mxu0 0
    %796 = vmatprep.subr.bf16.mxu0 %v774
    %797 = vmatpush1.bf16.msra.mxu0 %v771
    %798 = vmatprep.subr.bf16.mxu0 0
    %799 = vmatpush2.bf16.msra.mxu0 0
    %800 = vmatprep.subr.bf16.mxu0 0
    %801 = vmatpush2.bf16.msra.mxu0 0
    %802 = vmatprep.subr.bf16.mxu0 0
    %803 = vmatpush2.bf16.msra.mxu0 0
    %804 = vmatprep.subr.bf16.mxu0 0
    %805 = vmatpush2.bf16.msra.mxu0 0
    %806 = vmatprep.subr.bf16.mxu0 0
    %807 = vmatpush2.bf16.msra.mxu0 0
    %808 = vmatprep.subr.bf16.mxu0 0
    %809 = vmatpush2.bf16.msra.mxu0 0
    %810 = vmatprep.subr.bf16.mxu0 0
    %811 = vmatpush2.bf16.msra.mxu0 0
    %812 = vmatprep.subr.bf16.mxu0 0
    %813 = vmatpush2.bf16.msra.mxu0 0
    %814 = vmatprep.mubr.bf16.mxu0 0
    %815 = vmatmul.mubr.bf16.gmra.mxu0 %v767
    %v816 = vpop.f32.mrf.mxu0
    %v817 = vadd.f32 %v763, %v816
    %v818 = vpop.f32.mrf.mxu0
    %v819 = vadd.f32 %v763, %v818
    %v820 = vpop.f32.mrf.mxu0
    %v821 = vpop.f32.mrf.mxu0
    %822 = vdwg.mxu0
    %823 = vmatprep.subr.bf16.mxu0 0
    %824 = vmatpush1.bf16.msra.mxu0 0
    %825 = vmatprep.subr.bf16.mxu0 0
    %826 = vmatpush1.bf16.msra.mxu0 0
    %827 = vmatprep.subr.bf16.mxu0 0
    %828 = vmatpush1.bf16.msra.mxu0 0
    %829 = vmatprep.subr.bf16.mxu0 0
    %830 = vmatpush1.bf16.msra.mxu0 0
    %831 = vmatprep.subr.bf16.mxu0 0
    %832 = vmatpush1.bf16.msra.mxu0 0
    %833 = vmatprep.subr.bf16.mxu0 0
    %834 = vmatpush1.bf16.msra.mxu0 0
    %835 = vmatprep.subr.bf16.mxu0 0
    %836 = vmatpush1.bf16.msra.mxu0 0
    %837 = vmatprep.subr.bf16.mxu0 %v780
    %838 = vmatpush1.bf16.msra.mxu0 %v777
    %839 = vmatprep.subr.bf16.mxu0 0
    %840 = vmatpush2.bf16.msra.mxu0 0
    %841 = vmatprep.subr.bf16.mxu0 0
    %842 = vmatpush2.bf16.msra.mxu0 0
    %843 = vmatprep.subr.bf16.mxu0 0
    %844 = vmatpush2.bf16.msra.mxu0 0
    %845 = vmatprep.subr.bf16.mxu0 0
    %846 = vmatpush2.bf16.msra.mxu0 0
    %847 = vmatprep.subr.bf16.mxu0 0
    %848 = vmatpush2.bf16.msra.mxu0 0
    %849 = vmatprep.subr.bf16.mxu0 0
    %850 = vmatpush2.bf16.msra.mxu0 0
    %851 = vmatprep.subr.bf16.mxu0 0
    %852 = vmatpush2.bf16.msra.mxu0 0
    %853 = vmatprep.subr.bf16.mxu0 0
    %854 = vmatpush2.bf16.msra.mxu0 0
    %855 = vmatprep.mubr.bf16.mxu0 0
    %856 = vmatmul.mubr.bf16.gmra.mxu0 %v767
    %v857 = vpop.f32.mrf.mxu0
    %v858 = vadd.f32 %v763, %v857
    %v859 = vpop.f32.mrf.mxu0
    %v860 = vadd.f32 %v763, %v859
    %v861 = vpop.f32.mrf.mxu0
    %v862 = vpop.f32.mrf.mxu0
    %863 = vdwg.mxu0
    %v864 = vrot.slane %v381, 4
    %v865 = vrot.slane %v382, 4
    %v866 = vrot.slane %v397, 4
    %v867 = vrot.slane %v398, 4
    %v872 = vrot.slane %v505, 4
    %v873 = vrot.slane %v506, 4
    %v874 = vrot.slane %v507, 4
    %v875 = vrot.slane %v508, 4
    %v876 = vrot.slane %v526, 4
    %v877 = vrot.slane %v527, 4
    %v878 = vrot.slane %v531, 4
    %v879 = vrot.slane %v532, 4
    %v880 = vrot.slane %v595, 4
    %v881 = vrot.slane %v596, 4
    %v882 = vrot.slane %v600, 4
    %v883 = vrot.slane %v601, 4
    %vm884 = vcmask 1043456
    %v887 = vsel %vm884, %v358, %v864
    %v891 = vsel %vm884, %v359, %v865
    %v895 = vsel %vm884, %v360, %v866
    %v899 = vsel %vm884, %v361, %v867
    %v903 = vsel %vm884, %v405, %v872
    %v907 = vsel %vm884, %v406, %v873
    %v911 = vsel %vm884, %v413, %v874
    %v915 = vsel %vm884, %v414, %v875
    %v919 = vsel %vm884, %v514, %v876
    %v923 = vsel %vm884, %v515, %v877
    %v927 = vsel %vm884, %v519, %v878
    %v931 = vsel %vm884, %v520, %v879
    %v935 = vsel %vm884, %v586, %v880
    %v939 = vsel %vm884, %v587, %v881
    %v943 = vsel %vm884, %v588, %v882
    %v947 = vsel %vm884, %v589, %v883
    %v949 = vrot.slane %v405, 4
    %v950 = vrot.slane %v406, 4
    %v951 = vrot.slane %v413, 4
    %v952 = vrot.slane %v414, 4
    %v953 = vrot.slane %v514, 4
    %v954 = vrot.slane %v515, 4
    %v955 = vrot.slane %v519, 4
    %v956 = vrot.slane %v520, 4
    %v961 = vrot.slane %v562, 4
    %v962 = vrot.slane %v563, 4
    %v963 = vrot.slane %v564, 4
    %v964 = vrot.slane %v565, 4
    %v965 = vrot.slane %v607, 4
    %v966 = vrot.slane %v608, 4
    %v967 = vrot.slane %v612, 4
    %v968 = vrot.slane %v613, 4
    %v971 = vsel %vm884, %v381, %v949
    %v975 = vsel %vm884, %v382, %v950
    %v979 = vsel %vm884, %v397, %v951
    %v983 = vsel %vm884, %v398, %v952
    %v987 = vsel %vm884, %v460, %v953
    %v991 = vsel %vm884, %v461, %v954
    %v995 = vsel %vm884, %v462, %v955
    %v999 = vsel %vm884, %v463, %v956
    %v1003 = vsel %vm884, %v526, %v961
    %v1007 = vsel %vm884, %v527, %v962
    %v1011 = vsel %vm884, %v531, %v963
    %v1015 = vsel %vm884, %v532, %v964
    %v1019 = vsel %vm884, %v595, %v965
    %v1023 = vsel %vm884, %v596, %v966
    %v1027 = vsel %vm884, %v600, %v967
    %v1031 = vsel %vm884, %v601, %v968
    %v1037 = vrot.slane %v586, 4
    %v1038 = vrot.slane %v587, 4
    %v1039 = vrot.slane %v588, 4
    %v1040 = vrot.slane %v589, 4
    %v1041 = vrot.slane %v686, 4
    %v1042 = vrot.slane %v687, 4
    %v1043 = vrot.slane %v694, 4
    %v1044 = vrot.slane %v695, 4
    %v1046 = vsel %vm884, %v505, %v953
    %v1049 = vsel %vm884, %v506, %v954
    %v1052 = vsel %vm884, %v507, %v955
    %v1055 = vsel %vm884, %v508, %v956
    %v1058 = vsel %vm884, %v526, %v1037
    %v1061 = vsel %vm884, %v527, %v1038
    %v1064 = vsel %vm884, %v531, %v1039
    %v1067 = vsel %vm884, %v532, %v1040
    %v1071 = vsel %vm884, %v675, %v1041
    %v1075 = vsel %vm884, %v676, %v1042
    %v1079 = vsel %vm884, %v677, %v1043
    %v1083 = vsel %vm884, %v678, %v1044
    %v1089 = vrot.slane %v642, 4
    %v1090 = vrot.slane %v643, 4
    %v1091 = vrot.slane %v644, 4
    %v1092 = vrot.slane %v645, 4
    %v1093 = vrot.slane %v702, 4
    %v1094 = vrot.slane %v703, 4
    %v1095 = vrot.slane %v710, 4
    %v1096 = vrot.slane %v711, 4
    %v1098 = vsel %vm884, %v562, %v880
    %v1101 = vsel %vm884, %v563, %v881
    %v1104 = vsel %vm884, %v564, %v882
    %v1107 = vsel %vm884, %v565, %v883
    %v1111 = vsel %vm884, %v607, %v1089
    %v1115 = vsel %vm884, %v608, %v1090
    %v1119 = vsel %vm884, %v612, %v1091
    %v1123 = vsel %vm884, %v613, %v1092
    %v1127 = vsel %vm884, %v686, %v1093
    %v1131 = vsel %vm884, %v687, %v1094
    %v1135 = vsel %vm884, %v694, %v1095
    %v1139 = vsel %vm884, %v695, %v1096
    %v1141 = vld [vmem:[%s4] sm:$0xf]
    %vm1142 = vcmask 588800
    %v1144 = vsel %vm1142, %v1141, 0
    %v1146 = vsel %vm884, %v607, 0
    %v1148 = vsel %vm884, %v608, 0
    %v1150 = vsel %vm884, %v612, 0
    %v1152 = vsel %vm884, %v613, 0
    %v1155 = vsel %vm884, %v642, 0
    %v1158 = vsel %vm884, %v643, 0
    %v1161 = vsel %vm884, %v644, 0
    %v1164 = vsel %vm884, %v645, 0
    %v1167 = vsel %vm884, %v702, 0
    %v1170 = vsel %vm884, %v703, 0
    %v1173 = vsel %vm884, %v710, 0
    %v1176 = vsel %vm884, %v711, 0
    %v1179 = vsel %vm884, %v733, 0
    %v1182 = vsel %vm884, %v734, 0
    %v1185 = vsel %vm884, %v735, 0
    %v1188 = vsel %vm884, %v736, 0
    %1190 = vmatprep.subr.bf16.mxu0 0
    %1191 = vmatpush1.bf16.msra.mxu0 0
    %1192 = vmatprep.subr.bf16.mxu0 0
    %1193 = vmatpush1.bf16.msra.mxu0 0
    %1194 = vmatprep.subr.bf16.mxu0 0
    %1195 = vmatpush1.bf16.msra.mxu0 0
    %1196 = vmatprep.subr.bf16.mxu0 %v1148
    %1197 = vmatpush1.bf16.msra.mxu0 %v1146
    %1198 = vmatprep.subr.bf16.mxu0 %v939
    %1199 = vmatpush1.bf16.msra.mxu0 %v935
    %1200 = vmatprep.subr.bf16.mxu0 %v923
    %1201 = vmatpush1.bf16.msra.mxu0 %v919
    %1202 = vmatprep.subr.bf16.mxu0 %v907
    %1203 = vmatpush1.bf16.msra.mxu0 %v903
    %1204 = vmatprep.subr.bf16.mxu0 %v891
    %1205 = vmatpush1.bf16.msra.mxu0 %v887
    %1206 = vmatprep.subr.bf16.mxu0 0
    %1207 = vmatpush2.bf16.msra.mxu0 0
    %1208 = vmatprep.subr.bf16.mxu0 0
    %1209 = vmatpush2.bf16.msra.mxu0 0
    %1210 = vmatprep.subr.bf16.mxu0 0
    %1211 = vmatpush2.bf16.msra.mxu0 0
    %1212 = vmatprep.subr.bf16.mxu0 0
    %1213 = vmatpush2.bf16.msra.mxu0 0
    %1214 = vmatprep.subr.bf16.mxu0 0
    %1215 = vmatpush2.bf16.msra.mxu0 0
    %1216 = vmatprep.subr.bf16.mxu0 0
    %1217 = vmatpush2.bf16.msra.mxu0 0
    %1218 = vmatprep.subr.bf16.mxu0 0
    %1219 = vmatpush2.bf16.msra.mxu0 0
    %1220 = vmatprep.subr.bf16.mxu0 0
    %1221 = vmatpush2.bf16.msra.mxu0 0
    %1222 = vmatprep.mubr.bf16.mxu0 0
    %1223 = vmatmul.mubr.bf16.gmra.mxu0 %v1144
    %v1224 = vpop.f32.mrf.mxu0
    %v1225 = vadd.f32 0.0, %v1224
    %v1226 = vpop.f32.mrf.mxu0
    %v1227 = vadd.f32 0.0, %v1226
    %v1228 = vpop.f32.mrf.mxu0
    %v1229 = vpop.f32.mrf.mxu0
    %1230 = vdwg.mxu0
    %1231 = vmatprep.subr.bf16.mxu0 0
    %1232 = vmatpush1.bf16.msra.mxu0 0
    %1233 = vmatprep.subr.bf16.mxu0 0
    %1234 = vmatpush1.bf16.msra.mxu0 0
    %1235 = vmatprep.subr.bf16.mxu0 0
    %1236 = vmatpush1.bf16.msra.mxu0 0
    %1237 = vmatprep.subr.bf16.mxu0 %v1152
    %1238 = vmatpush1.bf16.msra.mxu0 %v1150
    %1239 = vmatprep.subr.bf16.mxu0 %v947
    %1240 = vmatpush1.bf16.msra.mxu0 %v943
    %1241 = vmatprep.subr.bf16.mxu0 %v931
    %1242 = vmatpush1.bf16.msra.mxu0 %v927
    %1243 = vmatprep.subr.bf16.mxu0 %v915
    %1244 = vmatpush1.bf16.msra.mxu0 %v911
    %1245 = vmatprep.subr.bf16.mxu0 %v899
    %1246 = vmatpush1.bf16.msra.mxu0 %v895
    %1247 = vmatprep.subr.bf16.mxu0 0
    %1248 = vmatpush2.bf16.msra.mxu0 0
    %1249 = vmatprep.subr.bf16.mxu0 0
    %1250 = vmatpush2.bf16.msra.mxu0 0
    %1251 = vmatprep.subr.bf16.mxu0 0
    %1252 = vmatpush2.bf16.msra.mxu0 0
    %1253 = vmatprep.subr.bf16.mxu0 0
    %1254 = vmatpush2.bf16.msra.mxu0 0
    %1255 = vmatprep.subr.bf16.mxu0 0
    %1256 = vmatpush2.bf16.msra.mxu0 0
    %1257 = vmatprep.subr.bf16.mxu0 0
    %1258 = vmatpush2.bf16.msra.mxu0 0
    %1259 = vmatprep.subr.bf16.mxu0 0
    %1260 = vmatpush2.bf16.msra.mxu0 0
    %1261 = vmatprep.subr.bf16.mxu0 0
    %1262 = vmatpush2.bf16.msra.mxu0 0
    %1263 = vmatprep.mubr.bf16.mxu0 0
    %1264 = vmatmul.mubr.bf16.gmra.mxu0 %v1144
    %v1265 = vpop.f32.mrf.mxu0
    %v1266 = vadd.f32 0.0, %v1265
    %v1267 = vpop.f32.mrf.mxu0
    %v1268 = vadd.f32 0.0, %v1267
    %v1269 = vpop.f32.mrf.mxu0
    %v1270 = vpop.f32.mrf.mxu0
    %1271 = vdwg.mxu0
    %1272 = vmatprep.subr.bf16.mxu0 0
    %1273 = vmatpush1.bf16.msra.mxu0 0
    %1274 = vmatprep.subr.bf16.mxu0 0
    %1275 = vmatpush1.bf16.msra.mxu0 0
    %1276 = vmatprep.subr.bf16.mxu0 0
    %1277 = vmatpush1.bf16.msra.mxu0 0
    %1278 = vmatprep.subr.bf16.mxu0 %v1158
    %1279 = vmatpush1.bf16.msra.mxu0 %v1155
    %1280 = vmatprep.subr.bf16.mxu0 %v1023
    %1281 = vmatpush1.bf16.msra.mxu0 %v1019
    %1282 = vmatprep.subr.bf16.mxu0 %v1007
    %1283 = vmatpush1.bf16.msra.mxu0 %v1003
    %1284 = vmatprep.subr.bf16.mxu0 %v991
    %1285 = vmatpush1.bf16.msra.mxu0 %v987
    %1286 = vmatprep.subr.bf16.mxu0 %v975
    %1287 = vmatpush1.bf16.msra.mxu0 %v971
    %1288 = vmatprep.subr.bf16.mxu0 0
    %1289 = vmatpush2.bf16.msra.mxu0 0
    %1290 = vmatprep.subr.bf16.mxu0 0
    %1291 = vmatpush2.bf16.msra.mxu0 0
    %1292 = vmatprep.subr.bf16.mxu0 0
    %1293 = vmatpush2.bf16.msra.mxu0 0
    %1294 = vmatprep.subr.bf16.mxu0 0
    %1295 = vmatpush2.bf16.msra.mxu0 0
    %1296 = vmatprep.subr.bf16.mxu0 0
    %1297 = vmatpush2.bf16.msra.mxu0 0
    %1298 = vmatprep.subr.bf16.mxu0 0
    %1299 = vmatpush2.bf16.msra.mxu0 0
    %1300 = vmatprep.subr.bf16.mxu0 0
    %1301 = vmatpush2.bf16.msra.mxu0 0
    %1302 = vmatprep.subr.bf16.mxu0 0
    %1303 = vmatpush2.bf16.msra.mxu0 0
    %1304 = vmatprep.mubr.bf16.mxu0 0
    %1305 = vmatmul.mubr.bf16.gmra.mxu0 %v1144
    %v1306 = vpop.f32.mrf.mxu0
    %v1307 = vadd.f32 0.0, %v1306
    %v1308 = vpop.f32.mrf.mxu0
    %v1309 = vadd.f32 0.0, %v1308
    %v1310 = vpop.f32.mrf.mxu0
    %v1311 = vpop.f32.mrf.mxu0
    %1312 = vdwg.mxu0
    %1313 = vmatprep.subr.bf16.mxu0 0
    %1314 = vmatpush1.bf16.msra.mxu0 0
    %1315 = vmatprep.subr.bf16.mxu0 0
    %1316 = vmatpush1.bf16.msra.mxu0 0
    %1317 = vmatprep.subr.bf16.mxu0 0
    %1318 = vmatpush1.bf16.msra.mxu0 0
    %1319 = vmatprep.subr.bf16.mxu0 %v1164
    %1320 = vmatpush1.bf16.msra.mxu0 %v1161
    %1321 = vmatprep.subr.bf16.mxu0 %v1031
    %1322 = vmatpush1.bf16.msra.mxu0 %v1027
    %1323 = vmatprep.subr.bf16.mxu0 %v1015
    %1324 = vmatpush1.bf16.msra.mxu0 %v1011
    %1325 = vmatprep.subr.bf16.mxu0 %v999
    %1326 = vmatpush1.bf16.msra.mxu0 %v995
    %1327 = vmatprep.subr.bf16.mxu0 %v983
    %1328 = vmatpush1.bf16.msra.mxu0 %v979
    %1329 = vmatprep.subr.bf16.mxu0 0
    %1330 = vmatpush2.bf16.msra.mxu0 0
    %1331 = vmatprep.subr.bf16.mxu0 0
    %1332 = vmatpush2.bf16.msra.mxu0 0
    %1333 = vmatprep.subr.bf16.mxu0 0
    %1334 = vmatpush2.bf16.msra.mxu0 0
    %1335 = vmatprep.subr.bf16.mxu0 0
    %1336 = vmatpush2.bf16.msra.mxu0 0
    %1337 = vmatprep.subr.bf16.mxu0 0
    %1338 = vmatpush2.bf16.msra.mxu0 0
    %1339 = vmatprep.subr.bf16.mxu0 0
    %1340 = vmatpush2.bf16.msra.mxu0 0
    %1341 = vmatprep.subr.bf16.mxu0 0
    %1342 = vmatpush2.bf16.msra.mxu0 0
    %1343 = vmatprep.subr.bf16.mxu0 0
    %1344 = vmatpush2.bf16.msra.mxu0 0
    %1345 = vmatprep.mubr.bf16.mxu0 0
    %1346 = vmatmul.mubr.bf16.gmra.mxu0 %v1144
    %v1347 = vpop.f32.mrf.mxu0
    %v1348 = vadd.f32 0.0, %v1347
    %v1349 = vpop.f32.mrf.mxu0
    %v1350 = vadd.f32 0.0, %v1349
    %v1351 = vpop.f32.mrf.mxu0
    %v1352 = vpop.f32.mrf.mxu0
    %1353 = vdwg.mxu0
    %1354 = vmatprep.subr.bf16.mxu0 0
    %1355 = vmatpush1.bf16.msra.mxu0 0
    %1356 = vmatprep.subr.bf16.mxu0 0
    %1357 = vmatpush1.bf16.msra.mxu0 0
    %1358 = vmatprep.subr.bf16.mxu0 0
    %1359 = vmatpush1.bf16.msra.mxu0 0
    %1360 = vmatprep.subr.bf16.mxu0 %v1170
    %1361 = vmatpush1.bf16.msra.mxu0 %v1167
    %1362 = vmatprep.subr.bf16.mxu0 %v1075
    %1363 = vmatpush1.bf16.msra.mxu0 %v1071
    %1364 = vmatprep.subr.bf16.mxu0 %v1023
    %1365 = vmatpush1.bf16.msra.mxu0 %v1019
    %1366 = vmatprep.subr.bf16.mxu0 %v1061
    %1367 = vmatpush1.bf16.msra.mxu0 %v1058
    %1368 = vmatprep.subr.bf16.mxu0 %v1049
    %1369 = vmatpush1.bf16.msra.mxu0 %v1046
    %1370 = vmatprep.subr.bf16.mxu0 0
    %1371 = vmatpush2.bf16.msra.mxu0 0
    %1372 = vmatprep.subr.bf16.mxu0 0
    %1373 = vmatpush2.bf16.msra.mxu0 0
    %1374 = vmatprep.subr.bf16.mxu0 0
    %1375 = vmatpush2.bf16.msra.mxu0 0
    %1376 = vmatprep.subr.bf16.mxu0 0
    %1377 = vmatpush2.bf16.msra.mxu0 0
    %1378 = vmatprep.subr.bf16.mxu0 0
    %1379 = vmatpush2.bf16.msra.mxu0 0
    %1380 = vmatprep.subr.bf16.mxu0 0
    %1381 = vmatpush2.bf16.msra.mxu0 0
    %1382 = vmatprep.subr.bf16.mxu0 0
    %1383 = vmatpush2.bf16.msra.mxu0 0
    %1384 = vmatprep.subr.bf16.mxu0 0
    %1385 = vmatpush2.bf16.msra.mxu0 0
    %1386 = vmatprep.mubr.bf16.mxu0 0
    %1387 = vmatmul.mubr.bf16.gmra.mxu0 %v1144
    %v1388 = vpop.f32.mrf.mxu0
    %v1389 = vadd.f32 0.0, %v1388
    %v1390 = vpop.f32.mrf.mxu0
    %v1391 = vadd.f32 0.0, %v1390
    %v1392 = vpop.f32.mrf.mxu0
    %v1393 = vpop.f32.mrf.mxu0
    %1394 = vdwg.mxu0
    %1395 = vmatprep.subr.bf16.mxu0 0
    %1396 = vmatpush1.bf16.msra.mxu0 0
    %1397 = vmatprep.subr.bf16.mxu0 0
    %1398 = vmatpush1.bf16.msra.mxu0 0
    %1399 = vmatprep.subr.bf16.mxu0 0
    %1400 = vmatpush1.bf16.msra.mxu0 0
    %1401 = vmatprep.subr.bf16.mxu0 %v1176
    %1402 = vmatpush1.bf16.msra.mxu0 %v1173
    %1403 = vmatprep.subr.bf16.mxu0 %v1083
    %1404 = vmatpush1.bf16.msra.mxu0 %v1079
    %1405 = vmatprep.subr.bf16.mxu0 %v1031
    %1406 = vmatpush1.bf16.msra.mxu0 %v1027
    %1407 = vmatprep.subr.bf16.mxu0 %v1067
    %1408 = vmatpush1.bf16.msra.mxu0 %v1064
    %1409 = vmatprep.subr.bf16.mxu0 %v1055
    %1410 = vmatpush1.bf16.msra.mxu0 %v1052
    %1411 = vmatprep.subr.bf16.mxu0 0
    %1412 = vmatpush2.bf16.msra.mxu0 0
    %1413 = vmatprep.subr.bf16.mxu0 0
    %1414 = vmatpush2.bf16.msra.mxu0 0
    %1415 = vmatprep.subr.bf16.mxu0 0
    %1416 = vmatpush2.bf16.msra.mxu0 0
    %1417 = vmatprep.subr.bf16.mxu0 0
    %1418 = vmatpush2.bf16.msra.mxu0 0
    %1419 = vmatprep.subr.bf16.mxu0 0
    %1420 = vmatpush2.bf16.msra.mxu0 0
    %1421 = vmatprep.subr.bf16.mxu0 0
    %1422 = vmatpush2.bf16.msra.mxu0 0
    %1423 = vmatprep.subr.bf16.mxu0 0
    %1424 = vmatpush2.bf16.msra.mxu0 0
    %1425 = vmatprep.subr.bf16.mxu0 0
    %1426 = vmatpush2.bf16.msra.mxu0 0
    %1427 = vmatprep.mubr.bf16.mxu0 0
    %1428 = vmatmul.mubr.bf16.gmra.mxu0 %v1144
    %v1429 = vpop.f32.mrf.mxu0
    %v1430 = vadd.f32 0.0, %v1429
    %v1431 = vpop.f32.mrf.mxu0
    %v1432 = vadd.f32 0.0, %v1431
    %v1433 = vpop.f32.mrf.mxu0
    %v1434 = vpop.f32.mrf.mxu0
    %1435 = vdwg.mxu0
    %1436 = vmatprep.subr.bf16.mxu0 0
    %1437 = vmatpush1.bf16.msra.mxu0 0
    %1438 = vmatprep.subr.bf16.mxu0 0
    %1439 = vmatpush1.bf16.msra.mxu0 0
    %1440 = vmatprep.subr.bf16.mxu0 0
    %1441 = vmatpush1.bf16.msra.mxu0 0
    %1442 = vmatprep.subr.bf16.mxu0 %v1182
    %1443 = vmatpush1.bf16.msra.mxu0 %v1179
    %1444 = vmatprep.subr.bf16.mxu0 %v1131
    %1445 = vmatpush1.bf16.msra.mxu0 %v1127
    %1446 = vmatprep.subr.bf16.mxu0 %v1115
    %1447 = vmatpush1.bf16.msra.mxu0 %v1111
    %1448 = vmatprep.subr.bf16.mxu0 %v1101
    %1449 = vmatpush1.bf16.msra.mxu0 %v1098
    %1450 = vmatprep.subr.bf16.mxu0 %v923
    %1451 = vmatpush1.bf16.msra.mxu0 %v919
    %1452 = vmatprep.subr.bf16.mxu0 0
    %1453 = vmatpush2.bf16.msra.mxu0 0
    %1454 = vmatprep.subr.bf16.mxu0 0
    %1455 = vmatpush2.bf16.msra.mxu0 0
    %1456 = vmatprep.subr.bf16.mxu0 0
    %1457 = vmatpush2.bf16.msra.mxu0 0
    %1458 = vmatprep.subr.bf16.mxu0 0
    %1459 = vmatpush2.bf16.msra.mxu0 0
    %1460 = vmatprep.subr.bf16.mxu0 0
    %1461 = vmatpush2.bf16.msra.mxu0 0
    %1462 = vmatprep.subr.bf16.mxu0 0
    %1463 = vmatpush2.bf16.msra.mxu0 0
    %1464 = vmatprep.subr.bf16.mxu0 0
    %1465 = vmatpush2.bf16.msra.mxu0 0
    %1466 = vmatprep.subr.bf16.mxu0 0
    %1467 = vmatpush2.bf16.msra.mxu0 0
    %1468 = vmatprep.mubr.bf16.mxu0 0
    %1469 = vmatmul.mubr.bf16.gmra.mxu0 %v1144
    %v1470 = vpop.f32.mrf.mxu0
    %v1471 = vadd.f32 0.0, %v1470
    %v1472 = vpop.f32.mrf.mxu0
    %v1473 = vadd.f32 0.0, %v1472
    %v1474 = vpop.f32.mrf.mxu0
    %v1475 = vpop.f32.mrf.mxu0
    %1476 = vdwg.mxu0
    %1477 = vmatprep.subr.bf16.mxu0 0
    %1478 = vmatpush1.bf16.msra.mxu0 0
    %1479 = vmatprep.subr.bf16.mxu0 0
    %1480 = vmatpush1.bf16.msra.mxu0 0
    %1481 = vmatprep.subr.bf16.mxu0 0
    %1482 = vmatpush1.bf16.msra.mxu0 0
    %1483 = vmatprep.subr.bf16.mxu0 %v1188
    %1484 = vmatpush1.bf16.msra.mxu0 %v1185
    %1485 = vmatprep.subr.bf16.mxu0 %v1139
    %1486 = vmatpush1.bf16.msra.mxu0 %v1135
    %1487 = vmatprep.subr.bf16.mxu0 %v1123
    %1488 = vmatpush1.bf16.msra.mxu0 %v1119
    %1489 = vmatprep.subr.bf16.mxu0 %v1107
    %1490 = vmatpush1.bf16.msra.mxu0 %v1104
    %1491 = vmatprep.subr.bf16.mxu0 %v931
    %1492 = vmatpush1.bf16.msra.mxu0 %v927
    %1493 = vmatprep.subr.bf16.mxu0 0
    %1494 = vmatpush2.bf16.msra.mxu0 0
    %1495 = vmatprep.subr.bf16.mxu0 0
    %1496 = vmatpush2.bf16.msra.mxu0 0
    %1497 = vmatprep.subr.bf16.mxu0 0
    %1498 = vmatpush2.bf16.msra.mxu0 0
    %1499 = vmatprep.subr.bf16.mxu0 0
    %1500 = vmatpush2.bf16.msra.mxu0 0
    %1501 = vmatprep.subr.bf16.mxu0 0
    %1502 = vmatpush2.bf16.msra.mxu0 0
    %1503 = vmatprep.subr.bf16.mxu0 0
    %1504 = vmatpush2.bf16.msra.mxu0 0
    %1505 = vmatprep.subr.bf16.mxu0 0
    %1506 = vmatpush2.bf16.msra.mxu0 0
    %1507 = vmatprep.subr.bf16.mxu0 0
    %1508 = vmatpush2.bf16.msra.mxu0 0
    %1509 = vmatprep.mubr.bf16.mxu0 0
    %1510 = vmatmul.mubr.bf16.gmra.mxu0 %v1144
    %v1511 = vpop.f32.mrf.mxu0
    %v1512 = vadd.f32 0.0, %v1511
    %v1513 = vpop.f32.mrf.mxu0
    %v1514 = vadd.f32 0.0, %v1513
    %v1515 = vpop.f32.mrf.mxu0
    %v1516 = vpop.f32.mrf.mxu0
    %1517 = vdwg.mxu0
    %v1518 = vadd.f32 %v1225, %v817
    %v1519 = vadd.f32 %v1227, %v819
    %v1520 = vpack.c.bf16 %v1518, %v1518
    %v1521 = vpack.c.bf16 %v1519, %v1519
    %v1524 = vunpack.c.l.b16 %v1520
    %v1525 = vunpack.c.l.b16 %v1521
    %v1526 = vpack.c.b16 %v1525, %v1524
    %1528 = vst [vmem:[%s7] sm:$0xff] %v1526
    %v1529 = vadd.f32 %v1266, %v858
    %v1530 = vadd.f32 %v1268, %v860
    %v1531 = vpack.c.bf16 %v1529, %v1529
    %v1532 = vpack.c.bf16 %v1530, %v1530
    %v1535 = vunpack.c.l.b16 %v1531
    %v1536 = vunpack.c.l.b16 %v1532
    %v1537 = vpack.c.b16 %v1536, %v1535
    %s1539 = scalar_lea.vmem %s7, 32
    %1540 = vst [vmem:[%s1539] sm:$0xff] %v1537
    %v1541 = vadd.f32 %v1307, %v817
    %v1542 = vadd.f32 %v1309, %v819
    %v1543 = vpack.c.bf16 %v1541, %v1541
    %v1544 = vpack.c.bf16 %v1542, %v1542
    %v1547 = vunpack.c.l.b16 %v1543
    %v1548 = vunpack.c.l.b16 %v1544
    %v1549 = vpack.c.b16 %v1548, %v1547
    %1551 = vst [vmem:[%s7 + $0x8] sm:$0xff] %v1549
    %v1552 = vadd.f32 %v1348, %v858
    %v1553 = vadd.f32 %v1350, %v860
    %v1554 = vpack.c.bf16 %v1552, %v1552
    %v1555 = vpack.c.bf16 %v1553, %v1553
    %v1558 = vunpack.c.l.b16 %v1554
    %v1559 = vunpack.c.l.b16 %v1555
    %v1560 = vpack.c.b16 %v1559, %v1558
    %1562 = vst [vmem:[%s1539 + $0x8] sm:$0xff] %v1560
    %v1563 = vadd.f32 %v1389, %v817
    %v1564 = vadd.f32 %v1391, %v819
    %v1565 = vpack.c.bf16 %v1563, %v1563
    %v1566 = vpack.c.bf16 %v1564, %v1564
    %v1569 = vunpack.c.l.b16 %v1565
    %v1570 = vunpack.c.l.b16 %v1566
    %v1571 = vpack.c.b16 %v1570, %v1569
    %1573 = vst [vmem:[%s7 + $0x10] sm:$0xff] %v1571
    %v1574 = vadd.f32 %v1430, %v858
    %v1575 = vadd.f32 %v1432, %v860
    %v1576 = vpack.c.bf16 %v1574, %v1574
    %v1577 = vpack.c.bf16 %v1575, %v1575
    %v1580 = vunpack.c.l.b16 %v1576
    %v1581 = vunpack.c.l.b16 %v1577
    %v1582 = vpack.c.b16 %v1581, %v1580
    %1584 = vst [vmem:[%s1539 + $0x10] sm:$0xff] %v1582
    %v1585 = vadd.f32 %v1471, %v817
    %v1586 = vadd.f32 %v1473, %v819
    %v1587 = vpack.c.bf16 %v1585, %v1585
    %v1588 = vpack.c.bf16 %v1586, %v1586
    %v1591 = vunpack.c.l.b16 %v1587
    %v1592 = vunpack.c.l.b16 %v1588
    %v1593 = vpack.c.b16 %v1592, %v1591
    %1595 = vst [vmem:[%s7 + $0x18] sm:$0xff] %v1593
    %v1596 = vadd.f32 %v1512, %v858
    %v1597 = vadd.f32 %v1514, %v860
    %v1598 = vpack.c.bf16 %v1596, %v1596
    %v1599 = vpack.c.bf16 %v1597, %v1597
    %v1602 = vunpack.c.l.b16 %v1598
    %v1603 = vunpack.c.l.b16 %v1599
    %v1604 = vpack.c.b16 %v1603, %v1602
    %1606 = vst [vmem:[%s1539 + $0x18] sm:$0xff] %v1604
    // Predicated region
    $region38: #{resblock_up_forward.5} parent=1 // pred_check
      _
    $region39: #{resblock_up_forward.5} parent=1 // pred_check_branch
      %1608 = sbr.rel (0) target = $region41
    $region40: #{resblock_up_forward.5} parent=1 // pred_region
      _
    $region41: #{resblock_up_forward.5} parent=1 // pred_fallthru
      _
    // Predicated region
    $region42: #{resblock_up_forward.5} parent=1 // pred_check
      _
    $region43: #{resblock_up_forward.5} parent=1 // pred_check_branch
      %1610 = sbr.rel (0) target = $region45
    $region44: #{resblock_up_forward.5} parent=1 // pred_region
      _
    $region45: #{resblock_up_forward.5} parent=1 // pred_fallthru
      _
    %1611 = vsyncpa [#allocation4], 1
    %1612 = vsyncpa [#allocation6], 1

</llo_original>
